<compile_context>
chip_gen: v6e
topology: v6e:2x2x1
jax: 0.10.0
libtpu: 0.0.40
codegen_flags: <defaults>
</compile_context>

<pallas_src>
import functools
import math

import jax
import jax.numpy as jnp
from jax.experimental import pallas as pl
from jax.experimental.pallas import tpu as pltpu

NHEAD = 8
LN_EPS = 1e-5          # PyTorch layer_norm_eps default
DIM_FF = 2048          # nn.Transformer default dim_feedforward


def _layer_norm(x, w, b):
    mu = jnp.mean(x, axis=-1, keepdims=True)
    var = jnp.mean((x - mu) ** 2, axis=-1, keepdims=True)
    return (x - mu) * jax.lax.rsqrt(var + LN_EPS) * w + b


def _largest_divisor_leq(n, target):
    """Largest divisor of n that is <= target (n itself if n <= target)."""
    if n <= target:
        return n
    for t in range(target, 0, -1):
        if n % t == 0:
            return t
    return n


def _vmem_cap_bytes():
    try:
        cap = int(pltpu.get_tpu_info().vmem_capacity_bytes)
    except Exception:
        cap = 64 * 1024 * 1024          # conservative (v7x per-TC capacity)
    return int(cap * 0.9)


def encoder_stack_kernel(x_hbm_ref, wqkv_ref, wo_ref, w1_ref, w2_ref,
                         bqkv_ref, vec_ref, b1_ref, fn_ref, o_ref,
                         *, nhead, head_dim, q_tile, kv_tile, ff_tile):
    """One grid step = one encoder layer applied to the whole (B, S, D) block.

    grid = (num_layers,).  The output BlockSpec index map is constant, so
    o_ref is the resident VMEM layer-to-layer carry; per-layer weights are
    streamed from HBM exactly once per layer.
    """
    layer = pl.program_id(0)
    n_layers = pl.num_programs(0)
    B, S, D = o_ref.shape
    M = B * S
    H = nhead

    # Layer 0: pull the activations from HBM into the resident carry ONCE.
    # (x stays in HBM -> no second resident (B,S,D) f32 block in VMEM.)
    @pl.when(layer == 0)
    def _():
        pltpu.sync_copy(x_hbm_ref, o_ref)

    x = o_ref[...].reshape(M, D)               # f32 carry, M = B*S
    xb = x.astype(jnp.bfloat16)                # bf16 operands, f32 accumulate

    vecs = vec_ref[0]                          # (8, D) packed small params
    bo = vecs[0:1]
    ln1w, ln1b = vecs[1:2], vecs[2:3]
    b2 = vecs[3:4]
    ln2w, ln2b = vecs[4:5], vecs[5:6]

    # ---- fused Q/K/V projection: one MXU dispatch, N = 3*D -----------------
    # 1/sqrt(head_dim) is already folded into Wq / bq (parameter prep time).
    qkv = (jnp.dot(xb, wqkv_ref[0], preferred_element_type=jnp.float32)
           + bqkv_ref[0])
    q3 = qkv[:, 0 * D:1 * D].reshape(B, S, D)
    k3 = qkv[:, 1 * D:2 * D].reshape(B, S, D)
    v3 = qkv[:, 2 * D:3 * D].reshape(B, S, D)

    # ---- head-batched attention, flash-tiled over (q, kv) chunks -----------
    # Heads go onto the leading batch axis: (H*B, S, head_dim).  This avoids
    # in-kernel sublane transposes while giving one batched MXU dispatch and
    # one batched softmax instead of 8 per-head ones.
    def split_heads(t3):
        return jnp.concatenate(
            [t3[:, :, h * head_dim:(h + 1) * head_dim] for h in range(H)],
            axis=0).astype(jnp.bfloat16)       # (H*B, S, head_dim)

    qh, kh, vh = split_heads(q3), split_heads(k3), split_heads(v3)
    HB = H * B

    n_q = S // q_tile
    n_kv = S // kv_tile
    ctx_rows = []
    for qi in range(n_q):                      # static loops: online softmax
        q_blk = qh[:, qi * q_tile:(qi + 1) * q_tile, :]
        m_i = jnp.full((HB, q_tile, 1), -jnp.inf, jnp.float32)
        l_i = jnp.zeros((HB, q_tile, 1), jnp.float32)
        acc = jnp.zeros((HB, q_tile, head_dim), jnp.float32)
        for ki in range(n_kv):
            k_blk = kh[:, ki * kv_tile:(ki + 1) * kv_tile, :]
            v_blk = vh[:, ki * kv_tile:(ki + 1) * kv_tile, :]
            s = jnp.einsum('bqd,bkd->bqk', q_blk, k_blk,
                           preferred_element_type=jnp.float32)
            m_new = jnp.maximum(m_i, jnp.max(s, axis=-1, keepdims=True))
            alpha = jnp.exp(m_i - m_new)
            p = jnp.exp(s - m_new)
            l_i = alpha * l_i + jnp.sum(p, axis=-1, keepdims=True)
            acc = alpha * acc + jnp.einsum('bqk,bkd->bqd',
                                           p.astype(jnp.bfloat16), v_blk,
                                           preferred_element_type=jnp.float32)
            m_i = m_new
        # EUP reciprocal (approx); swap for exact division in parity tests.
        ctx_rows.append(acc * pl.reciprocal(l_i, approx=True))
    ctx_h = ctx_rows[0] if n_q == 1 else jnp.concatenate(ctx_rows, axis=1)
    # (H*B, S, head_dim) -> (M, D): per-head leading slice + lane concat.
    ctx = jnp.concatenate(
        [ctx_h[h * B:(h + 1) * B] for h in range(H)], axis=-1).reshape(M, D)

    attn = (jnp.dot(ctx.astype(jnp.bfloat16), wo_ref[0],
                    preferred_element_type=jnp.float32) + bo)

    # post-norm encoder layer (norm_first=False); dropout == identity (eval)
    y = _layer_norm(x + attn, ln1w, ln1b)

    # ---- feed-forward, token-tiled over S chunks ----------------------------
    # keeps the f32 (tokens, F) hidden tile small; results are written straight
    # into the resident output carry chunk-by-chunk.
    y3 = y.reshape(B, S, D)
    n_ff = S // ff_tile
    for c in range(n_ff):
        lo = c * ff_tile
        yc = y3[:, lo:lo + ff_tile, :].reshape(B * ff_tile, D)
        hid = jnp.maximum(
            jnp.dot(yc.astype(jnp.bfloat16), w1_ref[0],
                    preferred_element_type=jnp.float32) + b1_ref[0],
            0.0)                                              # ReLU (default)
        ff = (jnp.dot(hid.astype(jnp.bfloat16), w2_ref[0],
                      preferred_element_type=jnp.float32) + b2)
        zc = _layer_norm(yc + ff, ln2w, ln2b).reshape(B, ff_tile, D)
        if n_ff == 1:
            o_ref[...] = zc
        else:
            o_ref[:, lo:lo + ff_tile, :] = zc

    @pl.when(layer == n_layers - 1)
    def _():
        # final TransformerEncoder norm (nn.Transformer passes LayerNorm(d_model))
        o_ref[...] = _layer_norm(o_ref[...], fn_ref[0:1], fn_ref[1:2])


def transformer_encoder_block(x_bsd, params):
    """Apply one stacked encoder (all its layers + final norm) via Pallas."""
    B, S, D = x_bsd.shape
    L = params["wqkv"].shape[0]
    F = params["w1"].shape[-1]
    head_dim = D // NHEAD

    # Tile targets (multiples of 256 token-rows / 512 kv cols where possible).
    q_tile = _largest_divisor_leq(S, 256)
    kv_tile = _largest_divisor_leq(S, 512)
    ff_tile = _largest_divisor_leq(S, max(8, 512 // max(B, 1)))

    per_layer_w_bytes = 2 * (D * 3 * D + D * D + D * F + F * D)   # bf16
    # Shallow-buffer the two big FFN weight streams when double-buffering all
    # weights would eat most of VMEM (matters on v7x's 64 MiB).
    big_weights = 2 * per_layer_w_bytes > (40 << 20)

    def _wspec(shape):
        if big_weights:
            return pl.BlockSpec(shape, lambda l: (l, 0, 0),
                                pipeline_mode=pl.Buffered(1))
        return pl.BlockSpec(shape, lambda l: (l, 0, 0))

    # Explicit VMEM budget computed from the actual block / tile sizes.
    M = B * S
    HB = NHEAD * B
    act_bytes = B * S * D * 4                                  # resident carry
    w_buf_bytes = per_layer_w_bytes * (1 if big_weights else 2) \
        + per_layer_w_bytes
    vec_bytes = 2 * 4 * (3 * D + 8 * D + F + 2 * D)
    tmp_bytes = (M * 3 * D * 4                                 # fused qkv (f32)
                 + 3 * HB * S * head_dim * 2                   # bf16 q/k/v heads
                 + 2 * HB * q_tile * kv_tile * 4               # score tile + exp
                 + 3 * M * D * 4                               # ctx / attn / y
                 + B * ff_tile * F * 4                         # FFN hidden tile
                 + 2 * B * ff_tile * D * 4)
    vmem_limit = act_bytes + w_buf_bytes + vec_bytes + tmp_bytes + (8 << 20)
    vmem_limit = int(min(max(vmem_limit, 32 << 20), _vmem_cap_bytes()))

    in_specs = [
        pl.BlockSpec(memory_space=pl.ANY),                     # x stays in HBM
        pl.BlockSpec((1, D, 3 * D), lambda l: (l, 0, 0)),      # fused Wqkv bf16
        pl.BlockSpec((1, D, D),     lambda l: (l, 0, 0)),      # Wo   bf16
        _wspec((1, D, F)),                                     # W1   bf16
        _wspec((1, F, D)),                                     # W2   bf16
        pl.BlockSpec((1, 1, 3 * D), lambda l: (l, 0, 0)),      # fused qkv bias
        pl.BlockSpec((1, 8, D),     lambda l: (l, 0, 0)),      # packed vectors
        pl.BlockSpec((1, 1, F),     lambda l: (l, 0, 0)),      # b1
        pl.BlockSpec((2, D),        lambda l: (0, 0)),         # final norm w,b
    ]
    out_spec = pl.BlockSpec((B, S, D), lambda l: (0, 0, 0))    # resident carry

    # TODO(synk): on v7x add a leading "parallel" batch/token-tile grid axis to
    #             feed both TensorCores (costs one extra weight re-stream per
    #             tile); optionally store W1/W2 as fp8 to halve their footprint.
    kernel = functools.partial(encoder_stack_kernel, nhead=NHEAD,
                               head_dim=head_dim, q_tile=q_tile,
                               kv_tile=kv_tile, ff_tile=ff_tile)
    return pl.pallas_call(
        kernel,
        out_shape=jax.ShapeDtypeStruct((B, S, D), jnp.float32),
        grid_spec=pltpu.PrefetchScalarGridSpec(
            num_scalar_prefetch=0,
            grid=(L,),
            in_specs=in_specs,
            out_specs=out_spec,
        ),
        compiler_params=pltpu.CompilerParams(
            dimension_semantics=("arbitrary",),
            vmem_limit_bytes=vmem_limit,
        ),
    )(x_bsd, params["wqkv"], params["wo"], params["w1"], params["w2"],
      params["bqkv"], params["vec"], params["b1"], params["fn"])


def init_block_params(key, depth, d_model, dff):
    """Deterministic synthetic parameters for one encoder stack (depth layers).

    Generated in PyTorch shapes (Linear: y = x @ W.T + b), transposed to the
    kernel's (in, out) layout, fused/packed, and cast (weights) to bf16.  The
    1/sqrt(head_dim) attention scale is folded into Wq and bq.
    """
    D, F = d_model, dff
    scale = 1.0 / math.sqrt(D // NHEAD)
    wqkv, wo, w1, w2, bqkv, vec, b1 = [], [], [], [], [], [], []
    for i in range(depth):
        lk = jax.random.fold_in(key, i)
        ks = jax.random.split(lk, 6)
        in_proj_w = jax.random.normal(ks[0], (3 * D, D), jnp.float32) * 0.05
        in_proj_b = jax.random.normal(ks[1], (3 * D,), jnp.float32) * 0.05
        wo_l = jax.random.normal(ks[2], (D, D), jnp.float32) * 0.05
        w1_l = jax.random.normal(ks[3], (F, D), jnp.float32) * 0.05
        b1_l = jax.random.normal(ks[4], (F,), jnp.float32) * 0.05
        w2_l = jax.random.normal(ks[5], (D, F), jnp.float32) * 0.05

        wq = in_proj_w[0 * D:1 * D].T * scale      # scale folded into Wq
        wk = in_proj_w[1 * D:2 * D].T
        wv = in_proj_w[2 * D:3 * D].T
        wqkv.append(jnp.concatenate([wq, wk, wv], axis=1))        # (D, 3D)
        bq = in_proj_b[0 * D:1 * D] * scale        # scale folded into bq
        bk = in_proj_b[1 * D:2 * D]
        bv = in_proj_b[2 * D:3 * D]
        bqkv.append(jnp.concatenate([bq, bk, bv])[None, :])       # (1, 3D)

        wo.append(wo_l.T)                                         # (D, D)
        w1.append(w1_l.T)                                         # (D, F)
        w2.append(w2_l.T)                                         # (F, D)
        vec.append(jnp.stack([
            jnp.zeros((D,), jnp.float32),                         # bo
            jnp.ones((D,), jnp.float32),                          # ln1 w
            jnp.zeros((D,), jnp.float32),                         # ln1 b
            jnp.zeros((D,), jnp.float32),                         # b2
            jnp.ones((D,), jnp.float32),                          # ln2 w
            jnp.zeros((D,), jnp.float32),                         # ln2 b
            jnp.zeros((D,), jnp.float32),                         # pad
            jnp.zeros((D,), jnp.float32),                         # pad
        ], axis=0))
        b1.append(b1_l[None, :])

    return {
        "wqkv": jnp.stack(wqkv).astype(jnp.bfloat16),             # (L, D, 3D)
        "wo":   jnp.stack(wo).astype(jnp.bfloat16),               # (L, D, D)
        "w1":   jnp.stack(w1).astype(jnp.bfloat16),               # (L, D, F)
        "w2":   jnp.stack(w2).astype(jnp.bfloat16),               # (L, F, D)
        "bqkv": jnp.stack(bqkv),                                  # (L, 1, 3D)
        "vec":  jnp.stack(vec),                                   # (L, 8, D)
        "b1":   jnp.stack(b1),                                    # (L, 1, F)
        "fn":   jnp.concatenate([jnp.ones((1, D), jnp.float32),
                                 jnp.zeros((1, D), jnp.float32)], axis=0),
    }


class TransformerBlockPallas:
    """Pallas equivalent of TransformerBlock(in_channels, ctx_dim, transformer_depth)."""

    def __init__(self, in_channels, ctx_dim, transformer_depth, *, dff=DIM_FF, key=None):
        del ctx_dim  # unused, as in the reference module
        assert in_channels % NHEAD == 0
        if key is None:
            key = jax.random.PRNGKey(0)
        # len(transformer_depth) stacked transformers, each with that many encoder layers
        self.block_params = [
            init_block_params(jax.random.fold_in(key, i), int(d), in_channels, dff)
            for i, d in enumerate(transformer_depth)
        ]

    def __call__(self, x_sbd):
        # layout: x_sbd is (seq, batch, d_model)
        x_bsd = jnp.transpose(x_sbd, (1, 0, 2))
        for params in self.block_params:
            x_bsd = transformer_encoder_block(x_bsd, params)
        return jnp.transpose(x_bsd, (1, 0, 2))


if __name__ == "__main__":
    S, B, D = 8, 2, 32                      # seq, batch, d_model (divisible by nhead=8)
    transformer_depth = [2]                  # one stack with 2 encoder layers

    key = jax.random.PRNGKey(0)
    kx, kp = jax.random.split(key)
    x = jax.random.normal(kx, (S, B, D), dtype=jnp.float32)

    model = TransformerBlockPallas(in_channels=D, ctx_dim=None,
                                   transformer_depth=transformer_depth, key=kp)
    y = model(x)
    y = jax.block_until_ready(y)

    assert y.shape == (S, B, D), y.shape
    assert bool(jnp.all(jnp.isfinite(y)))
    print("KERNEL_OK")
</pallas_src>

<mosaic_0001>
module attributes {stable_mosaic.version = 11 : i64} {
  func.func @encoder_stack_kernel(%arg0: i32, %arg1: memref<2x8x32xf32, #tpu.memory_space<any>>, %arg2: memref<1x32x96xbf16, #tpu.memory_space<vmem>>, %arg3: memref<1x32x32xbf16, #tpu.memory_space<vmem>>, %arg4: memref<1x32x2048xbf16, #tpu.memory_space<vmem>>, %arg5: memref<1x2048x32xbf16, #tpu.memory_space<vmem>>, %arg6: memref<1x1x96xf32, #tpu.memory_space<vmem>>, %arg7: memref<1x8x32xf32, #tpu.memory_space<vmem>>, %arg8: memref<1x1x2048xf32, #tpu.memory_space<vmem>>, %arg9: memref<2x32xf32, #tpu.memory_space<vmem>>, %arg10: memref<2x8x32xf32, #tpu.memory_space<vmem>>) attributes {dimension_semantics = [#tpu.dimension_semantics<arbitrary>], iteration_bounds = array<i64: 2>, scalar_prefetch = 0 : i64, scratch_operands = 0 : i64, tpu.core_type = #tpu.core_type<tc>, window_params = [{}, {transform_indices = @transform_1, window_bounds = array<i64: 1, 32, 96>}, {transform_indices = @transform_2, window_bounds = array<i64: 1, 32, 32>}, {transform_indices = @transform_3, window_bounds = array<i64: 1, 32, 2048>}, {transform_indices = @transform_4, window_bounds = array<i64: 1, 2048, 32>}, {transform_indices = @transform_5, window_bounds = array<i64: 1, 1, 96>}, {transform_indices = @transform_6, window_bounds = array<i64: 1, 8, 32>}, {transform_indices = @transform_7, window_bounds = array<i64: 1, 1, 2048>}, {pipeline_mode = #tpu.pipeline_mode<synchronous>, transform_indices = @transform_8, window_bounds = array<i64: 2, 32>}, {pipeline_mode = #tpu.pipeline_mode<synchronous>, transform_indices = @transform_9, window_bounds = array<i64: 2, 8, 32>}]} {
    %c0_i32 = arith.constant 0 : i32
    %0 = arith.cmpi eq, %arg0, %c0_i32 : i32
    %1 = arith.extui %0 : i1 to i32
    %c0_i32_0 = arith.constant 0 : i32
    %2 = arith.cmpi ne, %1, %c0_i32_0 : i32
    scf.if %2 {
      "tpu.region"() ({
        %166 = tpu.sem_alloc : memref<!tpu.dma_semaphore, #tpu.memory_space<semaphore_mem>>
        tpu.enqueue_dma source(%arg1 : memref<2x8x32xf32, #tpu.memory_space<any>>) target(%arg10 : memref<2x8x32xf32, #tpu.memory_space<vmem>>) target_semaphore(%166 : memref<!tpu.dma_semaphore, #tpu.memory_space<semaphore_mem>>)
        tpu.wait_dma2 semaphore(%166 : memref<!tpu.dma_semaphore, #tpu.memory_space<semaphore_mem>>) src(%arg1 : memref<2x8x32xf32, #tpu.memory_space<any>>) dst(%arg10 : memref<2x8x32xf32, #tpu.memory_space<vmem>>)
        tpu.yield
      }) : () -> ()
    } else {
    }
    %c0 = arith.constant 0 : index
    %c0_1 = arith.constant 0 : index
    %c0_2 = arith.constant 0 : index
    %3 = vector.load %arg10[%c0, %c0_1, %c0_2] : memref<2x8x32xf32, #tpu.memory_space<vmem>>, vector<2x8x32xf32>
    %4 = vector.shape_cast %3 : vector<2x8x32xf32> to vector<16x32xf32>
    %5 = arith.truncf %4 : vector<16x32xf32> to vector<16x32xbf16>
    %c0_3 = arith.constant 0 : index
    %c0_4 = arith.constant 0 : index
    %c0_5 = arith.constant 0 : index
    %6 = vector.load %arg7[%c0_3, %c0_4, %c0_5] : memref<1x8x32xf32, #tpu.memory_space<vmem>>, vector<1x8x32xf32>
    %7 = vector.shape_cast %6 : vector<1x8x32xf32> to vector<8x32xf32>
    %8 = vector.extract_strided_slice %7 {offsets = [0, 0], sizes = [1, 32], strides = [1, 1]} : vector<8x32xf32> to vector<1x32xf32>
    %9 = vector.extract_strided_slice %7 {offsets = [1, 0], sizes = [1, 32], strides = [1, 1]} : vector<8x32xf32> to vector<1x32xf32>
    %10 = vector.extract_strided_slice %7 {offsets = [2, 0], sizes = [1, 32], strides = [1, 1]} : vector<8x32xf32> to vector<1x32xf32>
    %11 = vector.extract_strided_slice %7 {offsets = [3, 0], sizes = [1, 32], strides = [1, 1]} : vector<8x32xf32> to vector<1x32xf32>
    %12 = vector.extract_strided_slice %7 {offsets = [4, 0], sizes = [1, 32], strides = [1, 1]} : vector<8x32xf32> to vector<1x32xf32>
    %13 = vector.extract_strided_slice %7 {offsets = [5, 0], sizes = [1, 32], strides = [1, 1]} : vector<8x32xf32> to vector<1x32xf32>
    %c0_6 = arith.constant 0 : index
    %c0_7 = arith.constant 0 : index
    %c0_8 = arith.constant 0 : index
    %14 = vector.load %arg2[%c0_6, %c0_7, %c0_8] : memref<1x32x96xbf16, #tpu.memory_space<vmem>>, vector<1x32x96xbf16>
    %15 = vector.shape_cast %14 : vector<1x32x96xbf16> to vector<32x96xbf16>
    %cst = arith.constant dense<0.000000e+00> : vector<16x96xf32>
    %16 = tpu.matmul %5, %15, %cst {dimension_numbers = #tpu.dot_dimension_numbers<[1], [0], [0], [1], [0, 0, 1, 1], [], []>} : vector<16x32xbf16>, vector<32x96xbf16>, vector<16x96xf32> -> vector<16x96xf32>
    %c0_9 = arith.constant 0 : index
    %c0_10 = arith.constant 0 : index
    %c0_11 = arith.constant 0 : index
    %17 = vector.load %arg6[%c0_9, %c0_10, %c0_11] : memref<1x1x96xf32, #tpu.memory_space<vmem>>, vector<1x1x96xf32>
    %18 = vector.shape_cast %17 : vector<1x1x96xf32> to vector<1x96xf32>
    %19 = vector.broadcast %18 : vector<1x96xf32> to vector<16x96xf32>
    %20 = arith.addf %16, %19 : vector<16x96xf32>
    %21 = vector.extract_strided_slice %20 {offsets = [0, 0], sizes = [16, 32], strides = [1, 1]} : vector<16x96xf32> to vector<16x32xf32>
    %22 = vector.shape_cast %21 : vector<16x32xf32> to vector<2x8x32xf32>
    %23 = vector.extract_strided_slice %20 {offsets = [0, 32], sizes = [16, 32], strides = [1, 1]} : vector<16x96xf32> to vector<16x32xf32>
    %24 = vector.shape_cast %23 : vector<16x32xf32> to vector<2x8x32xf32>
    %25 = vector.extract_strided_slice %20 {offsets = [0, 64], sizes = [16, 32], strides = [1, 1]} : vector<16x96xf32> to vector<16x32xf32>
    %26 = vector.shape_cast %25 : vector<16x32xf32> to vector<2x8x32xf32>
    %27 = vector.extract_strided_slice %22 {offsets = [0, 0, 0], sizes = [2, 8, 4], strides = [1, 1, 1]} : vector<2x8x32xf32> to vector<2x8x4xf32>
    %28 = vector.extract_strided_slice %22 {offsets = [0, 0, 4], sizes = [2, 8, 4], strides = [1, 1, 1]} : vector<2x8x32xf32> to vector<2x8x4xf32>
    %29 = vector.extract_strided_slice %22 {offsets = [0, 0, 8], sizes = [2, 8, 4], strides = [1, 1, 1]} : vector<2x8x32xf32> to vector<2x8x4xf32>
    %30 = vector.extract_strided_slice %22 {offsets = [0, 0, 12], sizes = [2, 8, 4], strides = [1, 1, 1]} : vector<2x8x32xf32> to vector<2x8x4xf32>
    %31 = vector.extract_strided_slice %22 {offsets = [0, 0, 16], sizes = [2, 8, 4], strides = [1, 1, 1]} : vector<2x8x32xf32> to vector<2x8x4xf32>
    %32 = vector.extract_strided_slice %22 {offsets = [0, 0, 20], sizes = [2, 8, 4], strides = [1, 1, 1]} : vector<2x8x32xf32> to vector<2x8x4xf32>
    %33 = vector.extract_strided_slice %22 {offsets = [0, 0, 24], sizes = [2, 8, 4], strides = [1, 1, 1]} : vector<2x8x32xf32> to vector<2x8x4xf32>
    %34 = vector.extract_strided_slice %22 {offsets = [0, 0, 28], sizes = [2, 8, 4], strides = [1, 1, 1]} : vector<2x8x32xf32> to vector<2x8x4xf32>
    %35 = tpu.concatenate %27, %28, %29, %30, %31, %32, %33, %34 in 0 : vector<2x8x4xf32>, vector<2x8x4xf32>, vector<2x8x4xf32>, vector<2x8x4xf32>, vector<2x8x4xf32>, vector<2x8x4xf32>, vector<2x8x4xf32>, vector<2x8x4xf32> -> vector<16x8x4xf32>
    %36 = arith.truncf %35 : vector<16x8x4xf32> to vector<16x8x4xbf16>
    %37 = vector.extract_strided_slice %24 {offsets = [0, 0, 0], sizes = [2, 8, 4], strides = [1, 1, 1]} : vector<2x8x32xf32> to vector<2x8x4xf32>
    %38 = vector.extract_strided_slice %24 {offsets = [0, 0, 4], sizes = [2, 8, 4], strides = [1, 1, 1]} : vector<2x8x32xf32> to vector<2x8x4xf32>
    %39 = vector.extract_strided_slice %24 {offsets = [0, 0, 8], sizes = [2, 8, 4], strides = [1, 1, 1]} : vector<2x8x32xf32> to vector<2x8x4xf32>
    %40 = vector.extract_strided_slice %24 {offsets = [0, 0, 12], sizes = [2, 8, 4], strides = [1, 1, 1]} : vector<2x8x32xf32> to vector<2x8x4xf32>
    %41 = vector.extract_strided_slice %24 {offsets = [0, 0, 16], sizes = [2, 8, 4], strides = [1, 1, 1]} : vector<2x8x32xf32> to vector<2x8x4xf32>
    %42 = vector.extract_strided_slice %24 {offsets = [0, 0, 20], sizes = [2, 8, 4], strides = [1, 1, 1]} : vector<2x8x32xf32> to vector<2x8x4xf32>
    %43 = vector.extract_strided_slice %24 {offsets = [0, 0, 24], sizes = [2, 8, 4], strides = [1, 1, 1]} : vector<2x8x32xf32> to vector<2x8x4xf32>
    %44 = vector.extract_strided_slice %24 {offsets = [0, 0, 28], sizes = [2, 8, 4], strides = [1, 1, 1]} : vector<2x8x32xf32> to vector<2x8x4xf32>
    %45 = tpu.concatenate %37, %38, %39, %40, %41, %42, %43, %44 in 0 : vector<2x8x4xf32>, vector<2x8x4xf32>, vector<2x8x4xf32>, vector<2x8x4xf32>, vector<2x8x4xf32>, vector<2x8x4xf32>, vector<2x8x4xf32>, vector<2x8x4xf32> -> vector<16x8x4xf32>
    %46 = arith.truncf %45 : vector<16x8x4xf32> to vector<16x8x4xbf16>
    %47 = vector.extract_strided_slice %26 {offsets = [0, 0, 0], sizes = [2, 8, 4], strides = [1, 1, 1]} : vector<2x8x32xf32> to vector<2x8x4xf32>
    %48 = vector.extract_strided_slice %26 {offsets = [0, 0, 4], sizes = [2, 8, 4], strides = [1, 1, 1]} : vector<2x8x32xf32> to vector<2x8x4xf32>
    %49 = vector.extract_strided_slice %26 {offsets = [0, 0, 8], sizes = [2, 8, 4], strides = [1, 1, 1]} : vector<2x8x32xf32> to vector<2x8x4xf32>
    %50 = vector.extract_strided_slice %26 {offsets = [0, 0, 12], sizes = [2, 8, 4], strides = [1, 1, 1]} : vector<2x8x32xf32> to vector<2x8x4xf32>
    %51 = vector.extract_strided_slice %26 {offsets = [0, 0, 16], sizes = [2, 8, 4], strides = [1, 1, 1]} : vector<2x8x32xf32> to vector<2x8x4xf32>
    %52 = vector.extract_strided_slice %26 {offsets = [0, 0, 20], sizes = [2, 8, 4], strides = [1, 1, 1]} : vector<2x8x32xf32> to vector<2x8x4xf32>
    %53 = vector.extract_strided_slice %26 {offsets = [0, 0, 24], sizes = [2, 8, 4], strides = [1, 1, 1]} : vector<2x8x32xf32> to vector<2x8x4xf32>
    %54 = vector.extract_strided_slice %26 {offsets = [0, 0, 28], sizes = [2, 8, 4], strides = [1, 1, 1]} : vector<2x8x32xf32> to vector<2x8x4xf32>
    %55 = tpu.concatenate %47, %48, %49, %50, %51, %52, %53, %54 in 0 : vector<2x8x4xf32>, vector<2x8x4xf32>, vector<2x8x4xf32>, vector<2x8x4xf32>, vector<2x8x4xf32>, vector<2x8x4xf32>, vector<2x8x4xf32>, vector<2x8x4xf32> -> vector<16x8x4xf32>
    %56 = arith.truncf %55 : vector<16x8x4xf32> to vector<16x8x4xbf16>
    %cst_12 = arith.constant 0xFF800000 : f32
    %57 = vector.broadcast %cst_12 : f32 to vector<16x8x1xf32>
    %cst_13 = arith.constant 0.000000e+00 : f32
    %58 = vector.broadcast %cst_13 : f32 to vector<16x8x1xf32>
    %cst_14 = arith.constant 0.000000e+00 : f32
    %59 = vector.broadcast %cst_14 : f32 to vector<16x8x4xf32>
    "tpu.trace_start"() <{level = 10 : i32, message = "bqd,bkd->bqk"}> : () -> ()
    %cst_15 = arith.constant dense<0.000000e+00> : vector<16x8x8xf32>
    %60 = tpu.matmul %36, %46, %cst_15 {dimension_numbers = #tpu.dot_dimension_numbers<[2], [2], [1], [1], [0, 0, 0, 1, 1, 1], [0], [0]>} : vector<16x8x4xbf16>, vector<16x8x4xbf16>, vector<16x8x8xf32> -> vector<16x8x8xf32>
    "tpu.trace_stop"() : () -> ()
    %cst_16 = arith.constant dense<0xFF800000> : vector<16x8xf32>
    %61 = vector.multi_reduction <maximumf>, %60, %cst_16 [2] : vector<16x8x8xf32> to vector<16x8xf32>
    %62 = vector.shape_cast %61 : vector<16x8xf32> to vector<16x8x1xf32>
    %63 = arith.maximumf %57, %62 : vector<16x8x1xf32>
    %64 = arith.subf %57, %63 : vector<16x8x1xf32>
    %65 = math.exp %64 : vector<16x8x1xf32>
    %66 = vector.broadcast %63 : vector<16x8x1xf32> to vector<16x8x8xf32>
    %67 = arith.subf %60, %66 : vector<16x8x8xf32>
    %68 = math.exp %67 : vector<16x8x8xf32>
    %69 = arith.mulf %65, %58 : vector<16x8x1xf32>
    %cst_17 = arith.constant dense<0.000000e+00> : vector<16x8xf32>
    %70 = vector.multi_reduction <add>, %68, %cst_17 [2] : vector<16x8x8xf32> to vector<16x8xf32>
    %71 = vector.shape_cast %70 : vector<16x8xf32> to vector<16x8x1xf32>
    %72 = arith.addf %69, %71 : vector<16x8x1xf32>
    %73 = vector.broadcast %65 : vector<16x8x1xf32> to vector<16x8x4xf32>
    %74 = arith.mulf %73, %59 : vector<16x8x4xf32>
    %75 = arith.truncf %68 : vector<16x8x8xf32> to vector<16x8x8xbf16>
    "tpu.trace_start"() <{level = 10 : i32, message = "bqk,bkd->bqd"}> : () -> ()
    %cst_18 = arith.constant dense<0.000000e+00> : vector<16x8x4xf32>
    %76 = tpu.matmul %75, %56, %cst_18 {dimension_numbers = #tpu.dot_dimension_numbers<[2], [1], [1], [2], [0, 0, 0, 1, 1, 2], [0], [0]>} : vector<16x8x8xbf16>, vector<16x8x4xbf16>, vector<16x8x4xf32> -> vector<16x8x4xf32>
    "tpu.trace_stop"() : () -> ()
    %77 = arith.addf %74, %76 : vector<16x8x4xf32>
    %78 = tpu.reciprocal %72 {approx = true} : vector<16x8x1xf32> -> vector<16x8x1xf32>
    %79 = vector.broadcast %78 : vector<16x8x1xf32> to vector<16x8x4xf32>
    %80 = arith.mulf %77, %79 : vector<16x8x4xf32>
    %81 = vector.extract_strided_slice %80 {offsets = [0, 0, 0], sizes = [2, 8, 4], strides = [1, 1, 1]} : vector<16x8x4xf32> to vector<2x8x4xf32>
    %82 = vector.extract_strided_slice %80 {offsets = [2, 0, 0], sizes = [2, 8, 4], strides = [1, 1, 1]} : vector<16x8x4xf32> to vector<2x8x4xf32>
    %83 = vector.extract_strided_slice %80 {offsets = [4, 0, 0], sizes = [2, 8, 4], strides = [1, 1, 1]} : vector<16x8x4xf32> to vector<2x8x4xf32>
    %84 = vector.extract_strided_slice %80 {offsets = [6, 0, 0], sizes = [2, 8, 4], strides = [1, 1, 1]} : vector<16x8x4xf32> to vector<2x8x4xf32>
    %85 = vector.extract_strided_slice %80 {offsets = [8, 0, 0], sizes = [2, 8, 4], strides = [1, 1, 1]} : vector<16x8x4xf32> to vector<2x8x4xf32>
    %86 = vector.extract_strided_slice %80 {offsets = [10, 0, 0], sizes = [2, 8, 4], strides = [1, 1, 1]} : vector<16x8x4xf32> to vector<2x8x4xf32>
    %87 = vector.extract_strided_slice %80 {offsets = [12, 0, 0], sizes = [2, 8, 4], strides = [1, 1, 1]} : vector<16x8x4xf32> to vector<2x8x4xf32>
    %88 = vector.extract_strided_slice %80 {offsets = [14, 0, 0], sizes = [2, 8, 4], strides = [1, 1, 1]} : vector<16x8x4xf32> to vector<2x8x4xf32>
    %89 = tpu.concatenate %81, %82, %83, %84, %85, %86, %87, %88 in 2 : vector<2x8x4xf32>, vector<2x8x4xf32>, vector<2x8x4xf32>, vector<2x8x4xf32>, vector<2x8x4xf32>, vector<2x8x4xf32>, vector<2x8x4xf32>, vector<2x8x4xf32> -> vector<2x8x32xf32>
    %90 = vector.shape_cast %89 : vector<2x8x32xf32> to vector<16x32xf32>
    %91 = arith.truncf %90 : vector<16x32xf32> to vector<16x32xbf16>
    %c0_19 = arith.constant 0 : index
    %c0_20 = arith.constant 0 : index
    %c0_21 = arith.constant 0 : index
    %92 = vector.load %arg3[%c0_19, %c0_20, %c0_21] : memref<1x32x32xbf16, #tpu.memory_space<vmem>>, vector<1x32x32xbf16>
    %93 = vector.shape_cast %92 : vector<1x32x32xbf16> to vector<32x32xbf16>
    %cst_22 = arith.constant dense<0.000000e+00> : vector<16x32xf32>
    %94 = tpu.matmul %91, %93, %cst_22 {dimension_numbers = #tpu.dot_dimension_numbers<[1], [0], [0], [1], [0, 0, 1, 1], [], []>} : vector<16x32xbf16>, vector<32x32xbf16>, vector<16x32xf32> -> vector<16x32xf32>
    %95 = vector.broadcast %8 : vector<1x32xf32> to vector<16x32xf32>
    %96 = arith.addf %94, %95 : vector<16x32xf32>
    %97 = arith.addf %4, %96 : vector<16x32xf32>
    %cst_23 = arith.constant dense<0.000000e+00> : vector<16xf32>
    %98 = vector.multi_reduction <add>, %97, %cst_23 [1] : vector<16x32xf32> to vector<16xf32>
    %99 = vector.shape_cast %98 : vector<16xf32> to vector<16x1xf32>
    %cst_24 = arith.constant 3.200000e+01 : f32
    %100 = vector.broadcast %cst_24 : f32 to vector<16x1xf32>
    %101 = arith.divf %99, %100 : vector<16x1xf32>
    %102 = vector.broadcast %101 : vector<16x1xf32> to vector<16x32xf32>
    %103 = arith.subf %97, %102 : vector<16x32xf32>
    %104 = arith.mulf %103, %103 : vector<16x32xf32>
    %cst_25 = arith.constant dense<0.000000e+00> : vector<16xf32>
    %105 = vector.multi_reduction <add>, %104, %cst_25 [1] : vector<16x32xf32> to vector<16xf32>
    %106 = vector.shape_cast %105 : vector<16xf32> to vector<16x1xf32>
    %cst_26 = arith.constant 3.200000e+01 : f32
    %107 = vector.broadcast %cst_26 : f32 to vector<16x1xf32>
    %108 = arith.divf %106, %107 : vector<16x1xf32>
    %109 = vector.broadcast %101 : vector<16x1xf32> to vector<16x32xf32>
    %110 = arith.subf %97, %109 : vector<16x32xf32>
    %cst_27 = arith.constant 9.99999974E-6 : f32
    %111 = vector.broadcast %cst_27 : f32 to vector<16x1xf32>
    %112 = arith.addf %108, %111 : vector<16x1xf32>
    %113 = math.rsqrt %112 : vector<16x1xf32>
    %114 = vector.broadcast %113 : vector<16x1xf32> to vector<16x32xf32>
    %115 = arith.mulf %110, %114 : vector<16x32xf32>
    %116 = vector.broadcast %9 : vector<1x32xf32> to vector<16x32xf32>
    %117 = arith.mulf %115, %116 : vector<16x32xf32>
    %118 = vector.broadcast %10 : vector<1x32xf32> to vector<16x32xf32>
    %119 = arith.addf %117, %118 : vector<16x32xf32>
    %120 = vector.shape_cast %119 : vector<16x32xf32> to vector<2x8x32xf32>
    %121 = vector.shape_cast %120 : vector<2x8x32xf32> to vector<16x32xf32>
    %122 = arith.truncf %121 : vector<16x32xf32> to vector<16x32xbf16>
    %c0_28 = arith.constant 0 : index
    %c0_29 = arith.constant 0 : index
    %c0_30 = arith.constant 0 : index
    %123 = vector.load %arg4[%c0_28, %c0_29, %c0_30] : memref<1x32x2048xbf16, #tpu.memory_space<vmem>>, vector<1x32x2048xbf16>
    %124 = vector.shape_cast %123 : vector<1x32x2048xbf16> to vector<32x2048xbf16>
    %cst_31 = arith.constant dense<0.000000e+00> : vector<16x2048xf32>
    %125 = tpu.matmul %122, %124, %cst_31 {dimension_numbers = #tpu.dot_dimension_numbers<[1], [0], [0], [1], [0, 0, 1, 1], [], []>} : vector<16x32xbf16>, vector<32x2048xbf16>, vector<16x2048xf32> -> vector<16x2048xf32>
    %c0_32 = arith.constant 0 : index
    %c0_33 = arith.constant 0 : index
    %c0_34 = arith.constant 0 : index
    %126 = vector.load %arg8[%c0_32, %c0_33, %c0_34] : memref<1x1x2048xf32, #tpu.memory_space<vmem>>, vector<1x1x2048xf32>
    %127 = vector.shape_cast %126 : vector<1x1x2048xf32> to vector<1x2048xf32>
    %128 = vector.broadcast %127 : vector<1x2048xf32> to vector<16x2048xf32>
    %129 = arith.addf %125, %128 : vector<16x2048xf32>
    %cst_35 = arith.constant 0.000000e+00 : f32
    %130 = vector.broadcast %cst_35 : f32 to vector<16x2048xf32>
    %131 = arith.maximumf %129, %130 : vector<16x2048xf32>
    %132 = arith.truncf %131 : vector<16x2048xf32> to vector<16x2048xbf16>
    %c0_36 = arith.constant 0 : index
    %c0_37 = arith.constant 0 : index
    %c0_38 = arith.constant 0 : index
    %133 = vector.load %arg5[%c0_36, %c0_37, %c0_38] : memref<1x2048x32xbf16, #tpu.memory_space<vmem>>, vector<1x2048x32xbf16>
    %134 = vector.shape_cast %133 : vector<1x2048x32xbf16> to vector<2048x32xbf16>
    %cst_39 = arith.constant dense<0.000000e+00> : vector<16x32xf32>
    %135 = tpu.matmul %132, %134, %cst_39 {dimension_numbers = #tpu.dot_dimension_numbers<[1], [0], [0], [1], [0, 0, 1, 1], [], []>} : vector<16x2048xbf16>, vector<2048x32xbf16>, vector<16x32xf32> -> vector<16x32xf32>
    %136 = vector.broadcast %11 : vector<1x32xf32> to vector<16x32xf32>
    %137 = arith.addf %135, %136 : vector<16x32xf32>
    %138 = arith.addf %121, %137 : vector<16x32xf32>
    %cst_40 = arith.constant dense<0.000000e+00> : vector<16xf32>
    %139 = vector.multi_reduction <add>, %138, %cst_40 [1] : vector<16x32xf32> to vector<16xf32>
    %140 = vector.shape_cast %139 : vector<16xf32> to vector<16x1xf32>
    %cst_41 = arith.constant 3.200000e+01 : f32
    %141 = vector.broadcast %cst_41 : f32 to vector<16x1xf32>
    %142 = arith.divf %140, %141 : vector<16x1xf32>
    %143 = vector.broadcast %142 : vector<16x1xf32> to vector<16x32xf32>
    %144 = arith.subf %138, %143 : vector<16x32xf32>
    %145 = arith.mulf %144, %144 : vector<16x32xf32>
    %cst_42 = arith.constant dense<0.000000e+00> : vector<16xf32>
    %146 = vector.multi_reduction <add>, %145, %cst_42 [1] : vector<16x32xf32> to vector<16xf32>
    %147 = vector.shape_cast %146 : vector<16xf32> to vector<16x1xf32>
    %cst_43 = arith.constant 3.200000e+01 : f32
    %148 = vector.broadcast %cst_43 : f32 to vector<16x1xf32>
    %149 = arith.divf %147, %148 : vector<16x1xf32>
    %150 = vector.broadcast %142 : vector<16x1xf32> to vector<16x32xf32>
    %151 = arith.subf %138, %150 : vector<16x32xf32>
    %cst_44 = arith.constant 9.99999974E-6 : f32
    %152 = vector.broadcast %cst_44 : f32 to vector<16x1xf32>
    %153 = arith.addf %149, %152 : vector<16x1xf32>
    %154 = math.rsqrt %153 : vector<16x1xf32>
    %155 = vector.broadcast %154 : vector<16x1xf32> to vector<16x32xf32>
    %156 = arith.mulf %151, %155 : vector<16x32xf32>
    %157 = vector.broadcast %12 : vector<1x32xf32> to vector<16x32xf32>
    %158 = arith.mulf %156, %157 : vector<16x32xf32>
    %159 = vector.broadcast %13 : vector<1x32xf32> to vector<16x32xf32>
    %160 = arith.addf %158, %159 : vector<16x32xf32>
    %161 = vector.shape_cast %160 : vector<16x32xf32> to vector<2x8x32xf32>
    %c0_45 = arith.constant 0 : index
    %c0_46 = arith.constant 0 : index
    %c0_47 = arith.constant 0 : index
    %162 = vector.load %arg10[%c0_45, %c0_46, %c0_47] : memref<2x8x32xf32, #tpu.memory_space<vmem>>, vector<2x8x32xf32>
    tpu.vector_store %arg10[%c0_45, %c0_46, %c0_47], %161 {strides = array<i32>} : memref<2x8x32xf32, #tpu.memory_space<vmem>>, vector<2x8x32xf32>,
    %c1_i32 = arith.constant 1 : i32
    %163 = arith.cmpi eq, %arg0, %c1_i32 : i32
    %164 = arith.extui %163 : i1 to i32
    %c0_i32_48 = arith.constant 0 : i32
    %165 = arith.cmpi ne, %164, %c0_i32_48 : i32
    scf.if %165 {
      %c0_49 = arith.constant 0 : index
      %c0_50 = arith.constant 0 : index
      %c0_51 = arith.constant 0 : index
      %166 = vector.load %arg10[%c0_49, %c0_50, %c0_51] : memref<2x8x32xf32, #tpu.memory_space<vmem>>, vector<2x8x32xf32>
      %c0_52 = arith.constant 0 : index
      %c0_53 = arith.constant 0 : index
      %167 = vector.load %arg9[%c0_52, %c0_53] : memref<2x32xf32, #tpu.memory_space<vmem>>, vector<1x32xf32>
      %c1 = arith.constant 1 : index
      %c0_54 = arith.constant 0 : index
      %168 = vector.load %arg9[%c1, %c0_54] : memref<2x32xf32, #tpu.memory_space<vmem>>, vector<1x32xf32>
      %cst_55 = arith.constant dense<0.000000e+00> : vector<2x8xf32>
      %169 = vector.multi_reduction <add>, %166, %cst_55 [2] : vector<2x8x32xf32> to vector<2x8xf32>
      %170 = vector.shape_cast %169 : vector<2x8xf32> to vector<2x8x1xf32>
      %cst_56 = arith.constant 3.200000e+01 : f32
      %171 = vector.broadcast %cst_56 : f32 to vector<2x8x1xf32>
      %172 = arith.divf %170, %171 : vector<2x8x1xf32>
      %173 = vector.broadcast %172 : vector<2x8x1xf32> to vector<2x8x32xf32>
      %174 = arith.subf %166, %173 : vector<2x8x32xf32>
      %175 = arith.mulf %174, %174 : vector<2x8x32xf32>
      %cst_57 = arith.constant dense<0.000000e+00> : vector<2x8xf32>
      %176 = vector.multi_reduction <add>, %175, %cst_57 [2] : vector<2x8x32xf32> to vector<2x8xf32>
      %177 = vector.shape_cast %176 : vector<2x8xf32> to vector<2x8x1xf32>
      %cst_58 = arith.constant 3.200000e+01 : f32
      %178 = vector.broadcast %cst_58 : f32 to vector<2x8x1xf32>
      %179 = arith.divf %177, %178 : vector<2x8x1xf32>
      %180 = vector.broadcast %172 : vector<2x8x1xf32> to vector<2x8x32xf32>
      %181 = arith.subf %166, %180 : vector<2x8x32xf32>
      %cst_59 = arith.constant 9.99999974E-6 : f32
      %182 = vector.broadcast %cst_59 : f32 to vector<2x8x1xf32>
      %183 = arith.addf %179, %182 : vector<2x8x1xf32>
      %184 = math.rsqrt %183 : vector<2x8x1xf32>
      %185 = vector.broadcast %184 : vector<2x8x1xf32> to vector<2x8x32xf32>
      %186 = arith.mulf %181, %185 : vector<2x8x32xf32>
      %187 = vector.shape_cast %167 : vector<1x32xf32> to vector<1x1x32xf32>
      %188 = vector.broadcast %187 : vector<1x1x32xf32> to vector<2x8x32xf32>
      %189 = arith.mulf %186, %188 : vector<2x8x32xf32>
      %190 = vector.shape_cast %168 : vector<1x32xf32> to vector<1x1x32xf32>
      %191 = vector.broadcast %190 : vector<1x1x32xf32> to vector<2x8x32xf32>
      %192 = arith.addf %189, %191 : vector<2x8x32xf32>
      %c0_60 = arith.constant 0 : index
      %c0_61 = arith.constant 0 : index
      %c0_62 = arith.constant 0 : index
      %193 = vector.load %arg10[%c0_60, %c0_61, %c0_62] : memref<2x8x32xf32, #tpu.memory_space<vmem>>, vector<2x8x32xf32>
      tpu.vector_store %arg10[%c0_60, %c0_61, %c0_62], %192 {strides = array<i32>} : memref<2x8x32xf32, #tpu.memory_space<vmem>>, vector<2x8x32xf32>,
    } else {
    }
    return
  }
  func.func @transform_1(%arg0: i32) -> (i32, i32, i32) {
    %c0_i32 = arith.constant 0 : i32
    %c0_i32_0 = arith.constant 0 : i32
    %c0_i32_1 = arith.constant 0 : i32
    return %arg0, %c0_i32, %c0_i32_0 : i32, i32, i32
  }
  func.func @transform_2(%arg0: i32) -> (i32, i32, i32) {
    %c0_i32 = arith.constant 0 : i32
    %c0_i32_0 = arith.constant 0 : i32
    %c0_i32_1 = arith.constant 0 : i32
    return %arg0, %c0_i32, %c0_i32_0 : i32, i32, i32
  }
  func.func @transform_3(%arg0: i32) -> (i32, i32, i32) {
    %c0_i32 = arith.constant 0 : i32
    %c0_i32_0 = arith.constant 0 : i32
    %c0_i32_1 = arith.constant 0 : i32
    return %arg0, %c0_i32, %c0_i32_0 : i32, i32, i32
  }
  func.func @transform_4(%arg0: i32) -> (i32, i32, i32) {
    %c0_i32 = arith.constant 0 : i32
    %c0_i32_0 = arith.constant 0 : i32
    %c0_i32_1 = arith.constant 0 : i32
    return %arg0, %c0_i32, %c0_i32_0 : i32, i32, i32
  }
  func.func @transform_5(%arg0: i32) -> (i32, i32, i32) {
    %c0_i32 = arith.constant 0 : i32
    %c0_i32_0 = arith.constant 0 : i32
    %c0_i32_1 = arith.constant 0 : i32
    return %arg0, %c0_i32, %c0_i32_0 : i32, i32, i32
  }
  func.func @transform_6(%arg0: i32) -> (i32, i32, i32) {
    %c0_i32 = arith.constant 0 : i32
    %c0_i32_0 = arith.constant 0 : i32
    %c0_i32_1 = arith.constant 0 : i32
    return %arg0, %c0_i32, %c0_i32_0 : i32, i32, i32
  }
  func.func @transform_7(%arg0: i32) -> (i32, i32, i32) {
    %c0_i32 = arith.constant 0 : i32
    %c0_i32_0 = arith.constant 0 : i32
    %c0_i32_1 = arith.constant 0 : i32
    return %arg0, %c0_i32, %c0_i32_0 : i32, i32, i32
  }
  func.func @transform_8(%arg0: i32) -> (i32, i32) {
    %c0_i32 = arith.constant 0 : i32
    %c0_i32_0 = arith.constant 0 : i32
    %c0_i32_1 = arith.constant 0 : i32
    return %c0_i32, %c0_i32_0 : i32, i32
  }
  func.func @transform_9(%arg0: i32) -> (i32, i32, i32) {
    %c0_i32 = arith.constant 0 : i32
    %c0_i32_0 = arith.constant 0 : i32
    %c0_i32_1 = arith.constant 0 : i32
    %c0_i32_2 = arith.constant 0 : i32
    return %c0_i32, %c0_i32_0, %c0_i32_1 : i32, i32, i32
  }
}

</mosaic_0001>

<llo_original>
// kernel: tpu_custom_call.1
$region0: #{tpu_custom_call.1}
  #allocation0 [shape = 'u32[]', space=smem, size = 0x4, offset = 0x4, fixed_abs, tag = 'smem constant byte address 0x4 - core index']
  #allocation1 [shape = 'u32[144,128]{1,0:T(1,128)}', space=vmem, size = 0x12000, scoped, tag = 'internal scratch']
  #allocation5 [shape = 's32[]', space=sflag, size = 0x4, offset = 0, fixed_abs, tag = 'sflag constant byte address 0x0 - dummy sync flag']
  %s0 = inlined_call_operand.vmem [shape: f32[2,8,32], index: 0, kind: input, shape index: {}]
  %s1 = inlined_call_operand.vmem [shape: bf16[2,32,96], index: 1, kind: input, shape index: {}]
  %s2 = inlined_call_operand.vmem [shape: bf16[2,32,32], index: 2, kind: input, shape index: {}]
  %s3 = inlined_call_operand.vmem [shape: bf16[2,32,2048], index: 3, kind: input, shape index: {}]
  %s4 = inlined_call_operand.vmem [shape: bf16[2,2048,32], index: 4, kind: input, shape index: {}]
  %s5 = inlined_call_operand.vmem [shape: f32[2,1,96], index: 5, kind: input, shape index: {}]
  %s6 = inlined_call_operand.vmem [shape: f32[2,8,32], index: 6, kind: input, shape index: {}]
  %s7 = inlined_call_operand.vmem [shape: f32[2,1,2048], index: 7, kind: input, shape index: {}]
  %s8 = inlined_call_operand.vmem [shape: f32[2,32], index: 8, kind: input, shape index: {}]
  %s9 = inlined_call_operand.hbm [shape: f32[2,8,32], index: 9, kind: output, shape index: {}]
  %s10 = sld [smem:[#allocation0]]
  $region108: #{tpu_custom_call.1} parent=0
    _
  %s12 = ssub.s32 1, %s10
  %s13 = scalar_select 0, %s12, %s10
  $region1: #{tpu_custom_call.1} parent=0
    #allocation2 [shape = 'u8[8192]{0}', space=vmem, size = 0x2000, scoped, tag = 'output window, operand 0, single buffered']
    #allocation3 [shape = 's32[2]{0}', space=sflag, size = 0x8, scoped, tag = 'scoped memory for tpu_custom_call.1']
    %14 = vsyncpa [#allocation3], 0
    loop: start=0, step=1, limit=4
    $region2: #{tpu_custom_call.1} parent=1 // loop_pre_header
      _
    $region3: #{tpu_custom_call.1} parent=1 // loop_header
      %s16 = sphi 0, %s20
      %p17 = scmp.ge.s32.totalorder %s16, 4
      %s26 = sphi 0, %s28
      %s29 = sphi 0, %s26
      %s30 = sphi 0, %s29
      %s46 = sphi 0, %s30
      %s52 = sphi 0, %s54
      %s55 = sphi 0, %s52
      %s56 = sphi 0, %s55
      %s72 = sphi 0, %s56
      %s78 = sphi 0, %s80
      %s81 = sphi 0, %s78
      %s82 = sphi 0, %s81
      %s98 = sphi 0, %s82
      %s104 = sphi 0, %s106
      %s107 = sphi 0, %s104
      %s108 = sphi 0, %s107
      %s124 = sphi 0, %s108
      %s130 = sphi 0, %s132
      %s133 = sphi 0, %s130
      %s134 = sphi 0, %s133
      %s150 = sphi 0, %s134
      %s156 = sphi 0, %s158
      %s159 = sphi 0, %s156
      %s160 = sphi 0, %s159
      %s176 = sphi 0, %s160
      %s182 = sphi 0, %s184
      %s185 = sphi 0, %s182
      %s186 = sphi 0, %s185
      %s202 = sphi 0, %s186
      %s206 = sphi 0, %s206
      %s208 = sphi 0, %s206
      %s209 = sphi 0, %s208
      %s223 = sphi 0, %s209
      %s227 = sphi 0, %s227
      %s229 = sphi 0, %s227
      %s230 = sphi 0, %s229
      %s244 = sphi 0, %s230
    $region4: #{tpu_custom_call.1} parent=1 // loop_header_branch
      %19 = sbr.rel (%p17) target = $region8
    $region5: #{tpu_custom_call.1} parent=1 // loop_body
      %s21 = ssub.s32 %s16, 1
      %s22 = ssub.s32 %s16, 2
      %s23 = sadd.s32 %s16, 1
      %s24 = ssub.s32 %s16, %s23
      %p25 = scmp.eq.s32.totalorder %s24, 0
      %s27 = sadd.s32 %s26, 1
      %s28 = scalar_select %p25, %s26, %s27
      %p31 = pneg %p25
      %p32 = scmp.eq.s32.totalorder %s16, 1
      %p33 = por %p31, %p32
      %p34 = scmp.ne.s32.totalorder %s26, %s29
      %p35 = scmp.eq.s32.totalorder %s16, 0
      %p36 = por %p34, %p35
      %p37 = scmp.ne.s32.totalorder %s26, %s29
      %p38 = scmp.eq.s32.totalorder %s21, 1
      %p39 = por %p37, %p38
      %p40 = scmp.ne.s32.totalorder %s29, %s30
      %p41 = scmp.eq.s32.totalorder %s21, 0
      %p42 = por %p40, %p41
      %p43 = scmp.ne.s32.totalorder %s29, %s30
      %p44 = scmp.eq.s32.totalorder %s22, 1
      %p45 = por %p43, %p44
      %p47 = scmp.ne.s32.totalorder %s30, %s46
      %p48 = scmp.eq.s32.totalorder %s22, 0
      %p49 = por %p47, %p48
      %s50 = ssub.s32 %s16, %s23
      %p51 = scmp.eq.s32.totalorder %s50, 0
      %s53 = sadd.s32 %s52, 1
      %s54 = scalar_select %p51, %s52, %s53
      %p57 = pneg %p51
      %p58 = scmp.eq.s32.totalorder %s16, 1
      %p59 = por %p57, %p58
      %p60 = scmp.ne.s32.totalorder %s52, %s55
      %p61 = scmp.eq.s32.totalorder %s16, 0
      %p62 = por %p60, %p61
      %p63 = scmp.ne.s32.totalorder %s52, %s55
      %p64 = scmp.eq.s32.totalorder %s21, 1
      %p65 = por %p63, %p64
      %p66 = scmp.ne.s32.totalorder %s55, %s56
      %p67 = scmp.eq.s32.totalorder %s21, 0
      %p68 = por %p66, %p67
      %p69 = scmp.ne.s32.totalorder %s55, %s56
      %p70 = scmp.eq.s32.totalorder %s22, 1
      %p71 = por %p69, %p70
      %p73 = scmp.ne.s32.totalorder %s56, %s72
      %p74 = scmp.eq.s32.totalorder %s22, 0
      %p75 = por %p73, %p74
      %s76 = ssub.s32 %s16, %s23
      %p77 = scmp.eq.s32.totalorder %s76, 0
      %s79 = sadd.s32 %s78, 1
      %s80 = scalar_select %p77, %s78, %s79
      %p83 = pneg %p77
      %p84 = scmp.eq.s32.totalorder %s16, 1
      %p85 = por %p83, %p84
      %p86 = scmp.ne.s32.totalorder %s78, %s81
      %p87 = scmp.eq.s32.totalorder %s16, 0
      %p88 = por %p86, %p87
      %p89 = scmp.ne.s32.totalorder %s78, %s81
      %p90 = scmp.eq.s32.totalorder %s21, 1
      %p91 = por %p89, %p90
      %p92 = scmp.ne.s32.totalorder %s81, %s82
      %p93 = scmp.eq.s32.totalorder %s21, 0
      %p94 = por %p92, %p93
      %p95 = scmp.ne.s32.totalorder %s81, %s82
      %p96 = scmp.eq.s32.totalorder %s22, 1
      %p97 = por %p95, %p96
      %p99 = scmp.ne.s32.totalorder %s82, %s98
      %p100 = scmp.eq.s32.totalorder %s22, 0
      %p101 = por %p99, %p100
      %s102 = ssub.s32 %s16, %s23
      %p103 = scmp.eq.s32.totalorder %s102, 0
      %s105 = sadd.s32 %s104, 1
      %s106 = scalar_select %p103, %s104, %s105
      %p109 = pneg %p103
      %p110 = scmp.eq.s32.totalorder %s16, 1
      %p111 = por %p109, %p110
      %p112 = scmp.ne.s32.totalorder %s104, %s107
      %p113 = scmp.eq.s32.totalorder %s16, 0
      %p114 = por %p112, %p113
      %p115 = scmp.ne.s32.totalorder %s104, %s107
      %p116 = scmp.eq.s32.totalorder %s21, 1
      %p117 = por %p115, %p116
      %p118 = scmp.ne.s32.totalorder %s107, %s108
      %p119 = scmp.eq.s32.totalorder %s21, 0
      %p120 = por %p118, %p119
      %p121 = scmp.ne.s32.totalorder %s107, %s108
      %p122 = scmp.eq.s32.totalorder %s22, 1
      %p123 = por %p121, %p122
      %p125 = scmp.ne.s32.totalorder %s108, %s124
      %p126 = scmp.eq.s32.totalorder %s22, 0
      %p127 = por %p125, %p126
      %s128 = ssub.s32 %s16, %s23
      %p129 = scmp.eq.s32.totalorder %s128, 0
      %s131 = sadd.s32 %s130, 1
      %s132 = scalar_select %p129, %s130, %s131
      %p135 = pneg %p129
      %p136 = scmp.eq.s32.totalorder %s16, 1
      %p137 = por %p135, %p136
      %p138 = scmp.ne.s32.totalorder %s130, %s133
      %p139 = scmp.eq.s32.totalorder %s16, 0
      %p140 = por %p138, %p139
      %p141 = scmp.ne.s32.totalorder %s130, %s133
      %p142 = scmp.eq.s32.totalorder %s21, 1
      %p143 = por %p141, %p142
      %p144 = scmp.ne.s32.totalorder %s133, %s134
      %p145 = scmp.eq.s32.totalorder %s21, 0
      %p146 = por %p144, %p145
      %p147 = scmp.ne.s32.totalorder %s133, %s134
      %p148 = scmp.eq.s32.totalorder %s22, 1
      %p149 = por %p147, %p148
      %p151 = scmp.ne.s32.totalorder %s134, %s150
      %p152 = scmp.eq.s32.totalorder %s22, 0
      %p153 = por %p151, %p152
      %s154 = ssub.s32 %s16, %s23
      %p155 = scmp.eq.s32.totalorder %s154, 0
      %s157 = sadd.s32 %s156, 1
      %s158 = scalar_select %p155, %s156, %s157
      %p161 = pneg %p155
      %p162 = scmp.eq.s32.totalorder %s16, 1
      %p163 = por %p161, %p162
      %p164 = scmp.ne.s32.totalorder %s156, %s159
      %p165 = scmp.eq.s32.totalorder %s16, 0
      %p166 = por %p164, %p165
      %p167 = scmp.ne.s32.totalorder %s156, %s159
      %p168 = scmp.eq.s32.totalorder %s21, 1
      %p169 = por %p167, %p168
      %p170 = scmp.ne.s32.totalorder %s159, %s160
      %p171 = scmp.eq.s32.totalorder %s21, 0
      %p172 = por %p170, %p171
      %p173 = scmp.ne.s32.totalorder %s159, %s160
      %p174 = scmp.eq.s32.totalorder %s22, 1
      %p175 = por %p173, %p174
      %p177 = scmp.ne.s32.totalorder %s160, %s176
      %p178 = scmp.eq.s32.totalorder %s22, 0
      %p179 = por %p177, %p178
      %s180 = ssub.s32 %s16, %s23
      %p181 = scmp.eq.s32.totalorder %s180, 0
      %s183 = sadd.s32 %s182, 1
      %s184 = scalar_select %p181, %s182, %s183
      %p187 = pneg %p181
      %p188 = scmp.eq.s32.totalorder %s16, 1
      %p189 = por %p187, %p188
      %p190 = scmp.ne.s32.totalorder %s182, %s185
      %p191 = scmp.eq.s32.totalorder %s16, 0
      %p192 = por %p190, %p191
      %p193 = scmp.ne.s32.totalorder %s182, %s185
      %p194 = scmp.eq.s32.totalorder %s21, 1
      %p195 = por %p193, %p194
      %p196 = scmp.ne.s32.totalorder %s185, %s186
      %p197 = scmp.eq.s32.totalorder %s21, 0
      %p198 = por %p196, %p197
      %p199 = scmp.ne.s32.totalorder %s185, %s186
      %p200 = scmp.eq.s32.totalorder %s22, 1
      %p201 = por %p199, %p200
      %p203 = scmp.ne.s32.totalorder %s186, %s202
      %p204 = scmp.eq.s32.totalorder %s22, 0
      %p205 = por %p203, %p204
      %s207 = sadd.s32 %s206, 1
      %p210 = scmp.eq.s32.totalorder %s16, 1
      %p211 = scmp.ne.s32.totalorder %s206, %s208
      %p212 = scmp.eq.s32.totalorder %s16, 0
      %p213 = por %p211, %p212
      %p214 = scmp.ne.s32.totalorder %s206, %s208
      %p215 = scmp.eq.s32.totalorder %s21, 1
      %p216 = por %p214, %p215
      %p217 = scmp.ne.s32.totalorder %s208, %s209
      %p218 = scmp.eq.s32.totalorder %s21, 0
      %p219 = por %p217, %p218
      %p220 = scmp.ne.s32.totalorder %s208, %s209
      %p221 = scmp.eq.s32.totalorder %s22, 1
      %p222 = por %p220, %p221
      %p224 = scmp.ne.s32.totalorder %s209, %s223
      %p225 = scmp.eq.s32.totalorder %s22, 0
      %p226 = por %p224, %p225
      %s228 = sadd.s32 %s227, 1
      %p231 = scmp.eq.s32.totalorder %s16, 1
      %p232 = scmp.ne.s32.totalorder %s227, %s229
      %p233 = scmp.eq.s32.totalorder %s16, 0
      %p234 = por %p232, %p233
      %p235 = scmp.ne.s32.totalorder %s227, %s229
      %p236 = scmp.eq.s32.totalorder %s21, 1
      %p237 = por %p235, %p236
      %p238 = scmp.ne.s32.totalorder %s229, %s230
      %p239 = scmp.eq.s32.totalorder %s21, 0
      %p240 = por %p238, %p239
      %p241 = scmp.ne.s32.totalorder %s229, %s230
      %p242 = scmp.eq.s32.totalorder %s22, 1
      %p243 = por %p241, %p242
      %p245 = scmp.ne.s32.totalorder %s230, %s244
      %p246 = scmp.eq.s32.totalorder %s22, 0
      %p247 = por %p245, %p246
      %p248 = scmp.le.s32.totalorder 1, %s16
      %p249 = scmp.lt.s32.totalorder %s16, 3
      %p250 = pnand %p248, %p249
      %p251 = pneg %p250
      // Predicated region
      $region9: #{tpu_custom_call.1} parent=5 // pred_check
        _
      $region10: #{tpu_custom_call.1} parent=5 // pred_check_branch
        %253 = sbr.rel (%p250) target = $region12
      $region11: #{tpu_custom_call.1} parent=5 // pred_region
        %s254 = ssub.s32 %s16, 1
        // Predicated region
        $region13: #{tpu_custom_call.1} parent=11 // pred_check
          %p255 = pneg %p219
        $region14: #{tpu_custom_call.1} parent=11 // pred_check_branch
          %257 = sbr.rel (%p255) target = $region16
        $region15: #{tpu_custom_call.1} parent=11 // pred_region
          _
        $region16: #{tpu_custom_call.1} parent=11 // pred_fallthru
          _
      $region12: #{tpu_custom_call.1} parent=5 // pred_fallthru
        _
      %p258 = scmp.lt.s32.totalorder %s16, 2
      // Predicated region
      $region17: #{tpu_custom_call.1} parent=5 // pred_check
        %p259 = pneg %p258
      $region18: #{tpu_custom_call.1} parent=5 // pred_check_branch
        %261 = sbr.rel (%p259) target = $region20
      $region19: #{tpu_custom_call.1} parent=5 // pred_region
        // Predicated region
        $region21: #{tpu_custom_call.1} parent=19 // pred_check
          %p262 = pneg %p36
        $region22: #{tpu_custom_call.1} parent=19 // pred_check_branch
          %264 = sbr.rel (%p262) target = $region24
        $region23: #{tpu_custom_call.1} parent=19 // pred_region
          %p265 = scmp.lt.s32.totalorder %s16, 1
          %s266 = scalar_select %p265, %s16, 1
          %s267 = smul.addr %s266, 4
          %s268 = smul.addr %s267, 4
          %s269 = scalar_lea.vmem %s1, %s268
        $region24: #{tpu_custom_call.1} parent=19 // pred_fallthru
          _
        // Predicated region
        $region25: #{tpu_custom_call.1} parent=19 // pred_check
          %p270 = pneg %p62
        $region26: #{tpu_custom_call.1} parent=19 // pred_check_branch
          %272 = sbr.rel (%p270) target = $region28
        $region27: #{tpu_custom_call.1} parent=19 // pred_region
          %p273 = scmp.lt.s32.totalorder %s16, 1
          %s274 = scalar_select %p273, %s16, 1
          %s275 = smul.addr %s274, 4
          %s276 = smul.addr %s275, 4
          %s277 = scalar_lea.vmem %s2, %s276
        $region28: #{tpu_custom_call.1} parent=19 // pred_fallthru
          _
        // Predicated region
        $region29: #{tpu_custom_call.1} parent=19 // pred_check
          %p278 = pneg %p88
        $region30: #{tpu_custom_call.1} parent=19 // pred_check_branch
          %280 = sbr.rel (%p278) target = $region32
        $region31: #{tpu_custom_call.1} parent=19 // pred_region
          %p281 = scmp.lt.s32.totalorder %s16, 1
          %s282 = scalar_select %p281, %s16, 1
          %s283 = smul.addr %s282, 64
          %s284 = smul.addr %s283, 4
          %s285 = scalar_lea.vmem %s3, %s284
        $region32: #{tpu_custom_call.1} parent=19 // pred_fallthru
          _
        // Predicated region
        $region33: #{tpu_custom_call.1} parent=19 // pred_check
          %p286 = pneg %p114
        $region34: #{tpu_custom_call.1} parent=19 // pred_check_branch
          %288 = sbr.rel (%p286) target = $region36
        $region35: #{tpu_custom_call.1} parent=19 // pred_region
          %p289 = scmp.lt.s32.totalorder %s16, 1
          %s290 = scalar_select %p289, %s16, 1
          %s291 = smul.addr %s290, 256
          %s292 = smul.addr %s291, 4
          %s293 = scalar_lea.vmem %s4, %s292
        $region36: #{tpu_custom_call.1} parent=19 // pred_fallthru
          _
        // Predicated region
        $region37: #{tpu_custom_call.1} parent=19 // pred_check
          %p294 = pneg %p140
        $region38: #{tpu_custom_call.1} parent=19 // pred_check_branch
          %296 = sbr.rel (%p294) target = $region40
        $region39: #{tpu_custom_call.1} parent=19 // pred_region
          %p297 = scmp.lt.s32.totalorder %s16, 1
          %s298 = scalar_select %p297, %s16, 1
          %s299 = scalar_lea.vmem %s5, %s298
        $region40: #{tpu_custom_call.1} parent=19 // pred_fallthru
          _
        // Predicated region
        $region41: #{tpu_custom_call.1} parent=19 // pred_check
          %p300 = pneg %p166
        $region42: #{tpu_custom_call.1} parent=19 // pred_check_branch
          %302 = sbr.rel (%p300) target = $region44
        $region43: #{tpu_custom_call.1} parent=19 // pred_region
          %p303 = scmp.lt.s32.totalorder %s16, 1
          %s304 = scalar_select %p303, %s16, 1
          %s305 = smul.addr %s304, 8
          %s306 = scalar_lea.vmem %s6, %s305
        $region44: #{tpu_custom_call.1} parent=19 // pred_fallthru
          _
        // Predicated region
        $region45: #{tpu_custom_call.1} parent=19 // pred_check
          %p307 = pneg %p192
        $region46: #{tpu_custom_call.1} parent=19 // pred_check_branch
          %309 = sbr.rel (%p307) target = $region48
        $region47: #{tpu_custom_call.1} parent=19 // pred_region
          %p310 = scmp.lt.s32.totalorder %s16, 1
          %s311 = scalar_select %p310, %s16, 1
          %s312 = smul.addr %s311, 16
          %s313 = scalar_lea.vmem %s7, %s312
        $region48: #{tpu_custom_call.1} parent=19 // pred_fallthru
          _
      $region20: #{tpu_custom_call.1} parent=5 // pred_fallthru
        _
      %p314 = scmp.le.s32.totalorder 1, %s16
      %p315 = scmp.lt.s32.totalorder %s16, 3
      %p316 = pnand %p314, %p315
      %p317 = pneg %p316
      // Predicated region
      $region49: #{tpu_custom_call.1} parent=5 // pred_check
        _
      $region50: #{tpu_custom_call.1} parent=5 // pred_check_branch
        %319 = sbr.rel (%p316) target = $region52
      $region51: #{tpu_custom_call.1} parent=5 // pred_region
        %s320 = ssub.s32 %s16, 1
        %p321 = scmp.lt.s32.totalorder %s21, 1
        %s322 = scalar_select %p321, %s21, 1
        %s323 = smul.addr %s322, 4
        %s324 = smul.addr %s323, 4
        %s325 = scalar_lea.vmem %s1, %s324
        %p326 = pneg %p42
        %p327 = pneg %p39
        %p328 = scmp.lt.s32.totalorder %s21, 1
        %s329 = scalar_select %p328, %s21, 1
        %s330 = smul.addr %s329, 4
        %s331 = smul.addr %s330, 4
        %s332 = scalar_lea.vmem %s2, %s331
        %p333 = pneg %p68
        %p334 = pneg %p65
        %p335 = scmp.lt.s32.totalorder %s21, 1
        %s336 = scalar_select %p335, %s21, 1
        %s337 = smul.addr %s336, 64
        %s338 = smul.addr %s337, 4
        %s339 = scalar_lea.vmem %s3, %s338
        %p340 = pneg %p94
        %p341 = pneg %p91
        %p342 = scmp.lt.s32.totalorder %s21, 1
        %s343 = scalar_select %p342, %s21, 1
        %s344 = smul.addr %s343, 256
        %s345 = smul.addr %s344, 4
        %s346 = scalar_lea.vmem %s4, %s345
        %p347 = pneg %p120
        %p348 = pneg %p117
        %p349 = scmp.lt.s32.totalorder %s21, 1
        %s350 = scalar_select %p349, %s21, 1
        %s351 = scalar_lea.vmem %s5, %s350
        %p352 = pneg %p146
        %p353 = pneg %p143
        %p354 = scmp.lt.s32.totalorder %s21, 1
        %s355 = scalar_select %p354, %s21, 1
        %s356 = smul.addr %s355, 8
        %s357 = scalar_lea.vmem %s6, %s356
        %p358 = pneg %p172
        %p359 = pneg %p169
        %p360 = scmp.lt.s32.totalorder %s21, 1
        %s361 = scalar_select %p360, %s21, 1
        %s362 = smul.addr %s361, 16
        %s363 = scalar_lea.vmem %s7, %s362
        %p364 = pneg %p198
        %p365 = pneg %p195
        %p366 = pneg %p219
        %p367 = pneg %p216
        %p368 = pneg %p240
        %p369 = pneg %p237
        %p370 = scmp.lt.s32.totalorder %s21, 1
        %s371 = scalar_select %p370, %s21, 1
        %s372 = smul.addr %s371, 4
        %s373 = smul.addr %s372, 4
        %s374 = scalar_lea.vmem %s1, %s373
        %p375 = scmp.lt.s32.totalorder %s21, 1
        %s376 = scalar_select %p375, %s21, 1
        %s377 = smul.addr %s376, 4
        %s378 = smul.addr %s377, 4
        %s379 = scalar_lea.vmem %s2, %s378
        %p380 = scmp.lt.s32.totalorder %s21, 1
        %s381 = scalar_select %p380, %s21, 1
        %s382 = smul.addr %s381, 64
        %s383 = smul.addr %s382, 4
        %s384 = scalar_lea.vmem %s3, %s383
        %p385 = scmp.lt.s32.totalorder %s21, 1
        %s386 = scalar_select %p385, %s21, 1
        %s387 = smul.addr %s386, 256
        %s388 = smul.addr %s387, 4
        %s389 = scalar_lea.vmem %s4, %s388
        %p390 = scmp.lt.s32.totalorder %s21, 1
        %s391 = scalar_select %p390, %s21, 1
        %s392 = scalar_lea.vmem %s5, %s391
        %p393 = scmp.lt.s32.totalorder %s21, 1
        %s394 = scalar_select %p393, %s21, 1
        %s395 = smul.addr %s394, 8
        %s396 = scalar_lea.vmem %s6, %s395
        %p397 = scmp.lt.s32.totalorder %s21, 1
        %s398 = scalar_select %p397, %s21, 1
        %s399 = smul.addr %s398, 16
        %s400 = scalar_lea.vmem %s7, %s399
        %p402 = scmp.eq.s32.totalorder %s21, 0
        // Predicated region
        $region53: #{tpu_custom_call.1} parent=51 // pred_check
          %p403 = pneg %p402
        $region54: #{tpu_custom_call.1} parent=51 // pred_check_branch
          %405 = sbr.rel (%p403) target = $region56
        $region55: #{tpu_custom_call.1} parent=51 // pred_region
          $region57: #{tpu_custom_call.1} parent=55
            #allocation4 [shape = 's32[1]{0}', space=sflag, size = 0x4, scoped, tag = 'scoped memory for tpu_custom_call.1']
            %p407 = scmp.lt.u32.totalorder 16, 8
            %p408 = pneg %p407
            // Predicated region
            $region58: #{tpu_custom_call.1} parent=57 // pred_check
              _
            $region59: #{tpu_custom_call.1} parent=57 // pred_check_branch
              %410 = sbr.rel (%p407) target = $region61
            $region60: #{tpu_custom_call.1} parent=57 // pred_region
              %s426 = sand.u32 16, 7
              %p427 = scmp.eq.s32.totalorder %s426, 0
              // Predicated region
              $region73: #{tpu_custom_call.1} parent=60 // pred_check
                %p428 = pneg %p427
              $region74: #{tpu_custom_call.1} parent=60 // pred_check_branch
                %430 = sbr.rel (%p428) target = $region76
              $region75: #{tpu_custom_call.1} parent=60 // pred_region
                loop: start=0, step=1, limit=1
                $region77: #{tpu_custom_call.1} parent=75 // loop_pre_header
                  _
                $region78: #{tpu_custom_call.1} parent=75 // loop_header
                  %s432 = sphi 0, %s436
                  %p433 = scmp.ge.s32.totalorder %s432, 1
                  %s437 = sphi %s0, %s0
                  %s438 = sphi [#allocation2], [#allocation2]
                $region79: #{tpu_custom_call.1} parent=75 // loop_header_branch
                  %435 = sbr.rel (%p433) target = $region83
                $region80: #{tpu_custom_call.1} parent=75 // loop_body
                  %v439 = vld [vmem:[%s437] sm:$0xff]
                  %440 = vst [vmem:[%s438] sm:$0xff] %v439
                  %v441 = vld [vmem:[%s437 + $0x8] sm:$0xff]
                  %442 = vst [vmem:[%s438 + $0x8] sm:$0xff] %v441
                $region81: #{tpu_custom_call.1} parent=75 // loop_footer
                  %s436 = sadd.s32 1, %s432
                $region82: #{tpu_custom_call.1} parent=75 // loop_footer_branch
                  %431 = sbr.rel target = $region78
                $region83: #{tpu_custom_call.1} parent=75 // loop_exit
                  _
              $region76: #{tpu_custom_call.1} parent=60 // pred_fallthru
                _
              %p443 = pneg %p427
              // Predicated region
              $region84: #{tpu_custom_call.1} parent=60 // pred_check
                _
              $region85: #{tpu_custom_call.1} parent=60 // pred_check_branch
                %445 = sbr.rel (%p427) target = $region87
              $region86: #{tpu_custom_call.1} parent=60 // pred_region
                %s446 = sand.u32 16, 7
              $region87: #{tpu_custom_call.1} parent=60 // pred_fallthru
                _
            $region61: #{tpu_custom_call.1} parent=57 // pred_fallthru
              _
            // Predicated region
            $region62: #{tpu_custom_call.1} parent=57 // pred_check
              %p411 = pneg %p407
            $region63: #{tpu_custom_call.1} parent=57 // pred_check_branch
              %413 = sbr.rel (%p411) target = $region65
            $region64: #{tpu_custom_call.1} parent=57 // pred_region
              %s414 = sshll.u32 1, 16
              %s415 = ssub.s32 %s414, 1
              loop: start=0, step=1, limit=1
              $region66: #{tpu_custom_call.1} parent=64 // loop_pre_header
                _
              $region67: #{tpu_custom_call.1} parent=64 // loop_header
                %s417 = sphi 0, %s421
                %p418 = scmp.ge.s32.totalorder %s417, 1
                %s422 = sphi %s0, %s0
                %s423 = sphi [#allocation2], [#allocation2]
              $region68: #{tpu_custom_call.1} parent=64 // loop_header_branch
                %420 = sbr.rel (%p418) target = $region72
              $region69: #{tpu_custom_call.1} parent=64 // loop_body
                %v424 = vld [vmem:[%s422] sm:%s415]
                %425 = vst [vmem:[%s423] sm:%s415] %v424
              $region70: #{tpu_custom_call.1} parent=64 // loop_footer
                %s421 = sadd.s32 1, %s417
              $region71: #{tpu_custom_call.1} parent=64 // loop_footer_branch
                %416 = sbr.rel target = $region67
              $region72: #{tpu_custom_call.1} parent=64 // loop_exit
                _
            $region65: #{tpu_custom_call.1} parent=57 // pred_fallthru
              _
            // Predicated region
            $region88: #{tpu_custom_call.1} parent=57 // pred_check
              _
            $region89: #{tpu_custom_call.1} parent=57 // pred_check_branch
              %449 = sbr.rel (0) target = $region91
            $region90: #{tpu_custom_call.1} parent=57 // pred_region
              %450 = vsyncadd [#allocation4], 256
            $region91: #{tpu_custom_call.1} parent=57 // pred_fallthru
              _
            %s451 = smul.u32 2, 8
            %s452 = smul.u32 %s451, 1
            %s453 = sshll.u32 %s452, 4
            %454 = dma.done [#allocation4], %s453
        $region56: #{tpu_custom_call.1} parent=51 // pred_fallthru
          _
        %v455 = vld [vmem:[#allocation2] sm:$0xff]
        %v456 = vld [vmem:[#allocation2 + $0x8] sm:$0xff]
        %v457 = vpack.c.bf16 %v456, %v455
        %v458 = vld [vmem:[%s396] sm:$0xff]
        %v459 = vld [vmem:[%s374] sm:$0xf]
        %v460 = vld [vmem:[%s374 + $0x4] sm:$0xf]
        %v461 = vld [vmem:[%s374 + $0x8] sm:$0xf]
        %v462 = vld [vmem:[%s374 + $0xc] sm:$0xf]
        %v463 = vld [vmem:[%s392] sm:$0x1]
        %v465 = vlaneseq
        %v466 = vshrl.u32 %v465, 7
        %v467 = vsub.s32 0, %v466
        %v468 = vrot.slane %v463, %v467
        %v474 = vunpack.c.l.b16 %v459
        %v475 = vunpack.c.l.b16 %v460
        %v476 = vunpack.c.l.b16 %v461
        %v477 = vunpack.c.l.b16 %v462
        %v478 = vpack.c.b16 %v475, %v474
        %v479 = vpack.c.b16 %v477, %v476
        %vm482 = vcmask 261120
        %v484 = vsel %vm482, %v457, 0
        %486 = vmatprep.subr.bf16.mxu0 0
        %487 = vmatpush1.bf16.msra.mxu0 0
        %488 = vmatprep.subr.bf16.mxu0 0
        %489 = vmatpush1.bf16.msra.mxu0 0
        %490 = vmatprep.subr.bf16.mxu0 0
        %491 = vmatpush1.bf16.msra.mxu0 0
        %492 = vmatprep.subr.bf16.mxu0 0
        %493 = vmatpush1.bf16.msra.mxu0 0
        %494 = vmatprep.subr.bf16.mxu0 0
        %495 = vmatpush1.bf16.msra.mxu0 0
        %496 = vmatprep.subr.bf16.mxu0 0
        %497 = vmatpush1.bf16.msra.mxu0 0
        %498 = vmatprep.subr.bf16.mxu0 0
        %499 = vmatpush1.bf16.msra.mxu0 %v479
        %500 = vmatprep.subr.bf16.mxu0 0
        %501 = vmatpush1.bf16.msra.mxu0 %v478
        %502 = vmatprep.subr.bf16.mxu0 0
        %503 = vmatpush2.bf16.msra.mxu0 0
        %504 = vmatprep.subr.bf16.mxu0 0
        %505 = vmatpush2.bf16.msra.mxu0 0
        %506 = vmatprep.subr.bf16.mxu0 0
        %507 = vmatpush2.bf16.msra.mxu0 0
        %508 = vmatprep.subr.bf16.mxu0 0
        %509 = vmatpush2.bf16.msra.mxu0 0
        %510 = vmatprep.subr.bf16.mxu0 0
        %511 = vmatpush2.bf16.msra.mxu0 0
        %512 = vmatprep.subr.bf16.mxu0 0
        %513 = vmatpush2.bf16.msra.mxu0 0
        %514 = vmatprep.subr.bf16.mxu0 0
        %515 = vmatpush2.bf16.msra.mxu0 0
        %516 = vmatprep.subr.bf16.mxu0 0
        %517 = vmatpush2.bf16.msra.mxu0 0
        %518 = vmatprep.mubr.bf16.mxu0 0
        %519 = vmatmul.mubr.bf16.gmra.mxu0 %v484
        %v520 = vpop.f32.mrf.mxu0
        %v521 = vadd.f32 %v468, %v520
        %v522 = vpop.f32.mrf.mxu0
        %v523 = vpop.f32.mrf.mxu0
        %v524 = vadd.f32 %v468, %v523
        %v525 = vpop.f32.mrf.mxu0
        %526 = vdwg.mxu0
        %529 = vrot.lane.b32.xlu0 %v521, 124
        %v530 = vpop.permute.xlu0 %529
        %531 = vrot.lane.b32.xlu0 %v524, 124
        %v532 = vpop.permute.xlu0 %531
        %535 = vrot.lane.b32.xlu0 %v521, 120
        %v536 = vpop.permute.xlu0 %535
        %537 = vrot.lane.b32.xlu0 %v524, 120
        %v538 = vpop.permute.xlu0 %537
        %541 = vrot.lane.b32.xlu0 %v521, 116
        %v542 = vpop.permute.xlu0 %541
        %543 = vrot.lane.b32.xlu0 %v524, 116
        %v544 = vpop.permute.xlu0 %543
        %547 = vrot.lane.b32.xlu0 %v521, 112
        %v548 = vpop.permute.xlu0 %547
        %549 = vrot.lane.b32.xlu0 %v524, 112
        %v550 = vpop.permute.xlu0 %549
        %553 = vrot.lane.b32.xlu0 %v521, 108
        %v554 = vpop.permute.xlu0 %553
        %555 = vrot.lane.b32.xlu0 %v524, 108
        %v556 = vpop.permute.xlu0 %555
        %559 = vrot.lane.b32.xlu0 %v521, 104
        %v560 = vpop.permute.xlu0 %559
        %561 = vrot.lane.b32.xlu0 %v524, 104
        %v562 = vpop.permute.xlu0 %561
        %565 = vrot.lane.b32.xlu0 %v521, 100
        %v566 = vpop.permute.xlu0 %565
        %567 = vrot.lane.b32.xlu0 %v524, 100
        %v568 = vpop.permute.xlu0 %567
        %v571 = vpack.c.bf16 %v521, %v521
        %v572 = vpack.c.bf16 %v524, %v524
        %v573 = vpack.c.bf16 %v530, %v530
        %v574 = vpack.c.bf16 %v532, %v532
        %v575 = vpack.c.bf16 %v536, %v536
        %v576 = vpack.c.bf16 %v538, %v538
        %v577 = vpack.c.bf16 %v542, %v542
        %v578 = vpack.c.bf16 %v544, %v544
        %v579 = vpack.c.bf16 %v548, %v548
        %v580 = vpack.c.bf16 %v550, %v550
        %v581 = vpack.c.bf16 %v554, %v554
        %v582 = vpack.c.bf16 %v556, %v556
        %v583 = vpack.c.bf16 %v560, %v560
        %v584 = vpack.c.bf16 %v562, %v562
        %v585 = vpack.c.bf16 %v566, %v566
        %v586 = vpack.c.bf16 %v568, %v568
        %588 = vrot.lane.b32.xlu0 %v571, 96
        %v589 = vpop.permute.xlu0 %588
        %vm590 = vcmask 31744
        %v592 = vsel %vm590, %v571, 0
        %v595 = vsel %vm590, %v589, 0
        %597 = vmatprep.subr.bf16.mxu0 0
        %598 = vmatpush1.bf16.xpose.msra.mxu0 0
        %599 = vmatprep.subr.bf16.mxu0 0
        %600 = vmatpush1.bf16.xpose.msra.mxu0 0
        %601 = vmatprep.subr.bf16.mxu0 0
        %602 = vmatpush1.bf16.xpose.msra.mxu0 0
        %603 = vmatprep.subr.bf16.mxu0 0
        %604 = vmatpush1.bf16.xpose.msra.mxu0 0
        %605 = vmatprep.subr.bf16.mxu0 0
        %606 = vmatpush1.bf16.xpose.msra.mxu0 0
        %607 = vmatprep.subr.bf16.mxu0 0
        %608 = vmatpush1.bf16.xpose.msra.mxu0 0
        %609 = vmatprep.subr.bf16.mxu0 0
        %610 = vmatpush1.bf16.xpose.msra.mxu0 0
        %611 = vmatprep.subr.bf16.mxu0 0
        %612 = vmatpush1.bf16.xpose.msra.mxu0 %v595
        %613 = vmatprep.subr.bf16.mxu0 0
        %614 = vmatpush2.bf16.xpose.msra.mxu0 0
        %615 = vmatprep.subr.bf16.mxu0 0
        %616 = vmatpush2.bf16.xpose.msra.mxu0 0
        %617 = vmatprep.subr.bf16.mxu0 0
        %618 = vmatpush2.bf16.xpose.msra.mxu0 0
        %619 = vmatprep.subr.bf16.mxu0 0
        %620 = vmatpush2.bf16.xpose.msra.mxu0 0
        %621 = vmatprep.subr.bf16.mxu0 0
        %622 = vmatpush2.bf16.xpose.msra.mxu0 0
        %623 = vmatprep.subr.bf16.mxu0 0
        %624 = vmatpush2.bf16.xpose.msra.mxu0 0
        %625 = vmatprep.subr.bf16.mxu0 0
        %626 = vmatpush2.bf16.xpose.msra.mxu0 0
        %627 = vmatprep.subr.bf16.mxu0 0
        %628 = vmatpush2.bf16.xpose.msra.mxu0 0
        %629 = vmatprep.mubr.bf16.mxu0 0
        %630 = vmatmul.mubr.bf16.gmra.mxu0 %v592
        %v631 = vpop.f32.mrf.mxu0
        %v632 = vadd.f32 0.0, %v631
        %v633 = vpop.f32.mrf.mxu0
        %v634 = vpop.f32.mrf.mxu0
        %v635 = vpop.f32.mrf.mxu0
        %636 = vdwg.mxu0
        %638 = vrot.lane.b32.xlu0 %v572, 96
        %v639 = vpop.permute.xlu0 %638
        %v641 = vsel %vm590, %v572, 0
        %v644 = vsel %vm590, %v639, 0
        %646 = vmatprep.subr.bf16.mxu0 0
        %647 = vmatpush1.bf16.xpose.msra.mxu0 0
        %648 = vmatprep.subr.bf16.mxu0 0
        %649 = vmatpush1.bf16.xpose.msra.mxu0 0
        %650 = vmatprep.subr.bf16.mxu0 0
        %651 = vmatpush1.bf16.xpose.msra.mxu0 0
        %652 = vmatprep.subr.bf16.mxu0 0
        %653 = vmatpush1.bf16.xpose.msra.mxu0 0
        %654 = vmatprep.subr.bf16.mxu0 0
        %655 = vmatpush1.bf16.xpose.msra.mxu0 0
        %656 = vmatprep.subr.bf16.mxu0 0
        %657 = vmatpush1.bf16.xpose.msra.mxu0 0
        %658 = vmatprep.subr.bf16.mxu0 0
        %659 = vmatpush1.bf16.xpose.msra.mxu0 0
        %660 = vmatprep.subr.bf16.mxu0 0
        %661 = vmatpush1.bf16.xpose.msra.mxu0 %v644
        %662 = vmatprep.subr.bf16.mxu0 0
        %663 = vmatpush2.bf16.xpose.msra.mxu0 0
        %664 = vmatprep.subr.bf16.mxu0 0
        %665 = vmatpush2.bf16.xpose.msra.mxu0 0
        %666 = vmatprep.subr.bf16.mxu0 0
        %667 = vmatpush2.bf16.xpose.msra.mxu0 0
        %668 = vmatprep.subr.bf16.mxu0 0
        %669 = vmatpush2.bf16.xpose.msra.mxu0 0
        %670 = vmatprep.subr.bf16.mxu0 0
        %671 = vmatpush2.bf16.xpose.msra.mxu0 0
        %672 = vmatprep.subr.bf16.mxu0 0
        %673 = vmatpush2.bf16.xpose.msra.mxu0 0
        %674 = vmatprep.subr.bf16.mxu0 0
        %675 = vmatpush2.bf16.xpose.msra.mxu0 0
        %676 = vmatprep.subr.bf16.mxu0 0
        %677 = vmatpush2.bf16.xpose.msra.mxu0 0
        %678 = vmatprep.mubr.bf16.mxu0 0
        %679 = vmatmul.mubr.bf16.gmra.mxu0 %v641
        %v680 = vpop.f32.mrf.mxu0
        %v681 = vadd.f32 0.0, %v680
        %v682 = vpop.f32.mrf.mxu0
        %v683 = vpop.f32.mrf.mxu0
        %v684 = vpop.f32.mrf.mxu0
        %685 = vdwg.mxu0
        %687 = vrot.lane.b32.xlu0 %v573, 96
        %v688 = vpop.permute.xlu0 %687
        %v690 = vsel %vm590, %v573, 0
        %v693 = vsel %vm590, %v688, 0
        %695 = vmatprep.subr.bf16.mxu0 0
        %696 = vmatpush1.bf16.xpose.msra.mxu0 0
        %697 = vmatprep.subr.bf16.mxu0 0
        %698 = vmatpush1.bf16.xpose.msra.mxu0 0
        %699 = vmatprep.subr.bf16.mxu0 0
        %700 = vmatpush1.bf16.xpose.msra.mxu0 0
        %701 = vmatprep.subr.bf16.mxu0 0
        %702 = vmatpush1.bf16.xpose.msra.mxu0 0
        %703 = vmatprep.subr.bf16.mxu0 0
        %704 = vmatpush1.bf16.xpose.msra.mxu0 0
        %705 = vmatprep.subr.bf16.mxu0 0
        %706 = vmatpush1.bf16.xpose.msra.mxu0 0
        %707 = vmatprep.subr.bf16.mxu0 0
        %708 = vmatpush1.bf16.xpose.msra.mxu0 0
        %709 = vmatprep.subr.bf16.mxu0 0
        %710 = vmatpush1.bf16.xpose.msra.mxu0 %v693
        %711 = vmatprep.subr.bf16.mxu0 0
        %712 = vmatpush2.bf16.xpose.msra.mxu0 0
        %713 = vmatprep.subr.bf16.mxu0 0
        %714 = vmatpush2.bf16.xpose.msra.mxu0 0
        %715 = vmatprep.subr.bf16.mxu0 0
        %716 = vmatpush2.bf16.xpose.msra.mxu0 0
        %717 = vmatprep.subr.bf16.mxu0 0
        %718 = vmatpush2.bf16.xpose.msra.mxu0 0
        %719 = vmatprep.subr.bf16.mxu0 0
        %720 = vmatpush2.bf16.xpose.msra.mxu0 0
        %721 = vmatprep.subr.bf16.mxu0 0
        %722 = vmatpush2.bf16.xpose.msra.mxu0 0
        %723 = vmatprep.subr.bf16.mxu0 0
        %724 = vmatpush2.bf16.xpose.msra.mxu0 0
        %725 = vmatprep.subr.bf16.mxu0 0
        %726 = vmatpush2.bf16.xpose.msra.mxu0 0
        %727 = vmatprep.mubr.bf16.mxu0 0
        %728 = vmatmul.mubr.bf16.gmra.mxu0 %v690
        %v729 = vpop.f32.mrf.mxu0
        %v730 = vadd.f32 0.0, %v729
        %v731 = vpop.f32.mrf.mxu0
        %v732 = vpop.f32.mrf.mxu0
        %v733 = vpop.f32.mrf.mxu0
        %734 = vdwg.mxu0
        %736 = vrot.lane.b32.xlu0 %v574, 96
        %v737 = vpop.permute.xlu0 %736
        %v739 = vsel %vm590, %v574, 0
        %v742 = vsel %vm590, %v737, 0
        %744 = vmatprep.subr.bf16.mxu0 0
        %745 = vmatpush1.bf16.xpose.msra.mxu0 0
        %746 = vmatprep.subr.bf16.mxu0 0
        %747 = vmatpush1.bf16.xpose.msra.mxu0 0
        %748 = vmatprep.subr.bf16.mxu0 0
        %749 = vmatpush1.bf16.xpose.msra.mxu0 0
        %750 = vmatprep.subr.bf16.mxu0 0
        %751 = vmatpush1.bf16.xpose.msra.mxu0 0
        %752 = vmatprep.subr.bf16.mxu0 0
        %753 = vmatpush1.bf16.xpose.msra.mxu0 0
        %754 = vmatprep.subr.bf16.mxu0 0
        %755 = vmatpush1.bf16.xpose.msra.mxu0 0
        %756 = vmatprep.subr.bf16.mxu0 0
        %757 = vmatpush1.bf16.xpose.msra.mxu0 0
        %758 = vmatprep.subr.bf16.mxu0 0
        %759 = vmatpush1.bf16.xpose.msra.mxu0 %v742
        %760 = vmatprep.subr.bf16.mxu0 0
        %761 = vmatpush2.bf16.xpose.msra.mxu0 0
        %762 = vmatprep.subr.bf16.mxu0 0
        %763 = vmatpush2.bf16.xpose.msra.mxu0 0
        %764 = vmatprep.subr.bf16.mxu0 0
        %765 = vmatpush2.bf16.xpose.msra.mxu0 0
        %766 = vmatprep.subr.bf16.mxu0 0
        %767 = vmatpush2.bf16.xpose.msra.mxu0 0
        %768 = vmatprep.subr.bf16.mxu0 0
        %769 = vmatpush2.bf16.xpose.msra.mxu0 0
        %770 = vmatprep.subr.bf16.mxu0 0
        %771 = vmatpush2.bf16.xpose.msra.mxu0 0
        %772 = vmatprep.subr.bf16.mxu0 0
        %773 = vmatpush2.bf16.xpose.msra.mxu0 0
        %774 = vmatprep.subr.bf16.mxu0 0
        %775 = vmatpush2.bf16.xpose.msra.mxu0 0
        %776 = vmatprep.mubr.bf16.mxu0 0
        %777 = vmatmul.mubr.bf16.gmra.mxu0 %v739
        %v778 = vpop.f32.mrf.mxu0
        %v779 = vadd.f32 0.0, %v778
        %v780 = vpop.f32.mrf.mxu0
        %v781 = vpop.f32.mrf.mxu0
        %v782 = vpop.f32.mrf.mxu0
        %783 = vdwg.mxu0
        %785 = vrot.lane.b32.xlu0 %v575, 96
        %v786 = vpop.permute.xlu0 %785
        %v788 = vsel %vm590, %v575, 0
        %v791 = vsel %vm590, %v786, 0
        %793 = vmatprep.subr.bf16.mxu0 0
        %794 = vmatpush1.bf16.xpose.msra.mxu0 0
        %795 = vmatprep.subr.bf16.mxu0 0
        %796 = vmatpush1.bf16.xpose.msra.mxu0 0
        %797 = vmatprep.subr.bf16.mxu0 0
        %798 = vmatpush1.bf16.xpose.msra.mxu0 0
        %799 = vmatprep.subr.bf16.mxu0 0
        %800 = vmatpush1.bf16.xpose.msra.mxu0 0
        %801 = vmatprep.subr.bf16.mxu0 0
        %802 = vmatpush1.bf16.xpose.msra.mxu0 0
        %803 = vmatprep.subr.bf16.mxu0 0
        %804 = vmatpush1.bf16.xpose.msra.mxu0 0
        %805 = vmatprep.subr.bf16.mxu0 0
        %806 = vmatpush1.bf16.xpose.msra.mxu0 0
        %807 = vmatprep.subr.bf16.mxu0 0
        %808 = vmatpush1.bf16.xpose.msra.mxu0 %v791
        %809 = vmatprep.subr.bf16.mxu0 0
        %810 = vmatpush2.bf16.xpose.msra.mxu0 0
        %811 = vmatprep.subr.bf16.mxu0 0
        %812 = vmatpush2.bf16.xpose.msra.mxu0 0
        %813 = vmatprep.subr.bf16.mxu0 0
        %814 = vmatpush2.bf16.xpose.msra.mxu0 0
        %815 = vmatprep.subr.bf16.mxu0 0
        %816 = vmatpush2.bf16.xpose.msra.mxu0 0
        %817 = vmatprep.subr.bf16.mxu0 0
        %818 = vmatpush2.bf16.xpose.msra.mxu0 0
        %819 = vmatprep.subr.bf16.mxu0 0
        %820 = vmatpush2.bf16.xpose.msra.mxu0 0
        %821 = vmatprep.subr.bf16.mxu0 0
        %822 = vmatpush2.bf16.xpose.msra.mxu0 0
        %823 = vmatprep.subr.bf16.mxu0 0
        %824 = vmatpush2.bf16.xpose.msra.mxu0 0
        %825 = vmatprep.mubr.bf16.mxu0 0
        %826 = vmatmul.mubr.bf16.gmra.mxu0 %v788
        %v827 = vpop.f32.mrf.mxu0
        %v828 = vadd.f32 0.0, %v827
        %v829 = vpop.f32.mrf.mxu0
        %v830 = vpop.f32.mrf.mxu0
        %v831 = vpop.f32.mrf.mxu0
        %832 = vdwg.mxu0
        %834 = vrot.lane.b32.xlu0 %v576, 96
        %v835 = vpop.permute.xlu0 %834
        %v837 = vsel %vm590, %v576, 0
        %v840 = vsel %vm590, %v835, 0
        %842 = vmatprep.subr.bf16.mxu0 0
        %843 = vmatpush1.bf16.xpose.msra.mxu0 0
        %844 = vmatprep.subr.bf16.mxu0 0
        %845 = vmatpush1.bf16.xpose.msra.mxu0 0
        %846 = vmatprep.subr.bf16.mxu0 0
        %847 = vmatpush1.bf16.xpose.msra.mxu0 0
        %848 = vmatprep.subr.bf16.mxu0 0
        %849 = vmatpush1.bf16.xpose.msra.mxu0 0
        %850 = vmatprep.subr.bf16.mxu0 0
        %851 = vmatpush1.bf16.xpose.msra.mxu0 0
        %852 = vmatprep.subr.bf16.mxu0 0
        %853 = vmatpush1.bf16.xpose.msra.mxu0 0
        %854 = vmatprep.subr.bf16.mxu0 0
        %855 = vmatpush1.bf16.xpose.msra.mxu0 0
        %856 = vmatprep.subr.bf16.mxu0 0
        %857 = vmatpush1.bf16.xpose.msra.mxu0 %v840
        %858 = vmatprep.subr.bf16.mxu0 0
        %859 = vmatpush2.bf16.xpose.msra.mxu0 0
        %860 = vmatprep.subr.bf16.mxu0 0
        %861 = vmatpush2.bf16.xpose.msra.mxu0 0
        %862 = vmatprep.subr.bf16.mxu0 0
        %863 = vmatpush2.bf16.xpose.msra.mxu0 0
        %864 = vmatprep.subr.bf16.mxu0 0
        %865 = vmatpush2.bf16.xpose.msra.mxu0 0
        %866 = vmatprep.subr.bf16.mxu0 0
        %867 = vmatpush2.bf16.xpose.msra.mxu0 0
        %868 = vmatprep.subr.bf16.mxu0 0
        %869 = vmatpush2.bf16.xpose.msra.mxu0 0
        %870 = vmatprep.subr.bf16.mxu0 0
        %871 = vmatpush2.bf16.xpose.msra.mxu0 0
        %872 = vmatprep.subr.bf16.mxu0 0
        %873 = vmatpush2.bf16.xpose.msra.mxu0 0
        %874 = vmatprep.mubr.bf16.mxu0 0
        %875 = vmatmul.mubr.bf16.gmra.mxu0 %v837
        %v876 = vpop.f32.mrf.mxu0
        %v877 = vadd.f32 0.0, %v876
        %v878 = vpop.f32.mrf.mxu0
        %v879 = vpop.f32.mrf.mxu0
        %v880 = vpop.f32.mrf.mxu0
        %881 = vdwg.mxu0
        %883 = vrot.lane.b32.xlu0 %v577, 96
        %v884 = vpop.permute.xlu0 %883
        %v886 = vsel %vm590, %v577, 0
        %v889 = vsel %vm590, %v884, 0
        %891 = vmatprep.subr.bf16.mxu0 0
        %892 = vmatpush1.bf16.xpose.msra.mxu0 0
        %893 = vmatprep.subr.bf16.mxu0 0
        %894 = vmatpush1.bf16.xpose.msra.mxu0 0
        %895 = vmatprep.subr.bf16.mxu0 0
        %896 = vmatpush1.bf16.xpose.msra.mxu0 0
        %897 = vmatprep.subr.bf16.mxu0 0
        %898 = vmatpush1.bf16.xpose.msra.mxu0 0
        %899 = vmatprep.subr.bf16.mxu0 0
        %900 = vmatpush1.bf16.xpose.msra.mxu0 0
        %901 = vmatprep.subr.bf16.mxu0 0
        %902 = vmatpush1.bf16.xpose.msra.mxu0 0
        %903 = vmatprep.subr.bf16.mxu0 0
        %904 = vmatpush1.bf16.xpose.msra.mxu0 0
        %905 = vmatprep.subr.bf16.mxu0 0
        %906 = vmatpush1.bf16.xpose.msra.mxu0 %v889
        %907 = vmatprep.subr.bf16.mxu0 0
        %908 = vmatpush2.bf16.xpose.msra.mxu0 0
        %909 = vmatprep.subr.bf16.mxu0 0
        %910 = vmatpush2.bf16.xpose.msra.mxu0 0
        %911 = vmatprep.subr.bf16.mxu0 0
        %912 = vmatpush2.bf16.xpose.msra.mxu0 0
        %913 = vmatprep.subr.bf16.mxu0 0
        %914 = vmatpush2.bf16.xpose.msra.mxu0 0
        %915 = vmatprep.subr.bf16.mxu0 0
        %916 = vmatpush2.bf16.xpose.msra.mxu0 0
        %917 = vmatprep.subr.bf16.mxu0 0
        %918 = vmatpush2.bf16.xpose.msra.mxu0 0
        %919 = vmatprep.subr.bf16.mxu0 0
        %920 = vmatpush2.bf16.xpose.msra.mxu0 0
        %921 = vmatprep.subr.bf16.mxu0 0
        %922 = vmatpush2.bf16.xpose.msra.mxu0 0
        %923 = vmatprep.mubr.bf16.mxu0 0
        %924 = vmatmul.mubr.bf16.gmra.mxu0 %v886
        %v925 = vpop.f32.mrf.mxu0
        %v926 = vadd.f32 0.0, %v925
        %v927 = vpop.f32.mrf.mxu0
        %v928 = vpop.f32.mrf.mxu0
        %v929 = vpop.f32.mrf.mxu0
        %930 = vdwg.mxu0
        %932 = vrot.lane.b32.xlu0 %v578, 96
        %v933 = vpop.permute.xlu0 %932
        %v935 = vsel %vm590, %v578, 0
        %v938 = vsel %vm590, %v933, 0
        %940 = vmatprep.subr.bf16.mxu0 0
        %941 = vmatpush1.bf16.xpose.msra.mxu0 0
        %942 = vmatprep.subr.bf16.mxu0 0
        %943 = vmatpush1.bf16.xpose.msra.mxu0 0
        %944 = vmatprep.subr.bf16.mxu0 0
        %945 = vmatpush1.bf16.xpose.msra.mxu0 0
        %946 = vmatprep.subr.bf16.mxu0 0
        %947 = vmatpush1.bf16.xpose.msra.mxu0 0
        %948 = vmatprep.subr.bf16.mxu0 0
        %949 = vmatpush1.bf16.xpose.msra.mxu0 0
        %950 = vmatprep.subr.bf16.mxu0 0
        %951 = vmatpush1.bf16.xpose.msra.mxu0 0
        %952 = vmatprep.subr.bf16.mxu0 0
        %953 = vmatpush1.bf16.xpose.msra.mxu0 0
        %954 = vmatprep.subr.bf16.mxu0 0
        %955 = vmatpush1.bf16.xpose.msra.mxu0 %v938
        %956 = vmatprep.subr.bf16.mxu0 0
        %957 = vmatpush2.bf16.xpose.msra.mxu0 0
        %958 = vmatprep.subr.bf16.mxu0 0
        %959 = vmatpush2.bf16.xpose.msra.mxu0 0
        %960 = vmatprep.subr.bf16.mxu0 0
        %961 = vmatpush2.bf16.xpose.msra.mxu0 0
        %962 = vmatprep.subr.bf16.mxu0 0
        %963 = vmatpush2.bf16.xpose.msra.mxu0 0
        %964 = vmatprep.subr.bf16.mxu0 0
        %965 = vmatpush2.bf16.xpose.msra.mxu0 0
        %966 = vmatprep.subr.bf16.mxu0 0
        %967 = vmatpush2.bf16.xpose.msra.mxu0 0
        %968 = vmatprep.subr.bf16.mxu0 0
        %969 = vmatpush2.bf16.xpose.msra.mxu0 0
        %970 = vmatprep.subr.bf16.mxu0 0
        %971 = vmatpush2.bf16.xpose.msra.mxu0 0
        %972 = vmatprep.mubr.bf16.mxu0 0
        %973 = vmatmul.mubr.bf16.gmra.mxu0 %v935
        %v974 = vpop.f32.mrf.mxu0
        %v975 = vadd.f32 0.0, %v974
        %v976 = vpop.f32.mrf.mxu0
        %v977 = vpop.f32.mrf.mxu0
        %v978 = vpop.f32.mrf.mxu0
        %979 = vdwg.mxu0
        %981 = vrot.lane.b32.xlu0 %v579, 96
        %v982 = vpop.permute.xlu0 %981
        %v984 = vsel %vm590, %v579, 0
        %v987 = vsel %vm590, %v982, 0
        %989 = vmatprep.subr.bf16.mxu0 0
        %990 = vmatpush1.bf16.xpose.msra.mxu0 0
        %991 = vmatprep.subr.bf16.mxu0 0
        %992 = vmatpush1.bf16.xpose.msra.mxu0 0
        %993 = vmatprep.subr.bf16.mxu0 0
        %994 = vmatpush1.bf16.xpose.msra.mxu0 0
        %995 = vmatprep.subr.bf16.mxu0 0
        %996 = vmatpush1.bf16.xpose.msra.mxu0 0
        %997 = vmatprep.subr.bf16.mxu0 0
        %998 = vmatpush1.bf16.xpose.msra.mxu0 0
        %999 = vmatprep.subr.bf16.mxu0 0
        %1000 = vmatpush1.bf16.xpose.msra.mxu0 0
        %1001 = vmatprep.subr.bf16.mxu0 0
        %1002 = vmatpush1.bf16.xpose.msra.mxu0 0
        %1003 = vmatprep.subr.bf16.mxu0 0
        %1004 = vmatpush1.bf16.xpose.msra.mxu0 %v987
        %1005 = vmatprep.subr.bf16.mxu0 0
        %1006 = vmatpush2.bf16.xpose.msra.mxu0 0
        %1007 = vmatprep.subr.bf16.mxu0 0
        %1008 = vmatpush2.bf16.xpose.msra.mxu0 0
        %1009 = vmatprep.subr.bf16.mxu0 0
        %1010 = vmatpush2.bf16.xpose.msra.mxu0 0
        %1011 = vmatprep.subr.bf16.mxu0 0
        %1012 = vmatpush2.bf16.xpose.msra.mxu0 0
        %1013 = vmatprep.subr.bf16.mxu0 0
        %1014 = vmatpush2.bf16.xpose.msra.mxu0 0
        %1015 = vmatprep.subr.bf16.mxu0 0
        %1016 = vmatpush2.bf16.xpose.msra.mxu0 0
        %1017 = vmatprep.subr.bf16.mxu0 0
        %1018 = vmatpush2.bf16.xpose.msra.mxu0 0
        %1019 = vmatprep.subr.bf16.mxu0 0
        %1020 = vmatpush2.bf16.xpose.msra.mxu0 0
        %1021 = vmatprep.mubr.bf16.mxu0 0
        %1022 = vmatmul.mubr.bf16.gmra.mxu0 %v984
        %v1023 = vpop.f32.mrf.mxu0
        %v1024 = vadd.f32 0.0, %v1023
        %v1025 = vpop.f32.mrf.mxu0
        %v1026 = vpop.f32.mrf.mxu0
        %v1027 = vpop.f32.mrf.mxu0
        %1028 = vdwg.mxu0
        %1030 = vrot.lane.b32.xlu0 %v580, 96
        %v1031 = vpop.permute.xlu0 %1030
        %v1033 = vsel %vm590, %v580, 0
        %v1036 = vsel %vm590, %v1031, 0
        %1038 = vmatprep.subr.bf16.mxu0 0
        %1039 = vmatpush1.bf16.xpose.msra.mxu0 0
        %1040 = vmatprep.subr.bf16.mxu0 0
        %1041 = vmatpush1.bf16.xpose.msra.mxu0 0
        %1042 = vmatprep.subr.bf16.mxu0 0
        %1043 = vmatpush1.bf16.xpose.msra.mxu0 0
        %1044 = vmatprep.subr.bf16.mxu0 0
        %1045 = vmatpush1.bf16.xpose.msra.mxu0 0
        %1046 = vmatprep.subr.bf16.mxu0 0
        %1047 = vmatpush1.bf16.xpose.msra.mxu0 0
        %1048 = vmatprep.subr.bf16.mxu0 0
        %1049 = vmatpush1.bf16.xpose.msra.mxu0 0
        %1050 = vmatprep.subr.bf16.mxu0 0
        %1051 = vmatpush1.bf16.xpose.msra.mxu0 0
        %1052 = vmatprep.subr.bf16.mxu0 0
        %1053 = vmatpush1.bf16.xpose.msra.mxu0 %v1036
        %1054 = vmatprep.subr.bf16.mxu0 0
        %1055 = vmatpush2.bf16.xpose.msra.mxu0 0
        %1056 = vmatprep.subr.bf16.mxu0 0
        %1057 = vmatpush2.bf16.xpose.msra.mxu0 0
        %1058 = vmatprep.subr.bf16.mxu0 0
        %1059 = vmatpush2.bf16.xpose.msra.mxu0 0
        %1060 = vmatprep.subr.bf16.mxu0 0
        %1061 = vmatpush2.bf16.xpose.msra.mxu0 0
        %1062 = vmatprep.subr.bf16.mxu0 0
        %1063 = vmatpush2.bf16.xpose.msra.mxu0 0
        %1064 = vmatprep.subr.bf16.mxu0 0
        %1065 = vmatpush2.bf16.xpose.msra.mxu0 0
        %1066 = vmatprep.subr.bf16.mxu0 0
        %1067 = vmatpush2.bf16.xpose.msra.mxu0 0
        %1068 = vmatprep.subr.bf16.mxu0 0
        %1069 = vmatpush2.bf16.xpose.msra.mxu0 0
        %1070 = vmatprep.mubr.bf16.mxu0 0
        %1071 = vmatmul.mubr.bf16.gmra.mxu0 %v1033
        %v1072 = vpop.f32.mrf.mxu0
        %v1073 = vadd.f32 0.0, %v1072
        %v1074 = vpop.f32.mrf.mxu0
        %v1075 = vpop.f32.mrf.mxu0
        %v1076 = vpop.f32.mrf.mxu0
        %1077 = vdwg.mxu0
        %1079 = vrot.lane.b32.xlu0 %v581, 96
        %v1080 = vpop.permute.xlu0 %1079
        %v1082 = vsel %vm590, %v581, 0
        %v1085 = vsel %vm590, %v1080, 0
        %1087 = vmatprep.subr.bf16.mxu0 0
        %1088 = vmatpush1.bf16.xpose.msra.mxu0 0
        %1089 = vmatprep.subr.bf16.mxu0 0
        %1090 = vmatpush1.bf16.xpose.msra.mxu0 0
        %1091 = vmatprep.subr.bf16.mxu0 0
        %1092 = vmatpush1.bf16.xpose.msra.mxu0 0
        %1093 = vmatprep.subr.bf16.mxu0 0
        %1094 = vmatpush1.bf16.xpose.msra.mxu0 0
        %1095 = vmatprep.subr.bf16.mxu0 0
        %1096 = vmatpush1.bf16.xpose.msra.mxu0 0
        %1097 = vmatprep.subr.bf16.mxu0 0
        %1098 = vmatpush1.bf16.xpose.msra.mxu0 0
        %1099 = vmatprep.subr.bf16.mxu0 0
        %1100 = vmatpush1.bf16.xpose.msra.mxu0 0
        %1101 = vmatprep.subr.bf16.mxu0 0
        %1102 = vmatpush1.bf16.xpose.msra.mxu0 %v1085
        %1103 = vmatprep.subr.bf16.mxu0 0
        %1104 = vmatpush2.bf16.xpose.msra.mxu0 0
        %1105 = vmatprep.subr.bf16.mxu0 0
        %1106 = vmatpush2.bf16.xpose.msra.mxu0 0
        %1107 = vmatprep.subr.bf16.mxu0 0
        %1108 = vmatpush2.bf16.xpose.msra.mxu0 0
        %1109 = vmatprep.subr.bf16.mxu0 0
        %1110 = vmatpush2.bf16.xpose.msra.mxu0 0
        %1111 = vmatprep.subr.bf16.mxu0 0
        %1112 = vmatpush2.bf16.xpose.msra.mxu0 0
        %1113 = vmatprep.subr.bf16.mxu0 0
        %1114 = vmatpush2.bf16.xpose.msra.mxu0 0
        %1115 = vmatprep.subr.bf16.mxu0 0
        %1116 = vmatpush2.bf16.xpose.msra.mxu0 0
        %1117 = vmatprep.subr.bf16.mxu0 0
        %1118 = vmatpush2.bf16.xpose.msra.mxu0 0
        %1119 = vmatprep.mubr.bf16.mxu0 0
        %1120 = vmatmul.mubr.bf16.gmra.mxu0 %v1082
        %v1121 = vpop.f32.mrf.mxu0
        %v1122 = vadd.f32 0.0, %v1121
        %v1123 = vpop.f32.mrf.mxu0
        %v1124 = vpop.f32.mrf.mxu0
        %v1125 = vpop.f32.mrf.mxu0
        %1126 = vdwg.mxu0
        %1128 = vrot.lane.b32.xlu0 %v582, 96
        %v1129 = vpop.permute.xlu0 %1128
        %v1131 = vsel %vm590, %v582, 0
        %v1134 = vsel %vm590, %v1129, 0
        %1136 = vmatprep.subr.bf16.mxu0 0
        %1137 = vmatpush1.bf16.xpose.msra.mxu0 0
        %1138 = vmatprep.subr.bf16.mxu0 0
        %1139 = vmatpush1.bf16.xpose.msra.mxu0 0
        %1140 = vmatprep.subr.bf16.mxu0 0
        %1141 = vmatpush1.bf16.xpose.msra.mxu0 0
        %1142 = vmatprep.subr.bf16.mxu0 0
        %1143 = vmatpush1.bf16.xpose.msra.mxu0 0
        %1144 = vmatprep.subr.bf16.mxu0 0
        %1145 = vmatpush1.bf16.xpose.msra.mxu0 0
        %1146 = vmatprep.subr.bf16.mxu0 0
        %1147 = vmatpush1.bf16.xpose.msra.mxu0 0
        %1148 = vmatprep.subr.bf16.mxu0 0
        %1149 = vmatpush1.bf16.xpose.msra.mxu0 0
        %1150 = vmatprep.subr.bf16.mxu0 0
        %1151 = vmatpush1.bf16.xpose.msra.mxu0 %v1134
        %1152 = vmatprep.subr.bf16.mxu0 0
        %1153 = vmatpush2.bf16.xpose.msra.mxu0 0
        %1154 = vmatprep.subr.bf16.mxu0 0
        %1155 = vmatpush2.bf16.xpose.msra.mxu0 0
        %1156 = vmatprep.subr.bf16.mxu0 0
        %1157 = vmatpush2.bf16.xpose.msra.mxu0 0
        %1158 = vmatprep.subr.bf16.mxu0 0
        %1159 = vmatpush2.bf16.xpose.msra.mxu0 0
        %1160 = vmatprep.subr.bf16.mxu0 0
        %1161 = vmatpush2.bf16.xpose.msra.mxu0 0
        %1162 = vmatprep.subr.bf16.mxu0 0
        %1163 = vmatpush2.bf16.xpose.msra.mxu0 0
        %1164 = vmatprep.subr.bf16.mxu0 0
        %1165 = vmatpush2.bf16.xpose.msra.mxu0 0
        %1166 = vmatprep.subr.bf16.mxu0 0
        %1167 = vmatpush2.bf16.xpose.msra.mxu0 0
        %1168 = vmatprep.mubr.bf16.mxu0 0
        %1169 = vmatmul.mubr.bf16.gmra.mxu0 %v1131
        %v1170 = vpop.f32.mrf.mxu0
        %v1171 = vadd.f32 0.0, %v1170
        %v1172 = vpop.f32.mrf.mxu0
        %v1173 = vpop.f32.mrf.mxu0
        %v1174 = vpop.f32.mrf.mxu0
        %1175 = vdwg.mxu0
        %1177 = vrot.lane.b32.xlu0 %v583, 96
        %v1178 = vpop.permute.xlu0 %1177
        %v1180 = vsel %vm590, %v583, 0
        %v1183 = vsel %vm590, %v1178, 0
        %1185 = vmatprep.subr.bf16.mxu0 0
        %1186 = vmatpush1.bf16.xpose.msra.mxu0 0
        %1187 = vmatprep.subr.bf16.mxu0 0
        %1188 = vmatpush1.bf16.xpose.msra.mxu0 0
        %1189 = vmatprep.subr.bf16.mxu0 0
        %1190 = vmatpush1.bf16.xpose.msra.mxu0 0
        %1191 = vmatprep.subr.bf16.mxu0 0
        %1192 = vmatpush1.bf16.xpose.msra.mxu0 0
        %1193 = vmatprep.subr.bf16.mxu0 0
        %1194 = vmatpush1.bf16.xpose.msra.mxu0 0
        %1195 = vmatprep.subr.bf16.mxu0 0
        %1196 = vmatpush1.bf16.xpose.msra.mxu0 0
        %1197 = vmatprep.subr.bf16.mxu0 0
        %1198 = vmatpush1.bf16.xpose.msra.mxu0 0
        %1199 = vmatprep.subr.bf16.mxu0 0
        %1200 = vmatpush1.bf16.xpose.msra.mxu0 %v1183
        %1201 = vmatprep.subr.bf16.mxu0 0
        %1202 = vmatpush2.bf16.xpose.msra.mxu0 0
        %1203 = vmatprep.subr.bf16.mxu0 0
        %1204 = vmatpush2.bf16.xpose.msra.mxu0 0
        %1205 = vmatprep.subr.bf16.mxu0 0
        %1206 = vmatpush2.bf16.xpose.msra.mxu0 0
        %1207 = vmatprep.subr.bf16.mxu0 0
        %1208 = vmatpush2.bf16.xpose.msra.mxu0 0
        %1209 = vmatprep.subr.bf16.mxu0 0
        %1210 = vmatpush2.bf16.xpose.msra.mxu0 0
        %1211 = vmatprep.subr.bf16.mxu0 0
        %1212 = vmatpush2.bf16.xpose.msra.mxu0 0
        %1213 = vmatprep.subr.bf16.mxu0 0
        %1214 = vmatpush2.bf16.xpose.msra.mxu0 0
        %1215 = vmatprep.subr.bf16.mxu0 0
        %1216 = vmatpush2.bf16.xpose.msra.mxu0 0
        %1217 = vmatprep.mubr.bf16.mxu0 0
        %1218 = vmatmul.mubr.bf16.gmra.mxu0 %v1180
        %v1219 = vpop.f32.mrf.mxu0
        %v1220 = vadd.f32 0.0, %v1219
        %v1221 = vpop.f32.mrf.mxu0
        %v1222 = vpop.f32.mrf.mxu0
        %v1223 = vpop.f32.mrf.mxu0
        %1224 = vdwg.mxu0
        %1226 = vrot.lane.b32.xlu0 %v584, 96
        %v1227 = vpop.permute.xlu0 %1226
        %v1229 = vsel %vm590, %v584, 0
        %v1232 = vsel %vm590, %v1227, 0
        %1234 = vmatprep.subr.bf16.mxu0 0
        %1235 = vmatpush1.bf16.xpose.msra.mxu0 0
        %1236 = vmatprep.subr.bf16.mxu0 0
        %1237 = vmatpush1.bf16.xpose.msra.mxu0 0
        %1238 = vmatprep.subr.bf16.mxu0 0
        %1239 = vmatpush1.bf16.xpose.msra.mxu0 0
        %1240 = vmatprep.subr.bf16.mxu0 0
        %1241 = vmatpush1.bf16.xpose.msra.mxu0 0
        %1242 = vmatprep.subr.bf16.mxu0 0
        %1243 = vmatpush1.bf16.xpose.msra.mxu0 0
        %1244 = vmatprep.subr.bf16.mxu0 0
        %1245 = vmatpush1.bf16.xpose.msra.mxu0 0
        %1246 = vmatprep.subr.bf16.mxu0 0
        %1247 = vmatpush1.bf16.xpose.msra.mxu0 0
        %1248 = vmatprep.subr.bf16.mxu0 0
        %1249 = vmatpush1.bf16.xpose.msra.mxu0 %v1232
        %1250 = vmatprep.subr.bf16.mxu0 0
        %1251 = vmatpush2.bf16.xpose.msra.mxu0 0
        %1252 = vmatprep.subr.bf16.mxu0 0
        %1253 = vmatpush2.bf16.xpose.msra.mxu0 0
        %1254 = vmatprep.subr.bf16.mxu0 0
        %1255 = vmatpush2.bf16.xpose.msra.mxu0 0
        %1256 = vmatprep.subr.bf16.mxu0 0
        %1257 = vmatpush2.bf16.xpose.msra.mxu0 0
        %1258 = vmatprep.subr.bf16.mxu0 0
        %1259 = vmatpush2.bf16.xpose.msra.mxu0 0
        %1260 = vmatprep.subr.bf16.mxu0 0
        %1261 = vmatpush2.bf16.xpose.msra.mxu0 0
        %1262 = vmatprep.subr.bf16.mxu0 0
        %1263 = vmatpush2.bf16.xpose.msra.mxu0 0
        %1264 = vmatprep.subr.bf16.mxu0 0
        %1265 = vmatpush2.bf16.xpose.msra.mxu0 0
        %1266 = vmatprep.mubr.bf16.mxu0 0
        %1267 = vmatmul.mubr.bf16.gmra.mxu0 %v1229
        %v1268 = vpop.f32.mrf.mxu0
        %v1269 = vadd.f32 0.0, %v1268
        %v1270 = vpop.f32.mrf.mxu0
        %v1271 = vpop.f32.mrf.mxu0
        %v1272 = vpop.f32.mrf.mxu0
        %1273 = vdwg.mxu0
        %1275 = vrot.lane.b32.xlu0 %v585, 96
        %v1276 = vpop.permute.xlu0 %1275
        %v1278 = vsel %vm590, %v585, 0
        %v1281 = vsel %vm590, %v1276, 0
        %1283 = vmatprep.subr.bf16.mxu0 0
        %1284 = vmatpush1.bf16.xpose.msra.mxu0 0
        %1285 = vmatprep.subr.bf16.mxu0 0
        %1286 = vmatpush1.bf16.xpose.msra.mxu0 0
        %1287 = vmatprep.subr.bf16.mxu0 0
        %1288 = vmatpush1.bf16.xpose.msra.mxu0 0
        %1289 = vmatprep.subr.bf16.mxu0 0
        %1290 = vmatpush1.bf16.xpose.msra.mxu0 0
        %1291 = vmatprep.subr.bf16.mxu0 0
        %1292 = vmatpush1.bf16.xpose.msra.mxu0 0
        %1293 = vmatprep.subr.bf16.mxu0 0
        %1294 = vmatpush1.bf16.xpose.msra.mxu0 0
        %1295 = vmatprep.subr.bf16.mxu0 0
        %1296 = vmatpush1.bf16.xpose.msra.mxu0 0
        %1297 = vmatprep.subr.bf16.mxu0 0
        %1298 = vmatpush1.bf16.xpose.msra.mxu0 %v1281
        %1299 = vmatprep.subr.bf16.mxu0 0
        %1300 = vmatpush2.bf16.xpose.msra.mxu0 0
        %1301 = vmatprep.subr.bf16.mxu0 0
        %1302 = vmatpush2.bf16.xpose.msra.mxu0 0
        %1303 = vmatprep.subr.bf16.mxu0 0
        %1304 = vmatpush2.bf16.xpose.msra.mxu0 0
        %1305 = vmatprep.subr.bf16.mxu0 0
        %1306 = vmatpush2.bf16.xpose.msra.mxu0 0
        %1307 = vmatprep.subr.bf16.mxu0 0
        %1308 = vmatpush2.bf16.xpose.msra.mxu0 0
        %1309 = vmatprep.subr.bf16.mxu0 0
        %1310 = vmatpush2.bf16.xpose.msra.mxu0 0
        %1311 = vmatprep.subr.bf16.mxu0 0
        %1312 = vmatpush2.bf16.xpose.msra.mxu0 0
        %1313 = vmatprep.subr.bf16.mxu0 0
        %1314 = vmatpush2.bf16.xpose.msra.mxu0 0
        %1315 = vmatprep.mubr.bf16.mxu0 0
        %1316 = vmatmul.mubr.bf16.gmra.mxu0 %v1278
        %v1317 = vpop.f32.mrf.mxu0
        %v1318 = vadd.f32 0.0, %v1317
        %v1319 = vpop.f32.mrf.mxu0
        %v1320 = vpop.f32.mrf.mxu0
        %v1321 = vpop.f32.mrf.mxu0
        %1322 = vdwg.mxu0
        %1324 = vrot.lane.b32.xlu0 %v586, 96
        %v1325 = vpop.permute.xlu0 %1324
        %v1327 = vsel %vm590, %v586, 0
        %v1330 = vsel %vm590, %v1325, 0
        %1332 = vmatprep.subr.bf16.mxu0 0
        %1333 = vmatpush1.bf16.xpose.msra.mxu0 0
        %1334 = vmatprep.subr.bf16.mxu0 0
        %1335 = vmatpush1.bf16.xpose.msra.mxu0 0
        %1336 = vmatprep.subr.bf16.mxu0 0
        %1337 = vmatpush1.bf16.xpose.msra.mxu0 0
        %1338 = vmatprep.subr.bf16.mxu0 0
        %1339 = vmatpush1.bf16.xpose.msra.mxu0 0
        %1340 = vmatprep.subr.bf16.mxu0 0
        %1341 = vmatpush1.bf16.xpose.msra.mxu0 0
        %1342 = vmatprep.subr.bf16.mxu0 0
        %1343 = vmatpush1.bf16.xpose.msra.mxu0 0
        %1344 = vmatprep.subr.bf16.mxu0 0
        %1345 = vmatpush1.bf16.xpose.msra.mxu0 0
        %1346 = vmatprep.subr.bf16.mxu0 0
        %1347 = vmatpush1.bf16.xpose.msra.mxu0 %v1330
        %1348 = vmatprep.subr.bf16.mxu0 0
        %1349 = vmatpush2.bf16.xpose.msra.mxu0 0
        %1350 = vmatprep.subr.bf16.mxu0 0
        %1351 = vmatpush2.bf16.xpose.msra.mxu0 0
        %1352 = vmatprep.subr.bf16.mxu0 0
        %1353 = vmatpush2.bf16.xpose.msra.mxu0 0
        %1354 = vmatprep.subr.bf16.mxu0 0
        %1355 = vmatpush2.bf16.xpose.msra.mxu0 0
        %1356 = vmatprep.subr.bf16.mxu0 0
        %1357 = vmatpush2.bf16.xpose.msra.mxu0 0
        %1358 = vmatprep.subr.bf16.mxu0 0
        %1359 = vmatpush2.bf16.xpose.msra.mxu0 0
        %1360 = vmatprep.subr.bf16.mxu0 0
        %1361 = vmatpush2.bf16.xpose.msra.mxu0 0
        %1362 = vmatprep.subr.bf16.mxu0 0
        %1363 = vmatpush2.bf16.xpose.msra.mxu0 0
        %1364 = vmatprep.mubr.bf16.mxu0 0
        %1365 = vmatmul.mubr.bf16.gmra.mxu0 %v1327
        %v1366 = vpop.f32.mrf.mxu0
        %v1367 = vadd.f32 0.0, %v1366
        %v1368 = vpop.f32.mrf.mxu0
        %v1369 = vpop.f32.mrf.mxu0
        %v1370 = vpop.f32.mrf.mxu0
        %1371 = vdwg.mxu0
        %vm1372 = vcmask 64512
        %v1373 = vsel %vm1372, %v632, -inf
        %1374 = vmax.xlane.f32.xlu0 %v1373
        %v1375 = vpop.xlane.xlu0 %1374
        %v1376 = vsel %vm1372, %v681, -inf
        %1377 = vmax.xlane.f32.xlu0 %v1376
        %v1378 = vpop.xlane.xlu0 %1377
        %v1379 = vsel %vm1372, %v730, -inf
        %1380 = vmax.xlane.f32.xlu0 %v1379
        %v1381 = vpop.xlane.xlu0 %1380
        %v1382 = vsel %vm1372, %v779, -inf
        %1383 = vmax.xlane.f32.xlu0 %v1382
        %v1384 = vpop.xlane.xlu0 %1383
        %v1385 = vsel %vm1372, %v828, -inf
        %1386 = vmax.xlane.f32.xlu0 %v1385
        %v1387 = vpop.xlane.xlu0 %1386
        %v1388 = vsel %vm1372, %v877, -inf
        %1389 = vmax.xlane.f32.xlu0 %v1388
        %v1390 = vpop.xlane.xlu0 %1389
        %v1391 = vsel %vm1372, %v926, -inf
        %1392 = vmax.xlane.f32.xlu0 %v1391
        %v1393 = vpop.xlane.xlu0 %1392
        %v1394 = vsel %vm1372, %v975, -inf
        %1395 = vmax.xlane.f32.xlu0 %v1394
        %v1396 = vpop.xlane.xlu0 %1395
        %v1397 = vsel %vm1372, %v1024, -inf
        %1398 = vmax.xlane.f32.xlu0 %v1397
        %v1399 = vpop.xlane.xlu0 %1398
        %v1400 = vsel %vm1372, %v1073, -inf
        %1401 = vmax.xlane.f32.xlu0 %v1400
        %v1402 = vpop.xlane.xlu0 %1401
        %v1403 = vsel %vm1372, %v1122, -inf
        %1404 = vmax.xlane.f32.xlu0 %v1403
        %v1405 = vpop.xlane.xlu0 %1404
        %v1406 = vsel %vm1372, %v1171, -inf
        %1407 = vmax.xlane.f32.xlu0 %v1406
        %v1408 = vpop.xlane.xlu0 %1407
        %v1409 = vsel %vm1372, %v1220, -inf
        %1410 = vmax.xlane.f32.xlu0 %v1409
        %v1411 = vpop.xlane.xlu0 %1410
        %v1412 = vsel %vm1372, %v1269, -inf
        %1413 = vmax.xlane.f32.xlu0 %v1412
        %v1414 = vpop.xlane.xlu0 %1413
        %v1415 = vsel %vm1372, %v1318, -inf
        %1416 = vmax.xlane.f32.xlu0 %v1415
        %v1417 = vpop.xlane.xlu0 %1416
        %v1418 = vsel %vm1372, %v1367, -inf
        %1419 = vmax.xlane.f32.xlu0 %v1418
        %v1420 = vpop.xlane.xlu0 %1419
        %v1421 = vsub.f32 -inf, %v1375
        %v1422 = vsub.f32 -inf, %v1378
        %v1423 = vsub.f32 -inf, %v1381
        %v1424 = vsub.f32 -inf, %v1384
        %v1425 = vsub.f32 -inf, %v1387
        %v1426 = vsub.f32 -inf, %v1390
        %v1427 = vsub.f32 -inf, %v1393
        %v1428 = vsub.f32 -inf, %v1396
        %v1429 = vsub.f32 -inf, %v1399
        %v1430 = vsub.f32 -inf, %v1402
        %v1431 = vsub.f32 -inf, %v1405
        %v1432 = vsub.f32 -inf, %v1408
        %v1433 = vsub.f32 -inf, %v1411
        %v1434 = vsub.f32 -inf, %v1414
        %v1435 = vsub.f32 -inf, %v1417
        %v1436 = vsub.f32 -inf, %v1420
        %v1437 = vmul.f32 %v1421, 1.442695
        %v1438 = vpow.pop %v1437
        %v1439 = vmul.f32 %v1422, 1.442695
        %v1440 = vpow.pop %v1439
        %v1441 = vmul.f32 %v1423, 1.442695
        %v1442 = vpow.pop %v1441
        %v1443 = vmul.f32 %v1424, 1.442695
        %v1444 = vpow.pop %v1443
        %v1445 = vmul.f32 %v1425, 1.442695
        %v1446 = vpow.pop %v1445
        %v1447 = vmul.f32 %v1426, 1.442695
        %v1448 = vpow.pop %v1447
        %v1449 = vmul.f32 %v1427, 1.442695
        %v1450 = vpow.pop %v1449
        %v1451 = vmul.f32 %v1428, 1.442695
        %v1452 = vpow.pop %v1451
        %v1453 = vmul.f32 %v1429, 1.442695
        %v1454 = vpow.pop %v1453
        %v1455 = vmul.f32 %v1430, 1.442695
        %v1456 = vpow.pop %v1455
        %v1457 = vmul.f32 %v1431, 1.442695
        %v1458 = vpow.pop %v1457
        %v1459 = vmul.f32 %v1432, 1.442695
        %v1460 = vpow.pop %v1459
        %v1461 = vmul.f32 %v1433, 1.442695
        %v1462 = vpow.pop %v1461
        %v1463 = vmul.f32 %v1434, 1.442695
        %v1464 = vpow.pop %v1463
        %v1465 = vmul.f32 %v1435, 1.442695
        %v1466 = vpow.pop %v1465
        %v1467 = vmul.f32 %v1436, 1.442695
        %v1468 = vpow.pop %v1467
        %v1469 = vsub.f32 %v632, %v1375
        %v1470 = vsub.f32 %v681, %v1378
        %v1471 = vsub.f32 %v730, %v1381
        %v1472 = vsub.f32 %v779, %v1384
        %v1473 = vsub.f32 %v828, %v1387
        %v1474 = vsub.f32 %v877, %v1390
        %v1475 = vsub.f32 %v926, %v1393
        %v1476 = vsub.f32 %v975, %v1396
        %v1477 = vsub.f32 %v1024, %v1399
        %v1478 = vsub.f32 %v1073, %v1402
        %v1479 = vsub.f32 %v1122, %v1405
        %v1480 = vsub.f32 %v1171, %v1408
        %v1481 = vsub.f32 %v1220, %v1411
        %v1482 = vsub.f32 %v1269, %v1414
        %v1483 = vsub.f32 %v1318, %v1417
        %v1484 = vsub.f32 %v1367, %v1420
        %v1485 = vmul.f32 %v1469, 1.442695
        %v1486 = vpow.pop %v1485
        %v1487 = vmul.f32 %v1470, 1.442695
        %v1488 = vpow.pop %v1487
        %v1489 = vmul.f32 %v1471, 1.442695
        %v1490 = vpow.pop %v1489
        %v1491 = vmul.f32 %v1472, 1.442695
        %v1492 = vpow.pop %v1491
        %v1493 = vmul.f32 %v1473, 1.442695
        %v1494 = vpow.pop %v1493
        %v1495 = vmul.f32 %v1474, 1.442695
        %v1496 = vpow.pop %v1495
        %v1497 = vmul.f32 %v1475, 1.442695
        %v1498 = vpow.pop %v1497
        %v1499 = vmul.f32 %v1476, 1.442695
        %v1500 = vpow.pop %v1499
        %v1501 = vmul.f32 %v1477, 1.442695
        %v1502 = vpow.pop %v1501
        %v1503 = vmul.f32 %v1478, 1.442695
        %v1504 = vpow.pop %v1503
        %v1505 = vmul.f32 %v1479, 1.442695
        %v1506 = vpow.pop %v1505
        %v1507 = vmul.f32 %v1480, 1.442695
        %v1508 = vpow.pop %v1507
        %v1509 = vmul.f32 %v1481, 1.442695
        %v1510 = vpow.pop %v1509
        %v1511 = vmul.f32 %v1482, 1.442695
        %v1512 = vpow.pop %v1511
        %v1513 = vmul.f32 %v1483, 1.442695
        %v1514 = vpow.pop %v1513
        %v1515 = vmul.f32 %v1484, 1.442695
        %v1516 = vpow.pop %v1515
        %v1517 = vmul.f32 %v1438, 0.0
        %v1518 = vmul.f32 %v1440, 0.0
        %v1519 = vmul.f32 %v1442, 0.0
        %v1520 = vmul.f32 %v1444, 0.0
        %v1521 = vmul.f32 %v1446, 0.0
        %v1522 = vmul.f32 %v1448, 0.0
        %v1523 = vmul.f32 %v1450, 0.0
        %v1524 = vmul.f32 %v1452, 0.0
        %v1525 = vmul.f32 %v1454, 0.0
        %v1526 = vmul.f32 %v1456, 0.0
        %v1527 = vmul.f32 %v1458, 0.0
        %v1528 = vmul.f32 %v1460, 0.0
        %v1529 = vmul.f32 %v1462, 0.0
        %v1530 = vmul.f32 %v1464, 0.0
        %v1531 = vmul.f32 %v1466, 0.0
        %v1532 = vmul.f32 %v1468, 0.0
        %v1533 = vsel %vm1372, %v1486, 0.0
        %1534 = vadd.xlane.f32.xlu0 %v1533
        %v1535 = vpop.xlane.xlu0 %1534
        %v1536 = vsel %vm1372, %v1488, 0.0
        %1537 = vadd.xlane.f32.xlu0 %v1536
        %v1538 = vpop.xlane.xlu0 %1537
        %v1539 = vsel %vm1372, %v1490, 0.0
        %1540 = vadd.xlane.f32.xlu0 %v1539
        %v1541 = vpop.xlane.xlu0 %1540
        %v1542 = vsel %vm1372, %v1492, 0.0
        %1543 = vadd.xlane.f32.xlu0 %v1542
        %v1544 = vpop.xlane.xlu0 %1543
        %v1545 = vsel %vm1372, %v1494, 0.0
        %1546 = vadd.xlane.f32.xlu0 %v1545
        %v1547 = vpop.xlane.xlu0 %1546
        %v1548 = vsel %vm1372, %v1496, 0.0
        %1549 = vadd.xlane.f32.xlu0 %v1548
        %v1550 = vpop.xlane.xlu0 %1549
        %v1551 = vsel %vm1372, %v1498, 0.0
        %1552 = vadd.xlane.f32.xlu0 %v1551
        %v1553 = vpop.xlane.xlu0 %1552
        %v1554 = vsel %vm1372, %v1500, 0.0
        %1555 = vadd.xlane.f32.xlu0 %v1554
        %v1556 = vpop.xlane.xlu0 %1555
        %v1557 = vsel %vm1372, %v1502, 0.0
        %1558 = vadd.xlane.f32.xlu0 %v1557
        %v1559 = vpop.xlane.xlu0 %1558
        %v1560 = vsel %vm1372, %v1504, 0.0
        %1561 = vadd.xlane.f32.xlu0 %v1560
        %v1562 = vpop.xlane.xlu0 %1561
        %v1563 = vsel %vm1372, %v1506, 0.0
        %1564 = vadd.xlane.f32.xlu0 %v1563
        %v1565 = vpop.xlane.xlu0 %1564
        %v1566 = vsel %vm1372, %v1508, 0.0
        %1567 = vadd.xlane.f32.xlu0 %v1566
        %v1568 = vpop.xlane.xlu0 %1567
        %v1569 = vsel %vm1372, %v1510, 0.0
        %1570 = vadd.xlane.f32.xlu0 %v1569
        %v1571 = vpop.xlane.xlu0 %1570
        %v1572 = vsel %vm1372, %v1512, 0.0
        %1573 = vadd.xlane.f32.xlu0 %v1572
        %v1574 = vpop.xlane.xlu0 %1573
        %v1575 = vsel %vm1372, %v1514, 0.0
        %1576 = vadd.xlane.f32.xlu0 %v1575
        %v1577 = vpop.xlane.xlu0 %1576
        %v1578 = vsel %vm1372, %v1516, 0.0
        %1579 = vadd.xlane.f32.xlu0 %v1578
        %v1580 = vpop.xlane.xlu0 %1579
        %v1581 = vadd.f32 %v1517, %v1535
        %v1582 = vadd.f32 %v1518, %v1538
        %v1583 = vadd.f32 %v1519, %v1541
        %v1584 = vadd.f32 %v1520, %v1544
        %v1585 = vadd.f32 %v1521, %v1547
        %v1586 = vadd.f32 %v1522, %v1550
        %v1587 = vadd.f32 %v1523, %v1553
        %v1588 = vadd.f32 %v1524, %v1556
        %v1589 = vadd.f32 %v1525, %v1559
        %v1590 = vadd.f32 %v1526, %v1562
        %v1591 = vadd.f32 %v1527, %v1565
        %v1592 = vadd.f32 %v1528, %v1568
        %v1593 = vadd.f32 %v1529, %v1571
        %v1594 = vadd.f32 %v1530, %v1574
        %v1595 = vadd.f32 %v1531, %v1577
        %v1596 = vadd.f32 %v1532, %v1580
        %v1597 = vpack.c.bf16 %v1486, %v1486
        %v1598 = vpack.c.bf16 %v1488, %v1488
        %v1599 = vpack.c.bf16 %v1490, %v1490
        %v1600 = vpack.c.bf16 %v1492, %v1492
        %v1601 = vpack.c.bf16 %v1494, %v1494
        %v1602 = vpack.c.bf16 %v1496, %v1496
        %v1603 = vpack.c.bf16 %v1498, %v1498
        %v1604 = vpack.c.bf16 %v1500, %v1500
        %v1605 = vpack.c.bf16 %v1502, %v1502
        %v1606 = vpack.c.bf16 %v1504, %v1504
        %v1607 = vpack.c.bf16 %v1506, %v1506
        %v1608 = vpack.c.bf16 %v1508, %v1508
        %v1609 = vpack.c.bf16 %v1510, %v1510
        %v1610 = vpack.c.bf16 %v1512, %v1512
        %v1611 = vpack.c.bf16 %v1514, %v1514
        %v1612 = vpack.c.bf16 %v1516, %v1516
        %1613 = vrot.lane.b32.xlu0 %v571, 64
        %v1614 = vpop.permute.xlu0 %1613
        %v1616 = vsel %vm1372, %v1597, 0
        %vm1618 = vcmask 1043456
        %v1620 = vsel %vm1618, %v1614, 0
        %1622 = vmatprep.subr.bf16.mxu0 0
        %1623 = vmatpush1.bf16.msra.mxu0 0
        %1624 = vmatprep.subr.bf16.mxu0 0
        %1625 = vmatpush1.bf16.msra.mxu0 0
        %1626 = vmatprep.subr.bf16.mxu0 0
        %1627 = vmatpush1.bf16.msra.mxu0 0
        %1628 = vmatprep.subr.bf16.mxu0 0
        %1629 = vmatpush1.bf16.msra.mxu0 0
        %1630 = vmatprep.subr.bf16.mxu0 0
        %1631 = vmatpush1.bf16.msra.mxu0 0
        %1632 = vmatprep.subr.bf16.mxu0 0
        %1633 = vmatpush1.bf16.msra.mxu0 0
        %1634 = vmatprep.subr.bf16.mxu0 0
        %1635 = vmatpush1.bf16.msra.mxu0 0
        %1636 = vmatprep.subr.bf16.mxu0 0
        %1637 = vmatpush1.bf16.msra.mxu0 %v1620
        %1638 = vmatprep.subr.bf16.mxu0 0
        %1639 = vmatpush2.bf16.msra.mxu0 0
        %1640 = vmatprep.subr.bf16.mxu0 0
        %1641 = vmatpush2.bf16.msra.mxu0 0
        %1642 = vmatprep.subr.bf16.mxu0 0
        %1643 = vmatpush2.bf16.msra.mxu0 0
        %1644 = vmatprep.subr.bf16.mxu0 0
        %1645 = vmatpush2.bf16.msra.mxu0 0
        %1646 = vmatprep.subr.bf16.mxu0 0
        %1647 = vmatpush2.bf16.msra.mxu0 0
        %1648 = vmatprep.subr.bf16.mxu0 0
        %1649 = vmatpush2.bf16.msra.mxu0 0
        %1650 = vmatprep.subr.bf16.mxu0 0
        %1651 = vmatpush2.bf16.msra.mxu0 0
        %1652 = vmatprep.subr.bf16.mxu0 0
        %1653 = vmatpush2.bf16.msra.mxu0 0
        %1654 = vmatprep.mubr.bf16.mxu0 0
        %1655 = vmatmul.mubr.bf16.gmra.mxu0 %v1616
        %v1656 = vpop.f32.mrf.mxu0
        %v1657 = vadd.f32 0.0, %v1656
        %v1658 = vpop.f32.mrf.mxu0
        %v1659 = vpop.f32.mrf.mxu0
        %v1660 = vpop.f32.mrf.mxu0
        %1661 = vdwg.mxu0
        %1662 = vrot.lane.b32.xlu0 %v572, 64
        %v1663 = vpop.permute.xlu0 %1662
        %v1665 = vsel %vm1372, %v1598, 0
        %v1668 = vsel %vm1618, %v1663, 0
        %1670 = vmatprep.subr.bf16.mxu0 0
        %1671 = vmatpush1.bf16.msra.mxu0 0
        %1672 = vmatprep.subr.bf16.mxu0 0
        %1673 = vmatpush1.bf16.msra.mxu0 0
        %1674 = vmatprep.subr.bf16.mxu0 0
        %1675 = vmatpush1.bf16.msra.mxu0 0
        %1676 = vmatprep.subr.bf16.mxu0 0
        %1677 = vmatpush1.bf16.msra.mxu0 0
        %1678 = vmatprep.subr.bf16.mxu0 0
        %1679 = vmatpush1.bf16.msra.mxu0 0
        %1680 = vmatprep.subr.bf16.mxu0 0
        %1681 = vmatpush1.bf16.msra.mxu0 0
        %1682 = vmatprep.subr.bf16.mxu0 0
        %1683 = vmatpush1.bf16.msra.mxu0 0
        %1684 = vmatprep.subr.bf16.mxu0 0
        %1685 = vmatpush1.bf16.msra.mxu0 %v1668
        %1686 = vmatprep.subr.bf16.mxu0 0
        %1687 = vmatpush2.bf16.msra.mxu0 0
        %1688 = vmatprep.subr.bf16.mxu0 0
        %1689 = vmatpush2.bf16.msra.mxu0 0
        %1690 = vmatprep.subr.bf16.mxu0 0
        %1691 = vmatpush2.bf16.msra.mxu0 0
        %1692 = vmatprep.subr.bf16.mxu0 0
        %1693 = vmatpush2.bf16.msra.mxu0 0
        %1694 = vmatprep.subr.bf16.mxu0 0
        %1695 = vmatpush2.bf16.msra.mxu0 0
        %1696 = vmatprep.subr.bf16.mxu0 0
        %1697 = vmatpush2.bf16.msra.mxu0 0
        %1698 = vmatprep.subr.bf16.mxu0 0
        %1699 = vmatpush2.bf16.msra.mxu0 0
        %1700 = vmatprep.subr.bf16.mxu0 0
        %1701 = vmatpush2.bf16.msra.mxu0 0
        %1702 = vmatprep.mubr.bf16.mxu0 0
        %1703 = vmatmul.mubr.bf16.gmra.mxu0 %v1665
        %v1704 = vpop.f32.mrf.mxu0
        %v1705 = vadd.f32 0.0, %v1704
        %v1706 = vpop.f32.mrf.mxu0
        %v1707 = vpop.f32.mrf.mxu0
        %v1708 = vpop.f32.mrf.mxu0
        %1709 = vdwg.mxu0
        %1710 = vrot.lane.b32.xlu0 %v573, 64
        %v1711 = vpop.permute.xlu0 %1710
        %v1713 = vsel %vm1372, %v1599, 0
        %v1716 = vsel %vm1618, %v1711, 0
        %1718 = vmatprep.subr.bf16.mxu0 0
        %1719 = vmatpush1.bf16.msra.mxu0 0
        %1720 = vmatprep.subr.bf16.mxu0 0
        %1721 = vmatpush1.bf16.msra.mxu0 0
        %1722 = vmatprep.subr.bf16.mxu0 0
        %1723 = vmatpush1.bf16.msra.mxu0 0
        %1724 = vmatprep.subr.bf16.mxu0 0
        %1725 = vmatpush1.bf16.msra.mxu0 0
        %1726 = vmatprep.subr.bf16.mxu0 0
        %1727 = vmatpush1.bf16.msra.mxu0 0
        %1728 = vmatprep.subr.bf16.mxu0 0
        %1729 = vmatpush1.bf16.msra.mxu0 0
        %1730 = vmatprep.subr.bf16.mxu0 0
        %1731 = vmatpush1.bf16.msra.mxu0 0
        %1732 = vmatprep.subr.bf16.mxu0 0
        %1733 = vmatpush1.bf16.msra.mxu0 %v1716
        %1734 = vmatprep.subr.bf16.mxu0 0
        %1735 = vmatpush2.bf16.msra.mxu0 0
        %1736 = vmatprep.subr.bf16.mxu0 0
        %1737 = vmatpush2.bf16.msra.mxu0 0
        %1738 = vmatprep.subr.bf16.mxu0 0
        %1739 = vmatpush2.bf16.msra.mxu0 0
        %1740 = vmatprep.subr.bf16.mxu0 0
        %1741 = vmatpush2.bf16.msra.mxu0 0
        %1742 = vmatprep.subr.bf16.mxu0 0
        %1743 = vmatpush2.bf16.msra.mxu0 0
        %1744 = vmatprep.subr.bf16.mxu0 0
        %1745 = vmatpush2.bf16.msra.mxu0 0
        %1746 = vmatprep.subr.bf16.mxu0 0
        %1747 = vmatpush2.bf16.msra.mxu0 0
        %1748 = vmatprep.subr.bf16.mxu0 0
        %1749 = vmatpush2.bf16.msra.mxu0 0
        %1750 = vmatprep.mubr.bf16.mxu0 0
        %1751 = vmatmul.mubr.bf16.gmra.mxu0 %v1713
        %v1752 = vpop.f32.mrf.mxu0
        %v1753 = vadd.f32 0.0, %v1752
        %v1754 = vpop.f32.mrf.mxu0
        %v1755 = vpop.f32.mrf.mxu0
        %v1756 = vpop.f32.mrf.mxu0
        %1757 = vdwg.mxu0
        %1758 = vrot.lane.b32.xlu0 %v574, 64
        %v1759 = vpop.permute.xlu0 %1758
        %v1761 = vsel %vm1372, %v1600, 0
        %v1764 = vsel %vm1618, %v1759, 0
        %1766 = vmatprep.subr.bf16.mxu0 0
        %1767 = vmatpush1.bf16.msra.mxu0 0
        %1768 = vmatprep.subr.bf16.mxu0 0
        %1769 = vmatpush1.bf16.msra.mxu0 0
        %1770 = vmatprep.subr.bf16.mxu0 0
        %1771 = vmatpush1.bf16.msra.mxu0 0
        %1772 = vmatprep.subr.bf16.mxu0 0
        %1773 = vmatpush1.bf16.msra.mxu0 0
        %1774 = vmatprep.subr.bf16.mxu0 0
        %1775 = vmatpush1.bf16.msra.mxu0 0
        %1776 = vmatprep.subr.bf16.mxu0 0
        %1777 = vmatpush1.bf16.msra.mxu0 0
        %1778 = vmatprep.subr.bf16.mxu0 0
        %1779 = vmatpush1.bf16.msra.mxu0 0
        %1780 = vmatprep.subr.bf16.mxu0 0
        %1781 = vmatpush1.bf16.msra.mxu0 %v1764
        %1782 = vmatprep.subr.bf16.mxu0 0
        %1783 = vmatpush2.bf16.msra.mxu0 0
        %1784 = vmatprep.subr.bf16.mxu0 0
        %1785 = vmatpush2.bf16.msra.mxu0 0
        %1786 = vmatprep.subr.bf16.mxu0 0
        %1787 = vmatpush2.bf16.msra.mxu0 0
        %1788 = vmatprep.subr.bf16.mxu0 0
        %1789 = vmatpush2.bf16.msra.mxu0 0
        %1790 = vmatprep.subr.bf16.mxu0 0
        %1791 = vmatpush2.bf16.msra.mxu0 0
        %1792 = vmatprep.subr.bf16.mxu0 0
        %1793 = vmatpush2.bf16.msra.mxu0 0
        %1794 = vmatprep.subr.bf16.mxu0 0
        %1795 = vmatpush2.bf16.msra.mxu0 0
        %1796 = vmatprep.subr.bf16.mxu0 0
        %1797 = vmatpush2.bf16.msra.mxu0 0
        %1798 = vmatprep.mubr.bf16.mxu0 0
        %1799 = vmatmul.mubr.bf16.gmra.mxu0 %v1761
        %v1800 = vpop.f32.mrf.mxu0
        %v1801 = vadd.f32 0.0, %v1800
        %v1802 = vpop.f32.mrf.mxu0
        %v1803 = vpop.f32.mrf.mxu0
        %v1804 = vpop.f32.mrf.mxu0
        %1805 = vdwg.mxu0
        %1806 = vrot.lane.b32.xlu0 %v575, 64
        %v1807 = vpop.permute.xlu0 %1806
        %v1809 = vsel %vm1372, %v1601, 0
        %v1812 = vsel %vm1618, %v1807, 0
        %1814 = vmatprep.subr.bf16.mxu0 0
        %1815 = vmatpush1.bf16.msra.mxu0 0
        %1816 = vmatprep.subr.bf16.mxu0 0
        %1817 = vmatpush1.bf16.msra.mxu0 0
        %1818 = vmatprep.subr.bf16.mxu0 0
        %1819 = vmatpush1.bf16.msra.mxu0 0
        %1820 = vmatprep.subr.bf16.mxu0 0
        %1821 = vmatpush1.bf16.msra.mxu0 0
        %1822 = vmatprep.subr.bf16.mxu0 0
        %1823 = vmatpush1.bf16.msra.mxu0 0
        %1824 = vmatprep.subr.bf16.mxu0 0
        %1825 = vmatpush1.bf16.msra.mxu0 0
        %1826 = vmatprep.subr.bf16.mxu0 0
        %1827 = vmatpush1.bf16.msra.mxu0 0
        %1828 = vmatprep.subr.bf16.mxu0 0
        %1829 = vmatpush1.bf16.msra.mxu0 %v1812
        %1830 = vmatprep.subr.bf16.mxu0 0
        %1831 = vmatpush2.bf16.msra.mxu0 0
        %1832 = vmatprep.subr.bf16.mxu0 0
        %1833 = vmatpush2.bf16.msra.mxu0 0
        %1834 = vmatprep.subr.bf16.mxu0 0
        %1835 = vmatpush2.bf16.msra.mxu0 0
        %1836 = vmatprep.subr.bf16.mxu0 0
        %1837 = vmatpush2.bf16.msra.mxu0 0
        %1838 = vmatprep.subr.bf16.mxu0 0
        %1839 = vmatpush2.bf16.msra.mxu0 0
        %1840 = vmatprep.subr.bf16.mxu0 0
        %1841 = vmatpush2.bf16.msra.mxu0 0
        %1842 = vmatprep.subr.bf16.mxu0 0
        %1843 = vmatpush2.bf16.msra.mxu0 0
        %1844 = vmatprep.subr.bf16.mxu0 0
        %1845 = vmatpush2.bf16.msra.mxu0 0
        %1846 = vmatprep.mubr.bf16.mxu0 0
        %1847 = vmatmul.mubr.bf16.gmra.mxu0 %v1809
        %v1848 = vpop.f32.mrf.mxu0
        %v1849 = vadd.f32 0.0, %v1848
        %v1850 = vpop.f32.mrf.mxu0
        %v1851 = vpop.f32.mrf.mxu0
        %v1852 = vpop.f32.mrf.mxu0
        %1853 = vdwg.mxu0
        %1854 = vrot.lane.b32.xlu0 %v576, 64
        %v1855 = vpop.permute.xlu0 %1854
        %v1857 = vsel %vm1372, %v1602, 0
        %v1860 = vsel %vm1618, %v1855, 0
        %1862 = vmatprep.subr.bf16.mxu0 0
        %1863 = vmatpush1.bf16.msra.mxu0 0
        %1864 = vmatprep.subr.bf16.mxu0 0
        %1865 = vmatpush1.bf16.msra.mxu0 0
        %1866 = vmatprep.subr.bf16.mxu0 0
        %1867 = vmatpush1.bf16.msra.mxu0 0
        %1868 = vmatprep.subr.bf16.mxu0 0
        %1869 = vmatpush1.bf16.msra.mxu0 0
        %1870 = vmatprep.subr.bf16.mxu0 0
        %1871 = vmatpush1.bf16.msra.mxu0 0
        %1872 = vmatprep.subr.bf16.mxu0 0
        %1873 = vmatpush1.bf16.msra.mxu0 0
        %1874 = vmatprep.subr.bf16.mxu0 0
        %1875 = vmatpush1.bf16.msra.mxu0 0
        %1876 = vmatprep.subr.bf16.mxu0 0
        %1877 = vmatpush1.bf16.msra.mxu0 %v1860
        %1878 = vmatprep.subr.bf16.mxu0 0
        %1879 = vmatpush2.bf16.msra.mxu0 0
        %1880 = vmatprep.subr.bf16.mxu0 0
        %1881 = vmatpush2.bf16.msra.mxu0 0
        %1882 = vmatprep.subr.bf16.mxu0 0
        %1883 = vmatpush2.bf16.msra.mxu0 0
        %1884 = vmatprep.subr.bf16.mxu0 0
        %1885 = vmatpush2.bf16.msra.mxu0 0
        %1886 = vmatprep.subr.bf16.mxu0 0
        %1887 = vmatpush2.bf16.msra.mxu0 0
        %1888 = vmatprep.subr.bf16.mxu0 0
        %1889 = vmatpush2.bf16.msra.mxu0 0
        %1890 = vmatprep.subr.bf16.mxu0 0
        %1891 = vmatpush2.bf16.msra.mxu0 0
        %1892 = vmatprep.subr.bf16.mxu0 0
        %1893 = vmatpush2.bf16.msra.mxu0 0
        %1894 = vmatprep.mubr.bf16.mxu0 0
        %1895 = vmatmul.mubr.bf16.gmra.mxu0 %v1857
        %v1896 = vpop.f32.mrf.mxu0
        %v1897 = vadd.f32 0.0, %v1896
        %v1898 = vpop.f32.mrf.mxu0
        %v1899 = vpop.f32.mrf.mxu0
        %v1900 = vpop.f32.mrf.mxu0
        %1901 = vdwg.mxu0
        %1902 = vrot.lane.b32.xlu0 %v577, 64
        %v1903 = vpop.permute.xlu0 %1902
        %v1905 = vsel %vm1372, %v1603, 0
        %v1908 = vsel %vm1618, %v1903, 0
        %1910 = vmatprep.subr.bf16.mxu0 0
        %1911 = vmatpush1.bf16.msra.mxu0 0
        %1912 = vmatprep.subr.bf16.mxu0 0
        %1913 = vmatpush1.bf16.msra.mxu0 0
        %1914 = vmatprep.subr.bf16.mxu0 0
        %1915 = vmatpush1.bf16.msra.mxu0 0
        %1916 = vmatprep.subr.bf16.mxu0 0
        %1917 = vmatpush1.bf16.msra.mxu0 0
        %1918 = vmatprep.subr.bf16.mxu0 0
        %1919 = vmatpush1.bf16.msra.mxu0 0
        %1920 = vmatprep.subr.bf16.mxu0 0
        %1921 = vmatpush1.bf16.msra.mxu0 0
        %1922 = vmatprep.subr.bf16.mxu0 0
        %1923 = vmatpush1.bf16.msra.mxu0 0
        %1924 = vmatprep.subr.bf16.mxu0 0
        %1925 = vmatpush1.bf16.msra.mxu0 %v1908
        %1926 = vmatprep.subr.bf16.mxu0 0
        %1927 = vmatpush2.bf16.msra.mxu0 0
        %1928 = vmatprep.subr.bf16.mxu0 0
        %1929 = vmatpush2.bf16.msra.mxu0 0
        %1930 = vmatprep.subr.bf16.mxu0 0
        %1931 = vmatpush2.bf16.msra.mxu0 0
        %1932 = vmatprep.subr.bf16.mxu0 0
        %1933 = vmatpush2.bf16.msra.mxu0 0
        %1934 = vmatprep.subr.bf16.mxu0 0
        %1935 = vmatpush2.bf16.msra.mxu0 0
        %1936 = vmatprep.subr.bf16.mxu0 0
        %1937 = vmatpush2.bf16.msra.mxu0 0
        %1938 = vmatprep.subr.bf16.mxu0 0
        %1939 = vmatpush2.bf16.msra.mxu0 0
        %1940 = vmatprep.subr.bf16.mxu0 0
        %1941 = vmatpush2.bf16.msra.mxu0 0
        %1942 = vmatprep.mubr.bf16.mxu0 0
        %1943 = vmatmul.mubr.bf16.gmra.mxu0 %v1905
        %v1944 = vpop.f32.mrf.mxu0
        %v1945 = vadd.f32 0.0, %v1944
        %v1946 = vpop.f32.mrf.mxu0
        %v1947 = vpop.f32.mrf.mxu0
        %v1948 = vpop.f32.mrf.mxu0
        %1949 = vdwg.mxu0
        %1950 = vrot.lane.b32.xlu0 %v578, 64
        %v1951 = vpop.permute.xlu0 %1950
        %v1953 = vsel %vm1372, %v1604, 0
        %v1956 = vsel %vm1618, %v1951, 0
        %1958 = vmatprep.subr.bf16.mxu0 0
        %1959 = vmatpush1.bf16.msra.mxu0 0
        %1960 = vmatprep.subr.bf16.mxu0 0
        %1961 = vmatpush1.bf16.msra.mxu0 0
        %1962 = vmatprep.subr.bf16.mxu0 0
        %1963 = vmatpush1.bf16.msra.mxu0 0
        %1964 = vmatprep.subr.bf16.mxu0 0
        %1965 = vmatpush1.bf16.msra.mxu0 0
        %1966 = vmatprep.subr.bf16.mxu0 0
        %1967 = vmatpush1.bf16.msra.mxu0 0
        %1968 = vmatprep.subr.bf16.mxu0 0
        %1969 = vmatpush1.bf16.msra.mxu0 0
        %1970 = vmatprep.subr.bf16.mxu0 0
        %1971 = vmatpush1.bf16.msra.mxu0 0
        %1972 = vmatprep.subr.bf16.mxu0 0
        %1973 = vmatpush1.bf16.msra.mxu0 %v1956
        %1974 = vmatprep.subr.bf16.mxu0 0
        %1975 = vmatpush2.bf16.msra.mxu0 0
        %1976 = vmatprep.subr.bf16.mxu0 0
        %1977 = vmatpush2.bf16.msra.mxu0 0
        %1978 = vmatprep.subr.bf16.mxu0 0
        %1979 = vmatpush2.bf16.msra.mxu0 0
        %1980 = vmatprep.subr.bf16.mxu0 0
        %1981 = vmatpush2.bf16.msra.mxu0 0
        %1982 = vmatprep.subr.bf16.mxu0 0
        %1983 = vmatpush2.bf16.msra.mxu0 0
        %1984 = vmatprep.subr.bf16.mxu0 0
        %1985 = vmatpush2.bf16.msra.mxu0 0
        %1986 = vmatprep.subr.bf16.mxu0 0
        %1987 = vmatpush2.bf16.msra.mxu0 0
        %1988 = vmatprep.subr.bf16.mxu0 0
        %1989 = vmatpush2.bf16.msra.mxu0 0
        %1990 = vmatprep.mubr.bf16.mxu0 0
        %1991 = vmatmul.mubr.bf16.gmra.mxu0 %v1953
        %v1992 = vpop.f32.mrf.mxu0
        %v1993 = vadd.f32 0.0, %v1992
        %v1994 = vpop.f32.mrf.mxu0
        %v1995 = vpop.f32.mrf.mxu0
        %v1996 = vpop.f32.mrf.mxu0
        %1997 = vdwg.mxu0
        %1998 = vrot.lane.b32.xlu0 %v579, 64
        %v1999 = vpop.permute.xlu0 %1998
        %v2001 = vsel %vm1372, %v1605, 0
        %v2004 = vsel %vm1618, %v1999, 0
        %2006 = vmatprep.subr.bf16.mxu0 0
        %2007 = vmatpush1.bf16.msra.mxu0 0
        %2008 = vmatprep.subr.bf16.mxu0 0
        %2009 = vmatpush1.bf16.msra.mxu0 0
        %2010 = vmatprep.subr.bf16.mxu0 0
        %2011 = vmatpush1.bf16.msra.mxu0 0
        %2012 = vmatprep.subr.bf16.mxu0 0
        %2013 = vmatpush1.bf16.msra.mxu0 0
        %2014 = vmatprep.subr.bf16.mxu0 0
        %2015 = vmatpush1.bf16.msra.mxu0 0
        %2016 = vmatprep.subr.bf16.mxu0 0
        %2017 = vmatpush1.bf16.msra.mxu0 0
        %2018 = vmatprep.subr.bf16.mxu0 0
        %2019 = vmatpush1.bf16.msra.mxu0 0
        %2020 = vmatprep.subr.bf16.mxu0 0
        %2021 = vmatpush1.bf16.msra.mxu0 %v2004
        %2022 = vmatprep.subr.bf16.mxu0 0
        %2023 = vmatpush2.bf16.msra.mxu0 0
        %2024 = vmatprep.subr.bf16.mxu0 0
        %2025 = vmatpush2.bf16.msra.mxu0 0
        %2026 = vmatprep.subr.bf16.mxu0 0
        %2027 = vmatpush2.bf16.msra.mxu0 0
        %2028 = vmatprep.subr.bf16.mxu0 0
        %2029 = vmatpush2.bf16.msra.mxu0 0
        %2030 = vmatprep.subr.bf16.mxu0 0
        %2031 = vmatpush2.bf16.msra.mxu0 0
        %2032 = vmatprep.subr.bf16.mxu0 0
        %2033 = vmatpush2.bf16.msra.mxu0 0
        %2034 = vmatprep.subr.bf16.mxu0 0
        %2035 = vmatpush2.bf16.msra.mxu0 0
        %2036 = vmatprep.subr.bf16.mxu0 0
        %2037 = vmatpush2.bf16.msra.mxu0 0
        %2038 = vmatprep.mubr.bf16.mxu0 0
        %2039 = vmatmul.mubr.bf16.gmra.mxu0 %v2001
        %v2040 = vpop.f32.mrf.mxu0
        %v2041 = vadd.f32 0.0, %v2040
        %v2042 = vpop.f32.mrf.mxu0
        %v2043 = vpop.f32.mrf.mxu0
        %v2044 = vpop.f32.mrf.mxu0
        %2045 = vdwg.mxu0
        %2046 = vrot.lane.b32.xlu0 %v580, 64
        %v2047 = vpop.permute.xlu0 %2046
        %v2049 = vsel %vm1372, %v1606, 0
        %v2052 = vsel %vm1618, %v2047, 0
        %2054 = vmatprep.subr.bf16.mxu0 0
        %2055 = vmatpush1.bf16.msra.mxu0 0
        %2056 = vmatprep.subr.bf16.mxu0 0
        %2057 = vmatpush1.bf16.msra.mxu0 0
        %2058 = vmatprep.subr.bf16.mxu0 0
        %2059 = vmatpush1.bf16.msra.mxu0 0
        %2060 = vmatprep.subr.bf16.mxu0 0
        %2061 = vmatpush1.bf16.msra.mxu0 0
        %2062 = vmatprep.subr.bf16.mxu0 0
        %2063 = vmatpush1.bf16.msra.mxu0 0
        %2064 = vmatprep.subr.bf16.mxu0 0
        %2065 = vmatpush1.bf16.msra.mxu0 0
        %2066 = vmatprep.subr.bf16.mxu0 0
        %2067 = vmatpush1.bf16.msra.mxu0 0
        %2068 = vmatprep.subr.bf16.mxu0 0
        %2069 = vmatpush1.bf16.msra.mxu0 %v2052
        %2070 = vmatprep.subr.bf16.mxu0 0
        %2071 = vmatpush2.bf16.msra.mxu0 0
        %2072 = vmatprep.subr.bf16.mxu0 0
        %2073 = vmatpush2.bf16.msra.mxu0 0
        %2074 = vmatprep.subr.bf16.mxu0 0
        %2075 = vmatpush2.bf16.msra.mxu0 0
        %2076 = vmatprep.subr.bf16.mxu0 0
        %2077 = vmatpush2.bf16.msra.mxu0 0
        %2078 = vmatprep.subr.bf16.mxu0 0
        %2079 = vmatpush2.bf16.msra.mxu0 0
        %2080 = vmatprep.subr.bf16.mxu0 0
        %2081 = vmatpush2.bf16.msra.mxu0 0
        %2082 = vmatprep.subr.bf16.mxu0 0
        %2083 = vmatpush2.bf16.msra.mxu0 0
        %2084 = vmatprep.subr.bf16.mxu0 0
        %2085 = vmatpush2.bf16.msra.mxu0 0
        %2086 = vmatprep.mubr.bf16.mxu0 0
        %2087 = vmatmul.mubr.bf16.gmra.mxu0 %v2049
        %v2088 = vpop.f32.mrf.mxu0
        %v2089 = vadd.f32 0.0, %v2088
        %v2090 = vpop.f32.mrf.mxu0
        %v2091 = vpop.f32.mrf.mxu0
        %v2092 = vpop.f32.mrf.mxu0
        %2093 = vdwg.mxu0
        %2094 = vrot.lane.b32.xlu0 %v581, 64
        %v2095 = vpop.permute.xlu0 %2094
        %v2097 = vsel %vm1372, %v1607, 0
        %v2100 = vsel %vm1618, %v2095, 0
        %2102 = vmatprep.subr.bf16.mxu0 0
        %2103 = vmatpush1.bf16.msra.mxu0 0
        %2104 = vmatprep.subr.bf16.mxu0 0
        %2105 = vmatpush1.bf16.msra.mxu0 0
        %2106 = vmatprep.subr.bf16.mxu0 0
        %2107 = vmatpush1.bf16.msra.mxu0 0
        %2108 = vmatprep.subr.bf16.mxu0 0
        %2109 = vmatpush1.bf16.msra.mxu0 0
        %2110 = vmatprep.subr.bf16.mxu0 0
        %2111 = vmatpush1.bf16.msra.mxu0 0
        %2112 = vmatprep.subr.bf16.mxu0 0
        %2113 = vmatpush1.bf16.msra.mxu0 0
        %2114 = vmatprep.subr.bf16.mxu0 0
        %2115 = vmatpush1.bf16.msra.mxu0 0
        %2116 = vmatprep.subr.bf16.mxu0 0
        %2117 = vmatpush1.bf16.msra.mxu0 %v2100
        %2118 = vmatprep.subr.bf16.mxu0 0
        %2119 = vmatpush2.bf16.msra.mxu0 0
        %2120 = vmatprep.subr.bf16.mxu0 0
        %2121 = vmatpush2.bf16.msra.mxu0 0
        %2122 = vmatprep.subr.bf16.mxu0 0
        %2123 = vmatpush2.bf16.msra.mxu0 0
        %2124 = vmatprep.subr.bf16.mxu0 0
        %2125 = vmatpush2.bf16.msra.mxu0 0
        %2126 = vmatprep.subr.bf16.mxu0 0
        %2127 = vmatpush2.bf16.msra.mxu0 0
        %2128 = vmatprep.subr.bf16.mxu0 0
        %2129 = vmatpush2.bf16.msra.mxu0 0
        %2130 = vmatprep.subr.bf16.mxu0 0
        %2131 = vmatpush2.bf16.msra.mxu0 0
        %2132 = vmatprep.subr.bf16.mxu0 0
        %2133 = vmatpush2.bf16.msra.mxu0 0
        %2134 = vmatprep.mubr.bf16.mxu0 0
        %2135 = vmatmul.mubr.bf16.gmra.mxu0 %v2097
        %v2136 = vpop.f32.mrf.mxu0
        %v2137 = vadd.f32 0.0, %v2136
        %v2138 = vpop.f32.mrf.mxu0
        %v2139 = vpop.f32.mrf.mxu0
        %v2140 = vpop.f32.mrf.mxu0
        %2141 = vdwg.mxu0
        %2142 = vrot.lane.b32.xlu0 %v582, 64
        %v2143 = vpop.permute.xlu0 %2142
        %v2145 = vsel %vm1372, %v1608, 0
        %v2148 = vsel %vm1618, %v2143, 0
        %2150 = vmatprep.subr.bf16.mxu0 0
        %2151 = vmatpush1.bf16.msra.mxu0 0
        %2152 = vmatprep.subr.bf16.mxu0 0
        %2153 = vmatpush1.bf16.msra.mxu0 0
        %2154 = vmatprep.subr.bf16.mxu0 0
        %2155 = vmatpush1.bf16.msra.mxu0 0
        %2156 = vmatprep.subr.bf16.mxu0 0
        %2157 = vmatpush1.bf16.msra.mxu0 0
        %2158 = vmatprep.subr.bf16.mxu0 0
        %2159 = vmatpush1.bf16.msra.mxu0 0
        %2160 = vmatprep.subr.bf16.mxu0 0
        %2161 = vmatpush1.bf16.msra.mxu0 0
        %2162 = vmatprep.subr.bf16.mxu0 0
        %2163 = vmatpush1.bf16.msra.mxu0 0
        %2164 = vmatprep.subr.bf16.mxu0 0
        %2165 = vmatpush1.bf16.msra.mxu0 %v2148
        %2166 = vmatprep.subr.bf16.mxu0 0
        %2167 = vmatpush2.bf16.msra.mxu0 0
        %2168 = vmatprep.subr.bf16.mxu0 0
        %2169 = vmatpush2.bf16.msra.mxu0 0
        %2170 = vmatprep.subr.bf16.mxu0 0
        %2171 = vmatpush2.bf16.msra.mxu0 0
        %2172 = vmatprep.subr.bf16.mxu0 0
        %2173 = vmatpush2.bf16.msra.mxu0 0
        %2174 = vmatprep.subr.bf16.mxu0 0
        %2175 = vmatpush2.bf16.msra.mxu0 0
        %2176 = vmatprep.subr.bf16.mxu0 0
        %2177 = vmatpush2.bf16.msra.mxu0 0
        %2178 = vmatprep.subr.bf16.mxu0 0
        %2179 = vmatpush2.bf16.msra.mxu0 0
        %2180 = vmatprep.subr.bf16.mxu0 0
        %2181 = vmatpush2.bf16.msra.mxu0 0
        %2182 = vmatprep.mubr.bf16.mxu0 0
        %2183 = vmatmul.mubr.bf16.gmra.mxu0 %v2145
        %v2184 = vpop.f32.mrf.mxu0
        %v2185 = vadd.f32 0.0, %v2184
        %v2186 = vpop.f32.mrf.mxu0
        %v2187 = vpop.f32.mrf.mxu0
        %v2188 = vpop.f32.mrf.mxu0
        %2189 = vdwg.mxu0
        %2190 = vrot.lane.b32.xlu0 %v583, 64
        %v2191 = vpop.permute.xlu0 %2190
        %v2193 = vsel %vm1372, %v1609, 0
        %v2196 = vsel %vm1618, %v2191, 0
        %2198 = vmatprep.subr.bf16.mxu0 0
        %2199 = vmatpush1.bf16.msra.mxu0 0
        %2200 = vmatprep.subr.bf16.mxu0 0
        %2201 = vmatpush1.bf16.msra.mxu0 0
        %2202 = vmatprep.subr.bf16.mxu0 0
        %2203 = vmatpush1.bf16.msra.mxu0 0
        %2204 = vmatprep.subr.bf16.mxu0 0
        %2205 = vmatpush1.bf16.msra.mxu0 0
        %2206 = vmatprep.subr.bf16.mxu0 0
        %2207 = vmatpush1.bf16.msra.mxu0 0
        %2208 = vmatprep.subr.bf16.mxu0 0
        %2209 = vmatpush1.bf16.msra.mxu0 0
        %2210 = vmatprep.subr.bf16.mxu0 0
        %2211 = vmatpush1.bf16.msra.mxu0 0
        %2212 = vmatprep.subr.bf16.mxu0 0
        %2213 = vmatpush1.bf16.msra.mxu0 %v2196
        %2214 = vmatprep.subr.bf16.mxu0 0
        %2215 = vmatpush2.bf16.msra.mxu0 0
        %2216 = vmatprep.subr.bf16.mxu0 0
        %2217 = vmatpush2.bf16.msra.mxu0 0
        %2218 = vmatprep.subr.bf16.mxu0 0
        %2219 = vmatpush2.bf16.msra.mxu0 0
        %2220 = vmatprep.subr.bf16.mxu0 0
        %2221 = vmatpush2.bf16.msra.mxu0 0
        %2222 = vmatprep.subr.bf16.mxu0 0
        %2223 = vmatpush2.bf16.msra.mxu0 0
        %2224 = vmatprep.subr.bf16.mxu0 0
        %2225 = vmatpush2.bf16.msra.mxu0 0
        %2226 = vmatprep.subr.bf16.mxu0 0
        %2227 = vmatpush2.bf16.msra.mxu0 0
        %2228 = vmatprep.subr.bf16.mxu0 0
        %2229 = vmatpush2.bf16.msra.mxu0 0
        %2230 = vmatprep.mubr.bf16.mxu0 0
        %2231 = vmatmul.mubr.bf16.gmra.mxu0 %v2193
        %v2232 = vpop.f32.mrf.mxu0
        %v2233 = vadd.f32 0.0, %v2232
        %v2234 = vpop.f32.mrf.mxu0
        %v2235 = vpop.f32.mrf.mxu0
        %v2236 = vpop.f32.mrf.mxu0
        %2237 = vdwg.mxu0
        %2238 = vrot.lane.b32.xlu0 %v584, 64
        %v2239 = vpop.permute.xlu0 %2238
        %v2241 = vsel %vm1372, %v1610, 0
        %v2244 = vsel %vm1618, %v2239, 0
        %2246 = vmatprep.subr.bf16.mxu0 0
        %2247 = vmatpush1.bf16.msra.mxu0 0
        %2248 = vmatprep.subr.bf16.mxu0 0
        %2249 = vmatpush1.bf16.msra.mxu0 0
        %2250 = vmatprep.subr.bf16.mxu0 0
        %2251 = vmatpush1.bf16.msra.mxu0 0
        %2252 = vmatprep.subr.bf16.mxu0 0
        %2253 = vmatpush1.bf16.msra.mxu0 0
        %2254 = vmatprep.subr.bf16.mxu0 0
        %2255 = vmatpush1.bf16.msra.mxu0 0
        %2256 = vmatprep.subr.bf16.mxu0 0
        %2257 = vmatpush1.bf16.msra.mxu0 0
        %2258 = vmatprep.subr.bf16.mxu0 0
        %2259 = vmatpush1.bf16.msra.mxu0 0
        %2260 = vmatprep.subr.bf16.mxu0 0
        %2261 = vmatpush1.bf16.msra.mxu0 %v2244
        %2262 = vmatprep.subr.bf16.mxu0 0
        %2263 = vmatpush2.bf16.msra.mxu0 0
        %2264 = vmatprep.subr.bf16.mxu0 0
        %2265 = vmatpush2.bf16.msra.mxu0 0
        %2266 = vmatprep.subr.bf16.mxu0 0
        %2267 = vmatpush2.bf16.msra.mxu0 0
        %2268 = vmatprep.subr.bf16.mxu0 0
        %2269 = vmatpush2.bf16.msra.mxu0 0
        %2270 = vmatprep.subr.bf16.mxu0 0
        %2271 = vmatpush2.bf16.msra.mxu0 0
        %2272 = vmatprep.subr.bf16.mxu0 0
        %2273 = vmatpush2.bf16.msra.mxu0 0
        %2274 = vmatprep.subr.bf16.mxu0 0
        %2275 = vmatpush2.bf16.msra.mxu0 0
        %2276 = vmatprep.subr.bf16.mxu0 0
        %2277 = vmatpush2.bf16.msra.mxu0 0
        %2278 = vmatprep.mubr.bf16.mxu0 0
        %2279 = vmatmul.mubr.bf16.gmra.mxu0 %v2241
        %v2280 = vpop.f32.mrf.mxu0
        %v2281 = vadd.f32 0.0, %v2280
        %v2282 = vpop.f32.mrf.mxu0
        %v2283 = vpop.f32.mrf.mxu0
        %v2284 = vpop.f32.mrf.mxu0
        %2285 = vdwg.mxu0
        %2286 = vrot.lane.b32.xlu0 %v585, 64
        %v2287 = vpop.permute.xlu0 %2286
        %v2289 = vsel %vm1372, %v1611, 0
        %v2292 = vsel %vm1618, %v2287, 0
        %2294 = vmatprep.subr.bf16.mxu0 0
        %2295 = vmatpush1.bf16.msra.mxu0 0
        %2296 = vmatprep.subr.bf16.mxu0 0
        %2297 = vmatpush1.bf16.msra.mxu0 0
        %2298 = vmatprep.subr.bf16.mxu0 0
        %2299 = vmatpush1.bf16.msra.mxu0 0
        %2300 = vmatprep.subr.bf16.mxu0 0
        %2301 = vmatpush1.bf16.msra.mxu0 0
        %2302 = vmatprep.subr.bf16.mxu0 0
        %2303 = vmatpush1.bf16.msra.mxu0 0
        %2304 = vmatprep.subr.bf16.mxu0 0
        %2305 = vmatpush1.bf16.msra.mxu0 0
        %2306 = vmatprep.subr.bf16.mxu0 0
        %2307 = vmatpush1.bf16.msra.mxu0 0
        %2308 = vmatprep.subr.bf16.mxu0 0
        %2309 = vmatpush1.bf16.msra.mxu0 %v2292
        %2310 = vmatprep.subr.bf16.mxu0 0
        %2311 = vmatpush2.bf16.msra.mxu0 0
        %2312 = vmatprep.subr.bf16.mxu0 0
        %2313 = vmatpush2.bf16.msra.mxu0 0
        %2314 = vmatprep.subr.bf16.mxu0 0
        %2315 = vmatpush2.bf16.msra.mxu0 0
        %2316 = vmatprep.subr.bf16.mxu0 0
        %2317 = vmatpush2.bf16.msra.mxu0 0
        %2318 = vmatprep.subr.bf16.mxu0 0
        %2319 = vmatpush2.bf16.msra.mxu0 0
        %2320 = vmatprep.subr.bf16.mxu0 0
        %2321 = vmatpush2.bf16.msra.mxu0 0
        %2322 = vmatprep.subr.bf16.mxu0 0
        %2323 = vmatpush2.bf16.msra.mxu0 0
        %2324 = vmatprep.subr.bf16.mxu0 0
        %2325 = vmatpush2.bf16.msra.mxu0 0
        %2326 = vmatprep.mubr.bf16.mxu0 0
        %2327 = vmatmul.mubr.bf16.gmra.mxu0 %v2289
        %v2328 = vpop.f32.mrf.mxu0
        %v2329 = vadd.f32 0.0, %v2328
        %v2330 = vpop.f32.mrf.mxu0
        %v2331 = vpop.f32.mrf.mxu0
        %v2332 = vpop.f32.mrf.mxu0
        %2333 = vdwg.mxu0
        %2334 = vrot.lane.b32.xlu0 %v586, 64
        %v2335 = vpop.permute.xlu0 %2334
        %v2337 = vsel %vm1372, %v1612, 0
        %v2340 = vsel %vm1618, %v2335, 0
        %2342 = vmatprep.subr.bf16.mxu0 0
        %2343 = vmatpush1.bf16.msra.mxu0 0
        %2344 = vmatprep.subr.bf16.mxu0 0
        %2345 = vmatpush1.bf16.msra.mxu0 0
        %2346 = vmatprep.subr.bf16.mxu0 0
        %2347 = vmatpush1.bf16.msra.mxu0 0
        %2348 = vmatprep.subr.bf16.mxu0 0
        %2349 = vmatpush1.bf16.msra.mxu0 0
        %2350 = vmatprep.subr.bf16.mxu0 0
        %2351 = vmatpush1.bf16.msra.mxu0 0
        %2352 = vmatprep.subr.bf16.mxu0 0
        %2353 = vmatpush1.bf16.msra.mxu0 0
        %2354 = vmatprep.subr.bf16.mxu0 0
        %2355 = vmatpush1.bf16.msra.mxu0 0
        %2356 = vmatprep.subr.bf16.mxu0 0
        %2357 = vmatpush1.bf16.msra.mxu0 %v2340
        %2358 = vmatprep.subr.bf16.mxu0 0
        %2359 = vmatpush2.bf16.msra.mxu0 0
        %2360 = vmatprep.subr.bf16.mxu0 0
        %2361 = vmatpush2.bf16.msra.mxu0 0
        %2362 = vmatprep.subr.bf16.mxu0 0
        %2363 = vmatpush2.bf16.msra.mxu0 0
        %2364 = vmatprep.subr.bf16.mxu0 0
        %2365 = vmatpush2.bf16.msra.mxu0 0
        %2366 = vmatprep.subr.bf16.mxu0 0
        %2367 = vmatpush2.bf16.msra.mxu0 0
        %2368 = vmatprep.subr.bf16.mxu0 0
        %2369 = vmatpush2.bf16.msra.mxu0 0
        %2370 = vmatprep.subr.bf16.mxu0 0
        %2371 = vmatpush2.bf16.msra.mxu0 0
        %2372 = vmatprep.subr.bf16.mxu0 0
        %2373 = vmatpush2.bf16.msra.mxu0 0
        %2374 = vmatprep.mubr.bf16.mxu0 0
        %2375 = vmatmul.mubr.bf16.gmra.mxu0 %v2337
        %v2376 = vpop.f32.mrf.mxu0
        %v2377 = vadd.f32 0.0, %v2376
        %v2378 = vpop.f32.mrf.mxu0
        %v2379 = vpop.f32.mrf.mxu0
        %v2380 = vpop.f32.mrf.mxu0
        %2381 = vdwg.mxu0
        %v2382 = vadd.f32 %v1517, %v1657
        %v2383 = vadd.f32 %v1518, %v1705
        %v2384 = vadd.f32 %v1519, %v1753
        %v2385 = vadd.f32 %v1520, %v1801
        %v2386 = vadd.f32 %v1521, %v1849
        %v2387 = vadd.f32 %v1522, %v1897
        %v2388 = vadd.f32 %v1523, %v1945
        %v2389 = vadd.f32 %v1524, %v1993
        %v2390 = vadd.f32 %v1525, %v2041
        %v2391 = vadd.f32 %v1526, %v2089
        %v2392 = vadd.f32 %v1527, %v2137
        %v2393 = vadd.f32 %v1528, %v2185
        %v2394 = vadd.f32 %v1529, %v2233
        %v2395 = vadd.f32 %v1530, %v2281
        %v2396 = vadd.f32 %v1531, %v2329
        %v2397 = vadd.f32 %v1532, %v2377
        %v2398 = vrcp.pop %v1581
        %v2399 = vrcp.pop %v1582
        %v2400 = vrcp.pop %v1583
        %v2401 = vrcp.pop %v1584
        %v2402 = vrcp.pop %v1585
        %v2403 = vrcp.pop %v1586
        %v2404 = vrcp.pop %v1587
        %v2405 = vrcp.pop %v1588
        %v2406 = vrcp.pop %v1589
        %v2407 = vrcp.pop %v1590
        %v2408 = vrcp.pop %v1591
        %v2409 = vrcp.pop %v1592
        %v2410 = vrcp.pop %v1593
        %v2411 = vrcp.pop %v1594
        %v2412 = vrcp.pop %v1595
        %v2413 = vrcp.pop %v1596
        %v2414 = vmul.f32 %v2382, %v2398
        %v2415 = vmul.f32 %v2383, %v2399
        %v2416 = vmul.f32 %v2384, %v2400
        %v2417 = vmul.f32 %v2385, %v2401
        %v2418 = vmul.f32 %v2386, %v2402
        %v2419 = vmul.f32 %v2387, %v2403
        %v2420 = vmul.f32 %v2388, %v2404
        %v2421 = vmul.f32 %v2389, %v2405
        %v2422 = vmul.f32 %v2390, %v2406
        %v2423 = vmul.f32 %v2391, %v2407
        %v2424 = vmul.f32 %v2392, %v2408
        %v2425 = vmul.f32 %v2393, %v2409
        %v2426 = vmul.f32 %v2394, %v2410
        %v2427 = vmul.f32 %v2395, %v2411
        %v2428 = vmul.f32 %v2396, %v2412
        %v2429 = vmul.f32 %v2397, %v2413
        %2432 = vrot.lane.b32.xlu0 %v2416, 4
        %v2433 = vpop.permute.xlu0 %2432
        %2434 = vrot.lane.b32.xlu0 %v2417, 4
        %v2435 = vpop.permute.xlu0 %2434
        %2440 = vrot.lane.b32.xlu0 %v2418, 8
        %v2441 = vpop.permute.xlu0 %2440
        %2442 = vrot.lane.b32.xlu0 %v2419, 8
        %v2443 = vpop.permute.xlu0 %2442
        %2448 = vrot.lane.b32.xlu0 %v2420, 12
        %v2449 = vpop.permute.xlu0 %2448
        %2450 = vrot.lane.b32.xlu0 %v2421, 12
        %v2451 = vpop.permute.xlu0 %2450
        %2456 = vrot.lane.b32.xlu0 %v2422, 16
        %v2457 = vpop.permute.xlu0 %2456
        %2458 = vrot.lane.b32.xlu0 %v2423, 16
        %v2459 = vpop.permute.xlu0 %2458
        %2464 = vrot.lane.b32.xlu0 %v2424, 20
        %v2465 = vpop.permute.xlu0 %2464
        %2466 = vrot.lane.b32.xlu0 %v2425, 20
        %v2467 = vpop.permute.xlu0 %2466
        %2472 = vrot.lane.b32.xlu0 %v2426, 24
        %v2473 = vpop.permute.xlu0 %2472
        %2474 = vrot.lane.b32.xlu0 %v2427, 24
        %v2475 = vpop.permute.xlu0 %2474
        %2480 = vrot.lane.b32.xlu0 %v2428, 28
        %v2481 = vpop.permute.xlu0 %2480
        %2482 = vrot.lane.b32.xlu0 %v2429, 28
        %v2483 = vpop.permute.xlu0 %2482
        %v2486 = vsel %vm590, %v2414, %v2433
        %v2487 = vsel %vm590, %v2415, %v2435
        %v2488 = vsel %vm1372, %v2486, %v2441
        %v2489 = vsel %vm1372, %v2487, %v2443
        %vm2490 = vcmask 97280
        %v2491 = vsel %vm2490, %v2488, %v2449
        %v2492 = vsel %vm2490, %v2489, %v2451
        %vm2493 = vcmask 130048
        %v2494 = vsel %vm2493, %v2491, %v2457
        %v2495 = vsel %vm2493, %v2492, %v2459
        %vm2496 = vcmask 162816
        %v2497 = vsel %vm2496, %v2494, %v2465
        %v2498 = vsel %vm2496, %v2495, %v2467
        %vm2499 = vcmask 195584
        %v2500 = vsel %vm2499, %v2497, %v2473
        %v2501 = vsel %vm2499, %v2498, %v2475
        %vm2502 = vcmask 228352
        %v2503 = vsel %vm2502, %v2500, %v2481
        %v2504 = vsel %vm2502, %v2501, %v2483
        %v2505 = vpack.c.bf16 %v2504, %v2503
        %v2506 = vld [vmem:[%s379] sm:$0xf]
        %v2507 = vld [vmem:[%s379 + $0x4] sm:$0xf]
        %v2508 = vld [vmem:[%s379 + $0x8] sm:$0xf]
        %v2509 = vld [vmem:[%s379 + $0xc] sm:$0xf]
        %v2510 = vlaneseq
        %v2511 = vshrl.u32 %v2510, 7
        %v2512 = vsub.s32 0, %v2511
        %v2513 = vrot.slane %v458, %v2512
        %v2518 = vunpack.c.l.b16 %v2506
        %v2519 = vunpack.c.l.b16 %v2507
        %v2520 = vunpack.c.l.b16 %v2508
        %v2521 = vunpack.c.l.b16 %v2509
        %v2522 = vpack.c.b16 %v2519, %v2518
        %v2523 = vpack.c.b16 %v2521, %v2520
        %v2527 = vsel %vm482, %v2505, 0
        %2529 = vmatprep.subr.bf16.mxu0 0
        %2530 = vmatpush1.bf16.msra.mxu0 0
        %2531 = vmatprep.subr.bf16.mxu0 0
        %2532 = vmatpush1.bf16.msra.mxu0 0
        %2533 = vmatprep.subr.bf16.mxu0 0
        %2534 = vmatpush1.bf16.msra.mxu0 0
        %2535 = vmatprep.subr.bf16.mxu0 0
        %2536 = vmatpush1.bf16.msra.mxu0 0
        %2537 = vmatprep.subr.bf16.mxu0 0
        %2538 = vmatpush1.bf16.msra.mxu0 0
        %2539 = vmatprep.subr.bf16.mxu0 0
        %2540 = vmatpush1.bf16.msra.mxu0 0
        %2541 = vmatprep.subr.bf16.mxu0 0
        %2542 = vmatpush1.bf16.msra.mxu0 %v2523
        %2543 = vmatprep.subr.bf16.mxu0 0
        %2544 = vmatpush1.bf16.msra.mxu0 %v2522
        %2545 = vmatprep.subr.bf16.mxu0 0
        %2546 = vmatpush2.bf16.msra.mxu0 0
        %2547 = vmatprep.subr.bf16.mxu0 0
        %2548 = vmatpush2.bf16.msra.mxu0 0
        %2549 = vmatprep.subr.bf16.mxu0 0
        %2550 = vmatpush2.bf16.msra.mxu0 0
        %2551 = vmatprep.subr.bf16.mxu0 0
        %2552 = vmatpush2.bf16.msra.mxu0 0
        %2553 = vmatprep.subr.bf16.mxu0 0
        %2554 = vmatpush2.bf16.msra.mxu0 0
        %2555 = vmatprep.subr.bf16.mxu0 0
        %2556 = vmatpush2.bf16.msra.mxu0 0
        %2557 = vmatprep.subr.bf16.mxu0 0
        %2558 = vmatpush2.bf16.msra.mxu0 0
        %2559 = vmatprep.subr.bf16.mxu0 0
        %2560 = vmatpush2.bf16.msra.mxu0 0
        %2561 = vmatprep.mubr.bf16.mxu0 0
        %2562 = vmatmul.mubr.bf16.gmra.mxu0 %v2527
        %v2563 = vpop.f32.mrf.mxu0
        %v2564 = vadd.f32 %v2513, %v2563
        %v2565 = vpop.f32.mrf.mxu0
        %v2566 = vpop.f32.mrf.mxu0
        %v2567 = vadd.f32 %v2513, %v2566
        %v2568 = vpop.f32.mrf.mxu0
        %2569 = vdwg.mxu0
        %v2570 = vadd.f32 %v455, %v2564
        %v2571 = vadd.f32 %v456, %v2567
        %v2572 = vsel %vm482, %v2570, 0.0
        %2573 = vadd.xlane.f32.xlu0 %v2572
        %v2574 = vpop.xlane.xlu0 %2573
        %v2575 = vsel %vm482, %v2571, 0.0
        %2576 = vadd.xlane.f32.xlu0 %v2575
        %v2577 = vpop.xlane.xlu0 %2576
        %v2578 = vrcp.pop 32.0
        %v2579 = vmul.f32 %v2574, %v2578
        %v2580 = vmul.f32 %v2577, %v2578
        %v2581 = vsub.f32 %v2570, %v2579
        %v2582 = vsub.f32 %v2571, %v2580
        %v2583 = vmul.f32 %v2581, %v2581
        %v2584 = vmul.f32 %v2582, %v2582
        %v2585 = vsel %vm482, %v2583, 0.0
        %2586 = vadd.xlane.f32.xlu0 %v2585
        %v2587 = vpop.xlane.xlu0 %2586
        %v2588 = vsel %vm482, %v2584, 0.0
        %2589 = vadd.xlane.f32.xlu0 %v2588
        %v2590 = vpop.xlane.xlu0 %2589
        %v2591 = vmul.f32 %v2587, %v2578
        %v2592 = vmul.f32 %v2590, %v2578
        %v2593 = vadd.f32 %v2591, 1e-05
        %v2594 = vadd.f32 %v2592, 1e-05
        %v2595 = vrsqrt.pop %v2593
        %v2596 = vrsqrt.pop %v2594
        %v2597 = vmul.f32 %v2581, %v2595
        %v2598 = vmul.f32 %v2582, %v2596
        %v2599 = vlaneseq
        %v2600 = vshrl.u32 %v2599, 7
        %v2601 = vsub.s32 1, %v2600
        %v2602 = vrot.slane %v458, %v2601
        %v2603 = vmul.f32 %v2597, %v2602
        %v2604 = vmul.f32 %v2598, %v2602
        %v2605 = vlaneseq
        %v2606 = vshrl.u32 %v2605, 7
        %v2607 = vsub.s32 2, %v2606
        %v2608 = vrot.slane %v458, %v2607
        %v2609 = vadd.f32 %v2603, %v2608
        %v2610 = vadd.f32 %v2604, %v2608
        %v2611 = vpack.c.bf16 %v2610, %v2609
        %v2612 = vld [vmem:[%s384] sm:$0xff]
        %v2613 = vld [vmem:[%s384 + $0x8] sm:$0xff]
        %v2614 = vld [vmem:[%s384 + $0x10] sm:$0xff]
        %v2615 = vld [vmem:[%s384 + $0x18] sm:$0xff]
        %v2616 = vld [vmem:[%s384 + $0x20] sm:$0xff]
        %v2617 = vld [vmem:[%s384 + $0x28] sm:$0xff]
        %v2618 = vld [vmem:[%s384 + $0x30] sm:$0xff]
        %v2619 = vld [vmem:[%s384 + $0x38] sm:$0xff]
        %v2620 = vld [vmem:[%s384 + $0x40] sm:$0xff]
        %v2621 = vld [vmem:[%s384 + $0x48] sm:$0xff]
        %v2622 = vld [vmem:[%s384 + $0x50] sm:$0xff]
        %v2623 = vld [vmem:[%s384 + $0x58] sm:$0xff]
        %v2624 = vld [vmem:[%s384 + $0x60] sm:$0xff]
        %v2625 = vld [vmem:[%s384 + $0x68] sm:$0xff]
        %v2626 = vld [vmem:[%s384 + $0x70] sm:$0xff]
        %v2627 = vld [vmem:[%s384 + $0x78] sm:$0xff]
        %v2628 = vld [vmem:[%s384 + $0x80] sm:$0xff]
        %v2629 = vld [vmem:[%s384 + $0x88] sm:$0xff]
        %v2630 = vld [vmem:[%s384 + $0x90] sm:$0xff]
        %v2631 = vld [vmem:[%s384 + $0x98] sm:$0xff]
        %v2632 = vld [vmem:[%s384 + $0xa0] sm:$0xff]
        %v2633 = vld [vmem:[%s384 + $0xa8] sm:$0xff]
        %v2634 = vld [vmem:[%s384 + $0xb0] sm:$0xff]
        %v2635 = vld [vmem:[%s384 + $0xb8] sm:$0xff]
        %v2636 = vld [vmem:[%s384 + $0xc0] sm:$0xff]
        %v2637 = vld [vmem:[%s384 + $0xc8] sm:$0xff]
        %v2638 = vld [vmem:[%s384 + $0xd0] sm:$0xff]
        %v2639 = vld [vmem:[%s384 + $0xd8] sm:$0xff]
        %v2640 = vld [vmem:[%s384 + $0xe0] sm:$0xff]
        %v2641 = vld [vmem:[%s384 + $0xe8] sm:$0xff]
        %v2642 = vld [vmem:[%s384 + $0xf0] sm:$0xff]
        %v2643 = vld [vmem:[%s384 + $0xf8] sm:$0xff]
        %v2644 = vld [vmem:[%s400] sm:$0xff]
        %v2645 = vld [vmem:[%s400 + $0x8] sm:$0xff]
        %v2648 = vlaneseq
        %v2649 = vshrl.u32 %v2648, 7
        %v2650 = vsub.s32 0, %v2649
        %v2651 = vrot.slane %v2644, %v2650
        %v2652 = vlaneseq
        %v2653 = vshrl.u32 %v2652, 7
        %v2654 = vsub.s32 1, %v2653
        %v2655 = vrot.slane %v2644, %v2654
        %v2656 = vlaneseq
        %v2657 = vshrl.u32 %v2656, 7
        %v2658 = vsub.s32 2, %v2657
        %v2659 = vrot.slane %v2644, %v2658
        %v2660 = vlaneseq
        %v2661 = vshrl.u32 %v2660, 7
        %v2662 = vsub.s32 3, %v2661
        %v2663 = vrot.slane %v2644, %v2662
        %v2664 = vlaneseq
        %v2665 = vshrl.u32 %v2664, 7
        %v2666 = vsub.s32 4, %v2665
        %v2667 = vrot.slane %v2644, %v2666
        %v2668 = vlaneseq
        %v2669 = vshrl.u32 %v2668, 7
        %v2670 = vsub.s32 5, %v2669
        %v2671 = vrot.slane %v2644, %v2670
        %v2672 = vlaneseq
        %v2673 = vshrl.u32 %v2672, 7
        %v2674 = vsub.s32 6, %v2673
        %v2675 = vrot.slane %v2644, %v2674
        %v2676 = vlaneseq
        %v2677 = vshrl.u32 %v2676, 7
        %v2678 = vsub.s32 7, %v2677
        %v2679 = vrot.slane %v2644, %v2678
        %v2680 = vlaneseq
        %v2681 = vshrl.u32 %v2680, 7
        %v2682 = vsub.s32 0, %v2681
        %v2683 = vrot.slane %v2645, %v2682
        %v2684 = vlaneseq
        %v2685 = vshrl.u32 %v2684, 7
        %v2686 = vsub.s32 1, %v2685
        %v2687 = vrot.slane %v2645, %v2686
        %v2688 = vlaneseq
        %v2689 = vshrl.u32 %v2688, 7
        %v2690 = vsub.s32 2, %v2689
        %v2691 = vrot.slane %v2645, %v2690
        %v2692 = vlaneseq
        %v2693 = vshrl.u32 %v2692, 7
        %v2694 = vsub.s32 3, %v2693
        %v2695 = vrot.slane %v2645, %v2694
        %v2696 = vlaneseq
        %v2697 = vshrl.u32 %v2696, 7
        %v2698 = vsub.s32 4, %v2697
        %v2699 = vrot.slane %v2645, %v2698
        %v2700 = vlaneseq
        %v2701 = vshrl.u32 %v2700, 7
        %v2702 = vsub.s32 5, %v2701
        %v2703 = vrot.slane %v2645, %v2702
        %v2704 = vlaneseq
        %v2705 = vshrl.u32 %v2704, 7
        %v2706 = vsub.s32 6, %v2705
        %v2707 = vrot.slane %v2645, %v2706
        %v2708 = vlaneseq
        %v2709 = vshrl.u32 %v2708, 7
        %v2710 = vsub.s32 7, %v2709
        %v2711 = vrot.slane %v2645, %v2710
        %v2760 = vunpack.c.l.b16 %v2612
        %v2761 = vunpack.c.h.b16 %v2612
        %v2762 = vunpack.c.l.b16 %v2613
        %v2763 = vunpack.c.h.b16 %v2613
        %v2764 = vunpack.c.l.b16 %v2614
        %v2765 = vunpack.c.h.b16 %v2614
        %v2766 = vunpack.c.l.b16 %v2615
        %v2767 = vunpack.c.h.b16 %v2615
        %v2768 = vunpack.c.l.b16 %v2616
        %v2769 = vunpack.c.h.b16 %v2616
        %v2770 = vunpack.c.l.b16 %v2617
        %v2771 = vunpack.c.h.b16 %v2617
        %v2772 = vunpack.c.l.b16 %v2618
        %v2773 = vunpack.c.h.b16 %v2618
        %v2774 = vunpack.c.l.b16 %v2619
        %v2775 = vunpack.c.h.b16 %v2619
        %v2776 = vunpack.c.l.b16 %v2620
        %v2777 = vunpack.c.h.b16 %v2620
        %v2778 = vunpack.c.l.b16 %v2621
        %v2779 = vunpack.c.h.b16 %v2621
        %v2780 = vunpack.c.l.b16 %v2622
        %v2781 = vunpack.c.h.b16 %v2622
        %v2782 = vunpack.c.l.b16 %v2623
        %v2783 = vunpack.c.h.b16 %v2623
        %v2784 = vunpack.c.l.b16 %v2624
        %v2785 = vunpack.c.h.b16 %v2624
        %v2786 = vunpack.c.l.b16 %v2625
        %v2787 = vunpack.c.h.b16 %v2625
        %v2788 = vunpack.c.l.b16 %v2626
        %v2789 = vunpack.c.h.b16 %v2626
        %v2790 = vunpack.c.l.b16 %v2627
        %v2791 = vunpack.c.h.b16 %v2627
        %v2792 = vunpack.c.l.b16 %v2628
        %v2793 = vunpack.c.h.b16 %v2628
        %v2794 = vunpack.c.l.b16 %v2629
        %v2795 = vunpack.c.h.b16 %v2629
        %v2796 = vunpack.c.l.b16 %v2630
        %v2797 = vunpack.c.h.b16 %v2630
        %v2798 = vunpack.c.l.b16 %v2631
        %v2799 = vunpack.c.h.b16 %v2631
        %v2800 = vunpack.c.l.b16 %v2632
        %v2801 = vunpack.c.h.b16 %v2632
        %v2802 = vunpack.c.l.b16 %v2633
        %v2803 = vunpack.c.h.b16 %v2633
        %v2804 = vunpack.c.l.b16 %v2634
        %v2805 = vunpack.c.h.b16 %v2634
        %v2806 = vunpack.c.l.b16 %v2635
        %v2807 = vunpack.c.h.b16 %v2635
        %v2808 = vunpack.c.l.b16 %v2636
        %v2809 = vunpack.c.h.b16 %v2636
        %v2810 = vunpack.c.l.b16 %v2637
        %v2811 = vunpack.c.h.b16 %v2637
        %v2812 = vunpack.c.l.b16 %v2638
        %v2813 = vunpack.c.h.b16 %v2638
        %v2814 = vunpack.c.l.b16 %v2639
        %v2815 = vunpack.c.h.b16 %v2639
        %v2816 = vunpack.c.l.b16 %v2640
        %v2817 = vunpack.c.h.b16 %v2640
        %v2818 = vunpack.c.l.b16 %v2641
        %v2819 = vunpack.c.h.b16 %v2641
        %v2820 = vunpack.c.l.b16 %v2642
        %v2821 = vunpack.c.h.b16 %v2642
        %v2822 = vunpack.c.l.b16 %v2643
        %v2823 = vunpack.c.h.b16 %v2643
        %v2824 = vpack.c.b16 %v2776, %v2760
        %v2825 = vpack.c.b16 %v2777, %v2761
        %v2826 = vpack.c.b16 %v2778, %v2762
        %v2827 = vpack.c.b16 %v2779, %v2763
        %v2828 = vpack.c.b16 %v2780, %v2764
        %v2829 = vpack.c.b16 %v2781, %v2765
        %v2830 = vpack.c.b16 %v2782, %v2766
        %v2831 = vpack.c.b16 %v2783, %v2767
        %v2832 = vpack.c.b16 %v2784, %v2768
        %v2833 = vpack.c.b16 %v2785, %v2769
        %v2834 = vpack.c.b16 %v2786, %v2770
        %v2835 = vpack.c.b16 %v2787, %v2771
        %v2836 = vpack.c.b16 %v2788, %v2772
        %v2837 = vpack.c.b16 %v2789, %v2773
        %v2838 = vpack.c.b16 %v2790, %v2774
        %v2839 = vpack.c.b16 %v2791, %v2775
        %v2840 = vpack.c.b16 %v2808, %v2792
        %v2841 = vpack.c.b16 %v2809, %v2793
        %v2842 = vpack.c.b16 %v2810, %v2794
        %v2843 = vpack.c.b16 %v2811, %v2795
        %v2844 = vpack.c.b16 %v2812, %v2796
        %v2845 = vpack.c.b16 %v2813, %v2797
        %v2846 = vpack.c.b16 %v2814, %v2798
        %v2847 = vpack.c.b16 %v2815, %v2799
        %v2848 = vpack.c.b16 %v2816, %v2800
        %v2849 = vpack.c.b16 %v2817, %v2801
        %v2850 = vpack.c.b16 %v2818, %v2802
        %v2851 = vpack.c.b16 %v2819, %v2803
        %v2852 = vpack.c.b16 %v2820, %v2804
        %v2853 = vpack.c.b16 %v2821, %v2805
        %v2854 = vpack.c.b16 %v2822, %v2806
        %v2855 = vpack.c.b16 %v2823, %v2807
        %v2889 = vsel %vm482, %v2611, 0
        %2891 = vmatprep.subr.bf16.mxu0 0
        %2892 = vmatpush1.bf16.msra.mxu0 0
        %2893 = vmatprep.subr.bf16.mxu0 0
        %2894 = vmatpush1.bf16.msra.mxu0 0
        %2895 = vmatprep.subr.bf16.mxu0 0
        %2896 = vmatpush1.bf16.msra.mxu0 0
        %2897 = vmatprep.subr.bf16.mxu0 0
        %2898 = vmatpush1.bf16.msra.mxu0 0
        %2899 = vmatprep.subr.bf16.mxu0 0
        %2900 = vmatpush1.bf16.msra.mxu0 0
        %2901 = vmatprep.subr.bf16.mxu0 0
        %2902 = vmatpush1.bf16.msra.mxu0 0
        %2903 = vmatprep.subr.bf16.mxu0 %v2841
        %2904 = vmatpush1.bf16.msra.mxu0 %v2840
        %2905 = vmatprep.subr.bf16.mxu0 %v2825
        %2906 = vmatpush1.bf16.msra.mxu0 %v2824
        %2907 = vmatprep.subr.bf16.mxu0 0
        %2908 = vmatpush2.bf16.msra.mxu0 0
        %2909 = vmatprep.subr.bf16.mxu0 0
        %2910 = vmatpush2.bf16.msra.mxu0 0
        %2911 = vmatprep.subr.bf16.mxu0 0
        %2912 = vmatpush2.bf16.msra.mxu0 0
        %2913 = vmatprep.subr.bf16.mxu0 0
        %2914 = vmatpush2.bf16.msra.mxu0 0
        %2915 = vmatprep.subr.bf16.mxu0 0
        %2916 = vmatpush2.bf16.msra.mxu0 0
        %2917 = vmatprep.subr.bf16.mxu0 0
        %2918 = vmatpush2.bf16.msra.mxu0 0
        %2919 = vmatprep.subr.bf16.mxu0 0
        %2920 = vmatpush2.bf16.msra.mxu0 0
        %2921 = vmatprep.subr.bf16.mxu0 0
        %2922 = vmatpush2.bf16.msra.mxu0 0
        %2923 = vmatprep.mubr.bf16.mxu0 0
        %2924 = vmatmul.mubr.bf16.gmra.mxu0 %v2889
        %v2925 = vpop.f32.mrf.mxu0
        %v2926 = vadd.f32 %v2651, %v2925
        %v2927 = vpop.f32.mrf.mxu0
        %v2928 = vadd.f32 %v2655, %v2927
        %v2929 = vpop.f32.mrf.mxu0
        %v2930 = vadd.f32 %v2651, %v2929
        %v2931 = vpop.f32.mrf.mxu0
        %v2932 = vadd.f32 %v2655, %v2931
        %2933 = vdwg.mxu0
        %2934 = vmatprep.subr.bf16.mxu0 0
        %2935 = vmatpush1.bf16.msra.mxu0 0
        %2936 = vmatprep.subr.bf16.mxu0 0
        %2937 = vmatpush1.bf16.msra.mxu0 0
        %2938 = vmatprep.subr.bf16.mxu0 0
        %2939 = vmatpush1.bf16.msra.mxu0 0
        %2940 = vmatprep.subr.bf16.mxu0 0
        %2941 = vmatpush1.bf16.msra.mxu0 0
        %2942 = vmatprep.subr.bf16.mxu0 0
        %2943 = vmatpush1.bf16.msra.mxu0 0
        %2944 = vmatprep.subr.bf16.mxu0 0
        %2945 = vmatpush1.bf16.msra.mxu0 0
        %2946 = vmatprep.subr.bf16.mxu0 %v2843
        %2947 = vmatpush1.bf16.msra.mxu0 %v2842
        %2948 = vmatprep.subr.bf16.mxu0 %v2827
        %2949 = vmatpush1.bf16.msra.mxu0 %v2826
        %2950 = vmatprep.subr.bf16.mxu0 0
        %2951 = vmatpush2.bf16.msra.mxu0 0
        %2952 = vmatprep.subr.bf16.mxu0 0
        %2953 = vmatpush2.bf16.msra.mxu0 0
        %2954 = vmatprep.subr.bf16.mxu0 0
        %2955 = vmatpush2.bf16.msra.mxu0 0
        %2956 = vmatprep.subr.bf16.mxu0 0
        %2957 = vmatpush2.bf16.msra.mxu0 0
        %2958 = vmatprep.subr.bf16.mxu0 0
        %2959 = vmatpush2.bf16.msra.mxu0 0
        %2960 = vmatprep.subr.bf16.mxu0 0
        %2961 = vmatpush2.bf16.msra.mxu0 0
        %2962 = vmatprep.subr.bf16.mxu0 0
        %2963 = vmatpush2.bf16.msra.mxu0 0
        %2964 = vmatprep.subr.bf16.mxu0 0
        %2965 = vmatpush2.bf16.msra.mxu0 0
        %2966 = vmatprep.mubr.bf16.mxu0 0
        %2967 = vmatmul.mubr.bf16.gmra.mxu0 %v2889
        %v2968 = vpop.f32.mrf.mxu0
        %v2969 = vadd.f32 %v2659, %v2968
        %v2970 = vpop.f32.mrf.mxu0
        %v2971 = vadd.f32 %v2663, %v2970
        %v2972 = vpop.f32.mrf.mxu0
        %v2973 = vadd.f32 %v2659, %v2972
        %v2974 = vpop.f32.mrf.mxu0
        %v2975 = vadd.f32 %v2663, %v2974
        %2976 = vdwg.mxu0
        %2977 = vmatprep.subr.bf16.mxu0 0
        %2978 = vmatpush1.bf16.msra.mxu0 0
        %2979 = vmatprep.subr.bf16.mxu0 0
        %2980 = vmatpush1.bf16.msra.mxu0 0
        %2981 = vmatprep.subr.bf16.mxu0 0
        %2982 = vmatpush1.bf16.msra.mxu0 0
        %2983 = vmatprep.subr.bf16.mxu0 0
        %2984 = vmatpush1.bf16.msra.mxu0 0
        %2985 = vmatprep.subr.bf16.mxu0 0
        %2986 = vmatpush1.bf16.msra.mxu0 0
        %2987 = vmatprep.subr.bf16.mxu0 0
        %2988 = vmatpush1.bf16.msra.mxu0 0
        %2989 = vmatprep.subr.bf16.mxu0 %v2845
        %2990 = vmatpush1.bf16.msra.mxu0 %v2844
        %2991 = vmatprep.subr.bf16.mxu0 %v2829
        %2992 = vmatpush1.bf16.msra.mxu0 %v2828
        %2993 = vmatprep.subr.bf16.mxu0 0
        %2994 = vmatpush2.bf16.msra.mxu0 0
        %2995 = vmatprep.subr.bf16.mxu0 0
        %2996 = vmatpush2.bf16.msra.mxu0 0
        %2997 = vmatprep.subr.bf16.mxu0 0
        %2998 = vmatpush2.bf16.msra.mxu0 0
        %2999 = vmatprep.subr.bf16.mxu0 0
        %3000 = vmatpush2.bf16.msra.mxu0 0
        %3001 = vmatprep.subr.bf16.mxu0 0
        %3002 = vmatpush2.bf16.msra.mxu0 0
        %3003 = vmatprep.subr.bf16.mxu0 0
        %3004 = vmatpush2.bf16.msra.mxu0 0
        %3005 = vmatprep.subr.bf16.mxu0 0
        %3006 = vmatpush2.bf16.msra.mxu0 0
        %3007 = vmatprep.subr.bf16.mxu0 0
        %3008 = vmatpush2.bf16.msra.mxu0 0
        %3009 = vmatprep.mubr.bf16.mxu0 0
        %3010 = vmatmul.mubr.bf16.gmra.mxu0 %v2889
        %v3011 = vpop.f32.mrf.mxu0
        %v3012 = vadd.f32 %v2667, %v3011
        %v3013 = vpop.f32.mrf.mxu0
        %v3014 = vadd.f32 %v2671, %v3013
        %v3015 = vpop.f32.mrf.mxu0
        %v3016 = vadd.f32 %v2667, %v3015
        %v3017 = vpop.f32.mrf.mxu0
        %v3018 = vadd.f32 %v2671, %v3017
        %3019 = vdwg.mxu0
        %3020 = vmatprep.subr.bf16.mxu0 0
        %3021 = vmatpush1.bf16.msra.mxu0 0
        %3022 = vmatprep.subr.bf16.mxu0 0
        %3023 = vmatpush1.bf16.msra.mxu0 0
        %3024 = vmatprep.subr.bf16.mxu0 0
        %3025 = vmatpush1.bf16.msra.mxu0 0
        %3026 = vmatprep.subr.bf16.mxu0 0
        %3027 = vmatpush1.bf16.msra.mxu0 0
        %3028 = vmatprep.subr.bf16.mxu0 0
        %3029 = vmatpush1.bf16.msra.mxu0 0
        %3030 = vmatprep.subr.bf16.mxu0 0
        %3031 = vmatpush1.bf16.msra.mxu0 0
        %3032 = vmatprep.subr.bf16.mxu0 %v2847
        %3033 = vmatpush1.bf16.msra.mxu0 %v2846
        %3034 = vmatprep.subr.bf16.mxu0 %v2831
        %3035 = vmatpush1.bf16.msra.mxu0 %v2830
        %3036 = vmatprep.subr.bf16.mxu0 0
        %3037 = vmatpush2.bf16.msra.mxu0 0
        %3038 = vmatprep.subr.bf16.mxu0 0
        %3039 = vmatpush2.bf16.msra.mxu0 0
        %3040 = vmatprep.subr.bf16.mxu0 0
        %3041 = vmatpush2.bf16.msra.mxu0 0
        %3042 = vmatprep.subr.bf16.mxu0 0
        %3043 = vmatpush2.bf16.msra.mxu0 0
        %3044 = vmatprep.subr.bf16.mxu0 0
        %3045 = vmatpush2.bf16.msra.mxu0 0
        %3046 = vmatprep.subr.bf16.mxu0 0
        %3047 = vmatpush2.bf16.msra.mxu0 0
        %3048 = vmatprep.subr.bf16.mxu0 0
        %3049 = vmatpush2.bf16.msra.mxu0 0
        %3050 = vmatprep.subr.bf16.mxu0 0
        %3051 = vmatpush2.bf16.msra.mxu0 0
        %3052 = vmatprep.mubr.bf16.mxu0 0
        %3053 = vmatmul.mubr.bf16.gmra.mxu0 %v2889
        %v3054 = vpop.f32.mrf.mxu0
        %v3055 = vadd.f32 %v2675, %v3054
        %v3056 = vpop.f32.mrf.mxu0
        %v3057 = vadd.f32 %v2679, %v3056
        %v3058 = vpop.f32.mrf.mxu0
        %v3059 = vadd.f32 %v2675, %v3058
        %v3060 = vpop.f32.mrf.mxu0
        %v3061 = vadd.f32 %v2679, %v3060
        %3062 = vdwg.mxu0
        %3063 = vmatprep.subr.bf16.mxu0 0
        %3064 = vmatpush1.bf16.msra.mxu0 0
        %3065 = vmatprep.subr.bf16.mxu0 0
        %3066 = vmatpush1.bf16.msra.mxu0 0
        %3067 = vmatprep.subr.bf16.mxu0 0
        %3068 = vmatpush1.bf16.msra.mxu0 0
        %3069 = vmatprep.subr.bf16.mxu0 0
        %3070 = vmatpush1.bf16.msra.mxu0 0
        %3071 = vmatprep.subr.bf16.mxu0 0
        %3072 = vmatpush1.bf16.msra.mxu0 0
        %3073 = vmatprep.subr.bf16.mxu0 0
        %3074 = vmatpush1.bf16.msra.mxu0 0
        %3075 = vmatprep.subr.bf16.mxu0 %v2849
        %3076 = vmatpush1.bf16.msra.mxu0 %v2848
        %3077 = vmatprep.subr.bf16.mxu0 %v2833
        %3078 = vmatpush1.bf16.msra.mxu0 %v2832
        %3079 = vmatprep.subr.bf16.mxu0 0
        %3080 = vmatpush2.bf16.msra.mxu0 0
        %3081 = vmatprep.subr.bf16.mxu0 0
        %3082 = vmatpush2.bf16.msra.mxu0 0
        %3083 = vmatprep.subr.bf16.mxu0 0
        %3084 = vmatpush2.bf16.msra.mxu0 0
        %3085 = vmatprep.subr.bf16.mxu0 0
        %3086 = vmatpush2.bf16.msra.mxu0 0
        %3087 = vmatprep.subr.bf16.mxu0 0
        %3088 = vmatpush2.bf16.msra.mxu0 0
        %3089 = vmatprep.subr.bf16.mxu0 0
        %3090 = vmatpush2.bf16.msra.mxu0 0
        %3091 = vmatprep.subr.bf16.mxu0 0
        %3092 = vmatpush2.bf16.msra.mxu0 0
        %3093 = vmatprep.subr.bf16.mxu0 0
        %3094 = vmatpush2.bf16.msra.mxu0 0
        %3095 = vmatprep.mubr.bf16.mxu0 0
        %3096 = vmatmul.mubr.bf16.gmra.mxu0 %v2889
        %v3097 = vpop.f32.mrf.mxu0
        %v3098 = vadd.f32 %v2683, %v3097
        %v3099 = vpop.f32.mrf.mxu0
        %v3100 = vadd.f32 %v2687, %v3099
        %v3101 = vpop.f32.mrf.mxu0
        %v3102 = vadd.f32 %v2683, %v3101
        %v3103 = vpop.f32.mrf.mxu0
        %v3104 = vadd.f32 %v2687, %v3103
        %3105 = vdwg.mxu0
        %3106 = vmatprep.subr.bf16.mxu0 0
        %3107 = vmatpush1.bf16.msra.mxu0 0
        %3108 = vmatprep.subr.bf16.mxu0 0
        %3109 = vmatpush1.bf16.msra.mxu0 0
        %3110 = vmatprep.subr.bf16.mxu0 0
        %3111 = vmatpush1.bf16.msra.mxu0 0
        %3112 = vmatprep.subr.bf16.mxu0 0
        %3113 = vmatpush1.bf16.msra.mxu0 0
        %3114 = vmatprep.subr.bf16.mxu0 0
        %3115 = vmatpush1.bf16.msra.mxu0 0
        %3116 = vmatprep.subr.bf16.mxu0 0
        %3117 = vmatpush1.bf16.msra.mxu0 0
        %3118 = vmatprep.subr.bf16.mxu0 %v2851
        %3119 = vmatpush1.bf16.msra.mxu0 %v2850
        %3120 = vmatprep.subr.bf16.mxu0 %v2835
        %3121 = vmatpush1.bf16.msra.mxu0 %v2834
        %3122 = vmatprep.subr.bf16.mxu0 0
        %3123 = vmatpush2.bf16.msra.mxu0 0
        %3124 = vmatprep.subr.bf16.mxu0 0
        %3125 = vmatpush2.bf16.msra.mxu0 0
        %3126 = vmatprep.subr.bf16.mxu0 0
        %3127 = vmatpush2.bf16.msra.mxu0 0
        %3128 = vmatprep.subr.bf16.mxu0 0
        %3129 = vmatpush2.bf16.msra.mxu0 0
        %3130 = vmatprep.subr.bf16.mxu0 0
        %3131 = vmatpush2.bf16.msra.mxu0 0
        %3132 = vmatprep.subr.bf16.mxu0 0
        %3133 = vmatpush2.bf16.msra.mxu0 0
        %3134 = vmatprep.subr.bf16.mxu0 0
        %3135 = vmatpush2.bf16.msra.mxu0 0
        %3136 = vmatprep.subr.bf16.mxu0 0
        %3137 = vmatpush2.bf16.msra.mxu0 0
        %3138 = vmatprep.mubr.bf16.mxu0 0
        %3139 = vmatmul.mubr.bf16.gmra.mxu0 %v2889
        %v3140 = vpop.f32.mrf.mxu0
        %v3141 = vadd.f32 %v2691, %v3140
        %v3142 = vpop.f32.mrf.mxu0
        %v3143 = vadd.f32 %v2695, %v3142
        %v3144 = vpop.f32.mrf.mxu0
        %v3145 = vadd.f32 %v2691, %v3144
        %v3146 = vpop.f32.mrf.mxu0
        %v3147 = vadd.f32 %v2695, %v3146
        %3148 = vdwg.mxu0
        %3149 = vmatprep.subr.bf16.mxu0 0
        %3150 = vmatpush1.bf16.msra.mxu0 0
        %3151 = vmatprep.subr.bf16.mxu0 0
        %3152 = vmatpush1.bf16.msra.mxu0 0
        %3153 = vmatprep.subr.bf16.mxu0 0
        %3154 = vmatpush1.bf16.msra.mxu0 0
        %3155 = vmatprep.subr.bf16.mxu0 0
        %3156 = vmatpush1.bf16.msra.mxu0 0
        %3157 = vmatprep.subr.bf16.mxu0 0
        %3158 = vmatpush1.bf16.msra.mxu0 0
        %3159 = vmatprep.subr.bf16.mxu0 0
        %3160 = vmatpush1.bf16.msra.mxu0 0
        %3161 = vmatprep.subr.bf16.mxu0 %v2853
        %3162 = vmatpush1.bf16.msra.mxu0 %v2852
        %3163 = vmatprep.subr.bf16.mxu0 %v2837
        %3164 = vmatpush1.bf16.msra.mxu0 %v2836
        %3165 = vmatprep.subr.bf16.mxu0 0
        %3166 = vmatpush2.bf16.msra.mxu0 0
        %3167 = vmatprep.subr.bf16.mxu0 0
        %3168 = vmatpush2.bf16.msra.mxu0 0
        %3169 = vmatprep.subr.bf16.mxu0 0
        %3170 = vmatpush2.bf16.msra.mxu0 0
        %3171 = vmatprep.subr.bf16.mxu0 0
        %3172 = vmatpush2.bf16.msra.mxu0 0
        %3173 = vmatprep.subr.bf16.mxu0 0
        %3174 = vmatpush2.bf16.msra.mxu0 0
        %3175 = vmatprep.subr.bf16.mxu0 0
        %3176 = vmatpush2.bf16.msra.mxu0 0
        %3177 = vmatprep.subr.bf16.mxu0 0
        %3178 = vmatpush2.bf16.msra.mxu0 0
        %3179 = vmatprep.subr.bf16.mxu0 0
        %3180 = vmatpush2.bf16.msra.mxu0 0
        %3181 = vmatprep.mubr.bf16.mxu0 0
        %3182 = vmatmul.mubr.bf16.gmra.mxu0 %v2889
        %v3183 = vpop.f32.mrf.mxu0
        %v3184 = vadd.f32 %v2699, %v3183
        %v3185 = vpop.f32.mrf.mxu0
        %v3186 = vadd.f32 %v2703, %v3185
        %v3187 = vpop.f32.mrf.mxu0
        %v3188 = vadd.f32 %v2699, %v3187
        %v3189 = vpop.f32.mrf.mxu0
        %v3190 = vadd.f32 %v2703, %v3189
        %3191 = vdwg.mxu0
        %3192 = vmatprep.subr.bf16.mxu0 0
        %3193 = vmatpush1.bf16.msra.mxu0 0
        %3194 = vmatprep.subr.bf16.mxu0 0
        %3195 = vmatpush1.bf16.msra.mxu0 0
        %3196 = vmatprep.subr.bf16.mxu0 0
        %3197 = vmatpush1.bf16.msra.mxu0 0
        %3198 = vmatprep.subr.bf16.mxu0 0
        %3199 = vmatpush1.bf16.msra.mxu0 0
        %3200 = vmatprep.subr.bf16.mxu0 0
        %3201 = vmatpush1.bf16.msra.mxu0 0
        %3202 = vmatprep.subr.bf16.mxu0 0
        %3203 = vmatpush1.bf16.msra.mxu0 0
        %3204 = vmatprep.subr.bf16.mxu0 %v2855
        %3205 = vmatpush1.bf16.msra.mxu0 %v2854
        %3206 = vmatprep.subr.bf16.mxu0 %v2839
        %3207 = vmatpush1.bf16.msra.mxu0 %v2838
        %3208 = vmatprep.subr.bf16.mxu0 0
        %3209 = vmatpush2.bf16.msra.mxu0 0
        %3210 = vmatprep.subr.bf16.mxu0 0
        %3211 = vmatpush2.bf16.msra.mxu0 0
        %3212 = vmatprep.subr.bf16.mxu0 0
        %3213 = vmatpush2.bf16.msra.mxu0 0
        %3214 = vmatprep.subr.bf16.mxu0 0
        %3215 = vmatpush2.bf16.msra.mxu0 0
        %3216 = vmatprep.subr.bf16.mxu0 0
        %3217 = vmatpush2.bf16.msra.mxu0 0
        %3218 = vmatprep.subr.bf16.mxu0 0
        %3219 = vmatpush2.bf16.msra.mxu0 0
        %3220 = vmatprep.subr.bf16.mxu0 0
        %3221 = vmatpush2.bf16.msra.mxu0 0
        %3222 = vmatprep.subr.bf16.mxu0 0
        %3223 = vmatpush2.bf16.msra.mxu0 0
        %3224 = vmatprep.mubr.bf16.mxu0 0
        %3225 = vmatmul.mubr.bf16.gmra.mxu0 %v2889
        %v3226 = vpop.f32.mrf.mxu0
        %v3227 = vadd.f32 %v2707, %v3226
        %v3228 = vpop.f32.mrf.mxu0
        %v3229 = vadd.f32 %v2711, %v3228
        %v3230 = vpop.f32.mrf.mxu0
        %v3231 = vadd.f32 %v2707, %v3230
        %v3232 = vpop.f32.mrf.mxu0
        %v3233 = vadd.f32 %v2711, %v3232
        %3234 = vdwg.mxu0
        %v3235 = vmax.f32 %v2926, 0.0
        %v3236 = vmax.f32 %v2928, 0.0
        %v3237 = vmax.f32 %v2969, 0.0
        %v3238 = vmax.f32 %v2971, 0.0
        %v3239 = vmax.f32 %v3012, 0.0
        %v3240 = vmax.f32 %v3014, 0.0
        %v3241 = vmax.f32 %v3055, 0.0
        %v3242 = vmax.f32 %v3057, 0.0
        %v3243 = vmax.f32 %v3098, 0.0
        %v3244 = vmax.f32 %v3100, 0.0
        %v3245 = vmax.f32 %v3141, 0.0
        %v3246 = vmax.f32 %v3143, 0.0
        %v3247 = vmax.f32 %v3184, 0.0
        %v3248 = vmax.f32 %v3186, 0.0
        %v3249 = vmax.f32 %v3227, 0.0
        %v3250 = vmax.f32 %v3229, 0.0
        %v3251 = vmax.f32 %v2930, 0.0
        %v3252 = vmax.f32 %v2932, 0.0
        %v3253 = vmax.f32 %v2973, 0.0
        %v3254 = vmax.f32 %v2975, 0.0
        %v3255 = vmax.f32 %v3016, 0.0
        %v3256 = vmax.f32 %v3018, 0.0
        %v3257 = vmax.f32 %v3059, 0.0
        %v3258 = vmax.f32 %v3061, 0.0
        %v3259 = vmax.f32 %v3102, 0.0
        %v3260 = vmax.f32 %v3104, 0.0
        %v3261 = vmax.f32 %v3145, 0.0
        %v3262 = vmax.f32 %v3147, 0.0
        %v3263 = vmax.f32 %v3188, 0.0
        %v3264 = vmax.f32 %v3190, 0.0
        %v3265 = vmax.f32 %v3231, 0.0
        %v3266 = vmax.f32 %v3233, 0.0
        %v3267 = vpack.c.bf16 %v3251, %v3235
        %v3268 = vpack.c.bf16 %v3252, %v3236
        %v3269 = vpack.c.bf16 %v3253, %v3237
        %v3270 = vpack.c.bf16 %v3254, %v3238
        %v3271 = vpack.c.bf16 %v3255, %v3239
        %v3272 = vpack.c.bf16 %v3256, %v3240
        %v3273 = vpack.c.bf16 %v3257, %v3241
        %v3274 = vpack.c.bf16 %v3258, %v3242
        %v3275 = vpack.c.bf16 %v3259, %v3243
        %v3276 = vpack.c.bf16 %v3260, %v3244
        %v3277 = vpack.c.bf16 %v3261, %v3245
        %v3278 = vpack.c.bf16 %v3262, %v3246
        %v3279 = vpack.c.bf16 %v3263, %v3247
        %v3280 = vpack.c.bf16 %v3264, %v3248
        %v3281 = vpack.c.bf16 %v3265, %v3249
        %v3282 = vpack.c.bf16 %v3266, %v3250
        %v3283 = vld [vmem:[%s389] sm:$0xf]
        %v3284 = vld [vmem:[%s389 + $0x4] sm:$0xf]
        %v3285 = vld [vmem:[%s389 + $0x8] sm:$0xf]
        %v3286 = vld [vmem:[%s389 + $0xc] sm:$0xf]
        %v3287 = vld [vmem:[%s389 + $0x10] sm:$0xf]
        %v3288 = vld [vmem:[%s389 + $0x14] sm:$0xf]
        %v3289 = vld [vmem:[%s389 + $0x18] sm:$0xf]
        %v3290 = vld [vmem:[%s389 + $0x1c] sm:$0xf]
        %v3291 = vld [vmem:[%s389 + $0x20] sm:$0xf]
        %v3292 = vld [vmem:[%s389 + $0x24] sm:$0xf]
        %v3293 = vld [vmem:[%s389 + $0x28] sm:$0xf]
        %v3294 = vld [vmem:[%s389 + $0x2c] sm:$0xf]
        %v3295 = vld [vmem:[%s389 + $0x30] sm:$0xf]
        %v3296 = vld [vmem:[%s389 + $0x34] sm:$0xf]
        %v3297 = vld [vmem:[%s389 + $0x38] sm:$0xf]
        %v3298 = vld [vmem:[%s389 + $0x3c] sm:$0xf]
        %v3299 = vld [vmem:[%s389 + $0x40] sm:$0xf]
        %v3300 = vld [vmem:[%s389 + $0x44] sm:$0xf]
        %v3301 = vld [vmem:[%s389 + $0x48] sm:$0xf]
        %v3302 = vld [vmem:[%s389 + $0x4c] sm:$0xf]
        %v3303 = vld [vmem:[%s389 + $0x50] sm:$0xf]
        %v3304 = vld [vmem:[%s389 + $0x54] sm:$0xf]
        %v3305 = vld [vmem:[%s389 + $0x58] sm:$0xf]
        %v3306 = vld [vmem:[%s389 + $0x5c] sm:$0xf]
        %v3307 = vld [vmem:[%s389 + $0x60] sm:$0xf]
        %v3308 = vld [vmem:[%s389 + $0x64] sm:$0xf]
        %v3309 = vld [vmem:[%s389 + $0x68] sm:$0xf]
        %v3310 = vld [vmem:[%s389 + $0x6c] sm:$0xf]
        %v3311 = vld [vmem:[%s389 + $0x70] sm:$0xf]
        %v3312 = vld [vmem:[%s389 + $0x74] sm:$0xf]
        %v3313 = vld [vmem:[%s389 + $0x78] sm:$0xf]
        %v3314 = vld [vmem:[%s389 + $0x7c] sm:$0xf]
        %v3315 = vld [vmem:[%s389 + $0x80] sm:$0xf]
        %v3316 = vld [vmem:[%s389 + $0x84] sm:$0xf]
        %v3317 = vld [vmem:[%s389 + $0x88] sm:$0xf]
        %v3318 = vld [vmem:[%s389 + $0x8c] sm:$0xf]
        %v3319 = vld [vmem:[%s389 + $0x90] sm:$0xf]
        %v3320 = vld [vmem:[%s389 + $0x94] sm:$0xf]
        %v3321 = vld [vmem:[%s389 + $0x98] sm:$0xf]
        %v3322 = vld [vmem:[%s389 + $0x9c] sm:$0xf]
        %v3323 = vld [vmem:[%s389 + $0xa0] sm:$0xf]
        %v3324 = vld [vmem:[%s389 + $0xa4] sm:$0xf]
        %v3325 = vld [vmem:[%s389 + $0xa8] sm:$0xf]
        %v3326 = vld [vmem:[%s389 + $0xac] sm:$0xf]
        %v3327 = vld [vmem:[%s389 + $0xb0] sm:$0xf]
        %v3328 = vld [vmem:[%s389 + $0xb4] sm:$0xf]
        %v3329 = vld [vmem:[%s389 + $0xb8] sm:$0xf]
        %v3330 = vld [vmem:[%s389 + $0xbc] sm:$0xf]
        %v3331 = vld [vmem:[%s389 + $0xc0] sm:$0xf]
        %v3332 = vld [vmem:[%s389 + $0xc4] sm:$0xf]
        %v3333 = vld [vmem:[%s389 + $0xc8] sm:$0xf]
        %v3334 = vld [vmem:[%s389 + $0xcc] sm:$0xf]
        %v3335 = vld [vmem:[%s389 + $0xd0] sm:$0xf]
        %v3336 = vld [vmem:[%s389 + $0xd4] sm:$0xf]
        %v3337 = vld [vmem:[%s389 + $0xd8] sm:$0xf]
        %v3338 = vld [vmem:[%s389 + $0xdc] sm:$0xf]
        %v3339 = vld [vmem:[%s389 + $0xe0] sm:$0xf]
        %v3340 = vld [vmem:[%s389 + $0xe4] sm:$0xf]
        %v3341 = vld [vmem:[%s389 + $0xe8] sm:$0xf]
        %v3342 = vld [vmem:[%s389 + $0xec] sm:$0xf]
        %v3343 = vld [vmem:[%s389 + $0xf0] sm:$0xf]
        %v3344 = vld [vmem:[%s389 + $0xf4] sm:$0xf]
        %v3345 = vld [vmem:[%s389 + $0xf8] sm:$0xf]
        %v3346 = vld [vmem:[%s389 + $0xfc] sm:$0xf]
        %v3347 = vld [vmem:[%s389 + $0x100] sm:$0xf]
        %v3348 = vld [vmem:[%s389 + $0x104] sm:$0xf]
        %v3349 = vld [vmem:[%s389 + $0x108] sm:$0xf]
        %v3350 = vld [vmem:[%s389 + $0x10c] sm:$0xf]
        %v3351 = vld [vmem:[%s389 + $0x110] sm:$0xf]
        %v3352 = vld [vmem:[%s389 + $0x114] sm:$0xf]
        %v3353 = vld [vmem:[%s389 + $0x118] sm:$0xf]
        %v3354 = vld [vmem:[%s389 + $0x11c] sm:$0xf]
        %v3355 = vld [vmem:[%s389 + $0x120] sm:$0xf]
        %v3356 = vld [vmem:[%s389 + $0x124] sm:$0xf]
        %v3357 = vld [vmem:[%s389 + $0x128] sm:$0xf]
        %v3358 = vld [vmem:[%s389 + $0x12c] sm:$0xf]
        %v3359 = vld [vmem:[%s389 + $0x130] sm:$0xf]
        %v3360 = vld [vmem:[%s389 + $0x134] sm:$0xf]
        %v3361 = vld [vmem:[%s389 + $0x138] sm:$0xf]
        %v3362 = vld [vmem:[%s389 + $0x13c] sm:$0xf]
        %v3363 = vld [vmem:[%s389 + $0x140] sm:$0xf]
        %v3364 = vld [vmem:[%s389 + $0x144] sm:$0xf]
        %v3365 = vld [vmem:[%s389 + $0x148] sm:$0xf]
        %v3366 = vld [vmem:[%s389 + $0x14c] sm:$0xf]
        %v3367 = vld [vmem:[%s389 + $0x150] sm:$0xf]
        %v3368 = vld [vmem:[%s389 + $0x154] sm:$0xf]
        %v3369 = vld [vmem:[%s389 + $0x158] sm:$0xf]
        %v3370 = vld [vmem:[%s389 + $0x15c] sm:$0xf]
        %v3371 = vld [vmem:[%s389 + $0x160] sm:$0xf]
        %v3372 = vld [vmem:[%s389 + $0x164] sm:$0xf]
        %v3373 = vld [vmem:[%s389 + $0x168] sm:$0xf]
        %v3374 = vld [vmem:[%s389 + $0x16c] sm:$0xf]
        %v3375 = vld [vmem:[%s389 + $0x170] sm:$0xf]
        %v3376 = vld [vmem:[%s389 + $0x174] sm:$0xf]
        %v3377 = vld [vmem:[%s389 + $0x178] sm:$0xf]
        %v3378 = vld [vmem:[%s389 + $0x17c] sm:$0xf]
        %v3379 = vld [vmem:[%s389 + $0x180] sm:$0xf]
        %v3380 = vld [vmem:[%s389 + $0x184] sm:$0xf]
        %v3381 = vld [vmem:[%s389 + $0x188] sm:$0xf]
        %v3382 = vld [vmem:[%s389 + $0x18c] sm:$0xf]
        %v3383 = vld [vmem:[%s389 + $0x190] sm:$0xf]
        %v3384 = vld [vmem:[%s389 + $0x194] sm:$0xf]
        %v3385 = vld [vmem:[%s389 + $0x198] sm:$0xf]
        %v3386 = vld [vmem:[%s389 + $0x19c] sm:$0xf]
        %v3387 = vld [vmem:[%s389 + $0x1a0] sm:$0xf]
        %v3388 = vld [vmem:[%s389 + $0x1a4] sm:$0xf]
        %v3389 = vld [vmem:[%s389 + $0x1a8] sm:$0xf]
        %v3390 = vld [vmem:[%s389 + $0x1ac] sm:$0xf]
        %v3391 = vld [vmem:[%s389 + $0x1b0] sm:$0xf]
        %v3392 = vld [vmem:[%s389 + $0x1b4] sm:$0xf]
        %v3393 = vld [vmem:[%s389 + $0x1b8] sm:$0xf]
        %v3394 = vld [vmem:[%s389 + $0x1bc] sm:$0xf]
        %v3395 = vld [vmem:[%s389 + $0x1c0] sm:$0xf]
        %v3396 = vld [vmem:[%s389 + $0x1c4] sm:$0xf]
        %v3397 = vld [vmem:[%s389 + $0x1c8] sm:$0xf]
        %v3398 = vld [vmem:[%s389 + $0x1cc] sm:$0xf]
        %v3399 = vld [vmem:[%s389 + $0x1d0] sm:$0xf]
        %v3400 = vld [vmem:[%s389 + $0x1d4] sm:$0xf]
        %v3401 = vld [vmem:[%s389 + $0x1d8] sm:$0xf]
        %v3402 = vld [vmem:[%s389 + $0x1dc] sm:$0xf]
        %v3403 = vld [vmem:[%s389 + $0x1e0] sm:$0xf]
        %v3404 = vld [vmem:[%s389 + $0x1e4] sm:$0xf]
        %v3405 = vld [vmem:[%s389 + $0x1e8] sm:$0xf]
        %v3406 = vld [vmem:[%s389 + $0x1ec] sm:$0xf]
        %v3407 = vld [vmem:[%s389 + $0x1f0] sm:$0xf]
        %v3408 = vld [vmem:[%s389 + $0x1f4] sm:$0xf]
        %v3409 = vld [vmem:[%s389 + $0x1f8] sm:$0xf]
        %v3410 = vld [vmem:[%s389 + $0x1fc] sm:$0xf]
        %v3411 = vld [vmem:[%s389 + $0x200] sm:$0xf]
        %v3412 = vld [vmem:[%s389 + $0x204] sm:$0xf]
        %v3413 = vld [vmem:[%s389 + $0x208] sm:$0xf]
        %v3414 = vld [vmem:[%s389 + $0x20c] sm:$0xf]
        %v3415 = vld [vmem:[%s389 + $0x210] sm:$0xf]
        %v3416 = vld [vmem:[%s389 + $0x214] sm:$0xf]
        %v3417 = vld [vmem:[%s389 + $0x218] sm:$0xf]
        %v3418 = vld [vmem:[%s389 + $0x21c] sm:$0xf]
        %v3419 = vld [vmem:[%s389 + $0x220] sm:$0xf]
        %v3420 = vld [vmem:[%s389 + $0x224] sm:$0xf]
        %v3421 = vld [vmem:[%s389 + $0x228] sm:$0xf]
        %v3422 = vld [vmem:[%s389 + $0x22c] sm:$0xf]
        %v3423 = vld [vmem:[%s389 + $0x230] sm:$0xf]
        %v3424 = vld [vmem:[%s389 + $0x234] sm:$0xf]
        %v3425 = vld [vmem:[%s389 + $0x238] sm:$0xf]
        %v3426 = vld [vmem:[%s389 + $0x23c] sm:$0xf]
        %v3427 = vld [vmem:[%s389 + $0x240] sm:$0xf]
        %v3428 = vld [vmem:[%s389 + $0x244] sm:$0xf]
        %v3429 = vld [vmem:[%s389 + $0x248] sm:$0xf]
        %v3430 = vld [vmem:[%s389 + $0x24c] sm:$0xf]
        %v3431 = vld [vmem:[%s389 + $0x250] sm:$0xf]
        %v3432 = vld [vmem:[%s389 + $0x254] sm:$0xf]
        %v3433 = vld [vmem:[%s389 + $0x258] sm:$0xf]
        %v3434 = vld [vmem:[%s389 + $0x25c] sm:$0xf]
        %v3435 = vld [vmem:[%s389 + $0x260] sm:$0xf]
        %v3436 = vld [vmem:[%s389 + $0x264] sm:$0xf]
        %v3437 = vld [vmem:[%s389 + $0x268] sm:$0xf]
        %v3438 = vld [vmem:[%s389 + $0x26c] sm:$0xf]
        %v3439 = vld [vmem:[%s389 + $0x270] sm:$0xf]
        %v3440 = vld [vmem:[%s389 + $0x274] sm:$0xf]
        %v3441 = vld [vmem:[%s389 + $0x278] sm:$0xf]
        %v3442 = vld [vmem:[%s389 + $0x27c] sm:$0xf]
        %v3443 = vld [vmem:[%s389 + $0x280] sm:$0xf]
        %v3444 = vld [vmem:[%s389 + $0x284] sm:$0xf]
        %v3445 = vld [vmem:[%s389 + $0x288] sm:$0xf]
        %v3446 = vld [vmem:[%s389 + $0x28c] sm:$0xf]
        %v3447 = vld [vmem:[%s389 + $0x290] sm:$0xf]
        %v3448 = vld [vmem:[%s389 + $0x294] sm:$0xf]
        %v3449 = vld [vmem:[%s389 + $0x298] sm:$0xf]
        %v3450 = vld [vmem:[%s389 + $0x29c] sm:$0xf]
        %v3451 = vld [vmem:[%s389 + $0x2a0] sm:$0xf]
        %v3452 = vld [vmem:[%s389 + $0x2a4] sm:$0xf]
        %v3453 = vld [vmem:[%s389 + $0x2a8] sm:$0xf]
        %v3454 = vld [vmem:[%s389 + $0x2ac] sm:$0xf]
        %v3455 = vld [vmem:[%s389 + $0x2b0] sm:$0xf]
        %v3456 = vld [vmem:[%s389 + $0x2b4] sm:$0xf]
        %v3457 = vld [vmem:[%s389 + $0x2b8] sm:$0xf]
        %v3458 = vld [vmem:[%s389 + $0x2bc] sm:$0xf]
        %v3459 = vld [vmem:[%s389 + $0x2c0] sm:$0xf]
        %v3460 = vld [vmem:[%s389 + $0x2c4] sm:$0xf]
        %v3461 = vld [vmem:[%s389 + $0x2c8] sm:$0xf]
        %v3462 = vld [vmem:[%s389 + $0x2cc] sm:$0xf]
        %v3463 = vld [vmem:[%s389 + $0x2d0] sm:$0xf]
        %v3464 = vld [vmem:[%s389 + $0x2d4] sm:$0xf]
        %v3465 = vld [vmem:[%s389 + $0x2d8] sm:$0xf]
        %v3466 = vld [vmem:[%s389 + $0x2dc] sm:$0xf]
        %v3467 = vld [vmem:[%s389 + $0x2e0] sm:$0xf]
        %v3468 = vld [vmem:[%s389 + $0x2e4] sm:$0xf]
        %v3469 = vld [vmem:[%s389 + $0x2e8] sm:$0xf]
        %v3470 = vld [vmem:[%s389 + $0x2ec] sm:$0xf]
        %v3471 = vld [vmem:[%s389 + $0x2f0] sm:$0xf]
        %v3472 = vld [vmem:[%s389 + $0x2f4] sm:$0xf]
        %v3473 = vld [vmem:[%s389 + $0x2f8] sm:$0xf]
        %v3474 = vld [vmem:[%s389 + $0x2fc] sm:$0xf]
        %v3475 = vld [vmem:[%s389 + $0x300] sm:$0xf]
        %v3476 = vld [vmem:[%s389 + $0x304] sm:$0xf]
        %v3477 = vld [vmem:[%s389 + $0x308] sm:$0xf]
        %v3478 = vld [vmem:[%s389 + $0x30c] sm:$0xf]
        %v3479 = vld [vmem:[%s389 + $0x310] sm:$0xf]
        %v3480 = vld [vmem:[%s389 + $0x314] sm:$0xf]
        %v3481 = vld [vmem:[%s389 + $0x318] sm:$0xf]
        %v3482 = vld [vmem:[%s389 + $0x31c] sm:$0xf]
        %v3483 = vld [vmem:[%s389 + $0x320] sm:$0xf]
        %v3484 = vld [vmem:[%s389 + $0x324] sm:$0xf]
        %v3485 = vld [vmem:[%s389 + $0x328] sm:$0xf]
        %v3486 = vld [vmem:[%s389 + $0x32c] sm:$0xf]
        %v3487 = vld [vmem:[%s389 + $0x330] sm:$0xf]
        %v3488 = vld [vmem:[%s389 + $0x334] sm:$0xf]
        %v3489 = vld [vmem:[%s389 + $0x338] sm:$0xf]
        %v3490 = vld [vmem:[%s389 + $0x33c] sm:$0xf]
        %v3491 = vld [vmem:[%s389 + $0x340] sm:$0xf]
        %v3492 = vld [vmem:[%s389 + $0x344] sm:$0xf]
        %v3493 = vld [vmem:[%s389 + $0x348] sm:$0xf]
        %v3494 = vld [vmem:[%s389 + $0x34c] sm:$0xf]
        %v3495 = vld [vmem:[%s389 + $0x350] sm:$0xf]
        %v3496 = vld [vmem:[%s389 + $0x354] sm:$0xf]
        %v3497 = vld [vmem:[%s389 + $0x358] sm:$0xf]
        %v3498 = vld [vmem:[%s389 + $0x35c] sm:$0xf]
        %v3499 = vld [vmem:[%s389 + $0x360] sm:$0xf]
        %v3500 = vld [vmem:[%s389 + $0x364] sm:$0xf]
        %v3501 = vld [vmem:[%s389 + $0x368] sm:$0xf]
        %v3502 = vld [vmem:[%s389 + $0x36c] sm:$0xf]
        %v3503 = vld [vmem:[%s389 + $0x370] sm:$0xf]
        %v3504 = vld [vmem:[%s389 + $0x374] sm:$0xf]
        %v3505 = vld [vmem:[%s389 + $0x378] sm:$0xf]
        %v3506 = vld [vmem:[%s389 + $0x37c] sm:$0xf]
        %v3507 = vld [vmem:[%s389 + $0x380] sm:$0xf]
        %v3508 = vld [vmem:[%s389 + $0x384] sm:$0xf]
        %v3509 = vld [vmem:[%s389 + $0x388] sm:$0xf]
        %v3510 = vld [vmem:[%s389 + $0x38c] sm:$0xf]
        %v3511 = vld [vmem:[%s389 + $0x390] sm:$0xf]
        %v3512 = vld [vmem:[%s389 + $0x394] sm:$0xf]
        %v3513 = vld [vmem:[%s389 + $0x398] sm:$0xf]
        %v3514 = vld [vmem:[%s389 + $0x39c] sm:$0xf]
        %v3515 = vld [vmem:[%s389 + $0x3a0] sm:$0xf]
        %v3516 = vld [vmem:[%s389 + $0x3a4] sm:$0xf]
        %v3517 = vld [vmem:[%s389 + $0x3a8] sm:$0xf]
        %v3518 = vld [vmem:[%s389 + $0x3ac] sm:$0xf]
        %v3519 = vld [vmem:[%s389 + $0x3b0] sm:$0xf]
        %v3520 = vld [vmem:[%s389 + $0x3b4] sm:$0xf]
        %v3521 = vld [vmem:[%s389 + $0x3b8] sm:$0xf]
        %v3522 = vld [vmem:[%s389 + $0x3bc] sm:$0xf]
        %v3523 = vld [vmem:[%s389 + $0x3c0] sm:$0xf]
        %v3524 = vld [vmem:[%s389 + $0x3c4] sm:$0xf]
        %v3525 = vld [vmem:[%s389 + $0x3c8] sm:$0xf]
        %v3526 = vld [vmem:[%s389 + $0x3cc] sm:$0xf]
        %v3527 = vld [vmem:[%s389 + $0x3d0] sm:$0xf]
        %v3528 = vld [vmem:[%s389 + $0x3d4] sm:$0xf]
        %v3529 = vld [vmem:[%s389 + $0x3d8] sm:$0xf]
        %v3530 = vld [vmem:[%s389 + $0x3dc] sm:$0xf]
        %v3531 = vld [vmem:[%s389 + $0x3e0] sm:$0xf]
        %v3532 = vld [vmem:[%s389 + $0x3e4] sm:$0xf]
        %v3533 = vld [vmem:[%s389 + $0x3e8] sm:$0xf]
        %v3534 = vld [vmem:[%s389 + $0x3ec] sm:$0xf]
        %v3535 = vld [vmem:[%s389 + $0x3f0] sm:$0xf]
        %v3536 = vld [vmem:[%s389 + $0x3f4] sm:$0xf]
        %v3537 = vld [vmem:[%s389 + $0x3f8] sm:$0xf]
        %v3538 = vld [vmem:[%s389 + $0x3fc] sm:$0xf]
        %v3539 = vlaneseq
        %v3540 = vshrl.u32 %v3539, 7
        %v3541 = vsub.s32 3, %v3540
        %v3542 = vrot.slane %v458, %v3541
        %v3799 = vunpack.c.l.b16 %v3283
        %v3800 = vunpack.c.l.b16 %v3284
        %v3801 = vunpack.c.l.b16 %v3285
        %v3802 = vunpack.c.l.b16 %v3286
        %v3803 = vunpack.c.l.b16 %v3287
        %v3804 = vunpack.c.l.b16 %v3288
        %v3805 = vunpack.c.l.b16 %v3289
        %v3806 = vunpack.c.l.b16 %v3290
        %v3807 = vunpack.c.l.b16 %v3291
        %v3808 = vunpack.c.l.b16 %v3292
        %v3809 = vunpack.c.l.b16 %v3293
        %v3810 = vunpack.c.l.b16 %v3294
        %v3811 = vunpack.c.l.b16 %v3295
        %v3812 = vunpack.c.l.b16 %v3296
        %v3813 = vunpack.c.l.b16 %v3297
        %v3814 = vunpack.c.l.b16 %v3298
        %v3815 = vunpack.c.l.b16 %v3299
        %v3816 = vunpack.c.l.b16 %v3300
        %v3817 = vunpack.c.l.b16 %v3301
        %v3818 = vunpack.c.l.b16 %v3302
        %v3819 = vunpack.c.l.b16 %v3303
        %v3820 = vunpack.c.l.b16 %v3304
        %v3821 = vunpack.c.l.b16 %v3305
        %v3822 = vunpack.c.l.b16 %v3306
        %v3823 = vunpack.c.l.b16 %v3307
        %v3824 = vunpack.c.l.b16 %v3308
        %v3825 = vunpack.c.l.b16 %v3309
        %v3826 = vunpack.c.l.b16 %v3310
        %v3827 = vunpack.c.l.b16 %v3311
        %v3828 = vunpack.c.l.b16 %v3312
        %v3829 = vunpack.c.l.b16 %v3313
        %v3830 = vunpack.c.l.b16 %v3314
        %v3831 = vunpack.c.l.b16 %v3315
        %v3832 = vunpack.c.l.b16 %v3316
        %v3833 = vunpack.c.l.b16 %v3317
        %v3834 = vunpack.c.l.b16 %v3318
        %v3835 = vunpack.c.l.b16 %v3319
        %v3836 = vunpack.c.l.b16 %v3320
        %v3837 = vunpack.c.l.b16 %v3321
        %v3838 = vunpack.c.l.b16 %v3322
        %v3839 = vunpack.c.l.b16 %v3323
        %v3840 = vunpack.c.l.b16 %v3324
        %v3841 = vunpack.c.l.b16 %v3325
        %v3842 = vunpack.c.l.b16 %v3326
        %v3843 = vunpack.c.l.b16 %v3327
        %v3844 = vunpack.c.l.b16 %v3328
        %v3845 = vunpack.c.l.b16 %v3329
        %v3846 = vunpack.c.l.b16 %v3330
        %v3847 = vunpack.c.l.b16 %v3331
        %v3848 = vunpack.c.l.b16 %v3332
        %v3849 = vunpack.c.l.b16 %v3333
        %v3850 = vunpack.c.l.b16 %v3334
        %v3851 = vunpack.c.l.b16 %v3335
        %v3852 = vunpack.c.l.b16 %v3336
        %v3853 = vunpack.c.l.b16 %v3337
        %v3854 = vunpack.c.l.b16 %v3338
        %v3855 = vunpack.c.l.b16 %v3339
        %v3856 = vunpack.c.l.b16 %v3340
        %v3857 = vunpack.c.l.b16 %v3341
        %v3858 = vunpack.c.l.b16 %v3342
        %v3859 = vunpack.c.l.b16 %v3343
        %v3860 = vunpack.c.l.b16 %v3344
        %v3861 = vunpack.c.l.b16 %v3345
        %v3862 = vunpack.c.l.b16 %v3346
        %v3863 = vunpack.c.l.b16 %v3347
        %v3864 = vunpack.c.l.b16 %v3348
        %v3865 = vunpack.c.l.b16 %v3349
        %v3866 = vunpack.c.l.b16 %v3350
        %v3867 = vunpack.c.l.b16 %v3351
        %v3868 = vunpack.c.l.b16 %v3352
        %v3869 = vunpack.c.l.b16 %v3353
        %v3870 = vunpack.c.l.b16 %v3354
        %v3871 = vunpack.c.l.b16 %v3355
        %v3872 = vunpack.c.l.b16 %v3356
        %v3873 = vunpack.c.l.b16 %v3357
        %v3874 = vunpack.c.l.b16 %v3358
        %v3875 = vunpack.c.l.b16 %v3359
        %v3876 = vunpack.c.l.b16 %v3360
        %v3877 = vunpack.c.l.b16 %v3361
        %v3878 = vunpack.c.l.b16 %v3362
        %v3879 = vunpack.c.l.b16 %v3363
        %v3880 = vunpack.c.l.b16 %v3364
        %v3881 = vunpack.c.l.b16 %v3365
        %v3882 = vunpack.c.l.b16 %v3366
        %v3883 = vunpack.c.l.b16 %v3367
        %v3884 = vunpack.c.l.b16 %v3368
        %v3885 = vunpack.c.l.b16 %v3369
        %v3886 = vunpack.c.l.b16 %v3370
        %v3887 = vunpack.c.l.b16 %v3371
        %v3888 = vunpack.c.l.b16 %v3372
        %v3889 = vunpack.c.l.b16 %v3373
        %v3890 = vunpack.c.l.b16 %v3374
        %v3891 = vunpack.c.l.b16 %v3375
        %v3892 = vunpack.c.l.b16 %v3376
        %v3893 = vunpack.c.l.b16 %v3377
        %v3894 = vunpack.c.l.b16 %v3378
        %v3895 = vunpack.c.l.b16 %v3379
        %v3896 = vunpack.c.l.b16 %v3380
        %v3897 = vunpack.c.l.b16 %v3381
        %v3898 = vunpack.c.l.b16 %v3382
        %v3899 = vunpack.c.l.b16 %v3383
        %v3900 = vunpack.c.l.b16 %v3384
        %v3901 = vunpack.c.l.b16 %v3385
        %v3902 = vunpack.c.l.b16 %v3386
        %v3903 = vunpack.c.l.b16 %v3387
        %v3904 = vunpack.c.l.b16 %v3388
        %v3905 = vunpack.c.l.b16 %v3389
        %v3906 = vunpack.c.l.b16 %v3390
        %v3907 = vunpack.c.l.b16 %v3391
        %v3908 = vunpack.c.l.b16 %v3392
        %v3909 = vunpack.c.l.b16 %v3393
        %v3910 = vunpack.c.l.b16 %v3394
        %v3911 = vunpack.c.l.b16 %v3395
        %v3912 = vunpack.c.l.b16 %v3396
        %v3913 = vunpack.c.l.b16 %v3397
        %v3914 = vunpack.c.l.b16 %v3398
        %v3915 = vunpack.c.l.b16 %v3399
        %v3916 = vunpack.c.l.b16 %v3400
        %v3917 = vunpack.c.l.b16 %v3401
        %v3918 = vunpack.c.l.b16 %v3402
        %v3919 = vunpack.c.l.b16 %v3403
        %v3920 = vunpack.c.l.b16 %v3404
        %v3921 = vunpack.c.l.b16 %v3405
        %v3922 = vunpack.c.l.b16 %v3406
        %v3923 = vunpack.c.l.b16 %v3407
        %v3924 = vunpack.c.l.b16 %v3408
        %v3925 = vunpack.c.l.b16 %v3409
        %v3926 = vunpack.c.l.b16 %v3410
        %v3927 = vunpack.c.l.b16 %v3411
        %v3928 = vunpack.c.l.b16 %v3412
        %v3929 = vunpack.c.l.b16 %v3413
        %v3930 = vunpack.c.l.b16 %v3414
        %v3931 = vunpack.c.l.b16 %v3415
        %v3932 = vunpack.c.l.b16 %v3416
        %v3933 = vunpack.c.l.b16 %v3417
        %v3934 = vunpack.c.l.b16 %v3418
        %v3935 = vunpack.c.l.b16 %v3419
        %v3936 = vunpack.c.l.b16 %v3420
        %v3937 = vunpack.c.l.b16 %v3421
        %v3938 = vunpack.c.l.b16 %v3422
        %v3939 = vunpack.c.l.b16 %v3423
        %v3940 = vunpack.c.l.b16 %v3424
        %v3941 = vunpack.c.l.b16 %v3425
        %v3942 = vunpack.c.l.b16 %v3426
        %v3943 = vunpack.c.l.b16 %v3427
        %v3944 = vunpack.c.l.b16 %v3428
        %v3945 = vunpack.c.l.b16 %v3429
        %v3946 = vunpack.c.l.b16 %v3430
        %v3947 = vunpack.c.l.b16 %v3431
        %v3948 = vunpack.c.l.b16 %v3432
        %v3949 = vunpack.c.l.b16 %v3433
        %v3950 = vunpack.c.l.b16 %v3434
        %v3951 = vunpack.c.l.b16 %v3435
        %v3952 = vunpack.c.l.b16 %v3436
        %v3953 = vunpack.c.l.b16 %v3437
        %v3954 = vunpack.c.l.b16 %v3438
        %v3955 = vunpack.c.l.b16 %v3439
        %v3956 = vunpack.c.l.b16 %v3440
        %v3957 = vunpack.c.l.b16 %v3441
        %v3958 = vunpack.c.l.b16 %v3442
        %v3959 = vunpack.c.l.b16 %v3443
        %v3960 = vunpack.c.l.b16 %v3444
        %v3961 = vunpack.c.l.b16 %v3445
        %v3962 = vunpack.c.l.b16 %v3446
        %v3963 = vunpack.c.l.b16 %v3447
        %v3964 = vunpack.c.l.b16 %v3448
        %v3965 = vunpack.c.l.b16 %v3449
        %v3966 = vunpack.c.l.b16 %v3450
        %v3967 = vunpack.c.l.b16 %v3451
        %v3968 = vunpack.c.l.b16 %v3452
        %v3969 = vunpack.c.l.b16 %v3453
        %v3970 = vunpack.c.l.b16 %v3454
        %v3971 = vunpack.c.l.b16 %v3455
        %v3972 = vunpack.c.l.b16 %v3456
        %v3973 = vunpack.c.l.b16 %v3457
        %v3974 = vunpack.c.l.b16 %v3458
        %v3975 = vunpack.c.l.b16 %v3459
        %v3976 = vunpack.c.l.b16 %v3460
        %v3977 = vunpack.c.l.b16 %v3461
        %v3978 = vunpack.c.l.b16 %v3462
        %v3979 = vunpack.c.l.b16 %v3463
        %v3980 = vunpack.c.l.b16 %v3464
        %v3981 = vunpack.c.l.b16 %v3465
        %v3982 = vunpack.c.l.b16 %v3466
        %v3983 = vunpack.c.l.b16 %v3467
        %v3984 = vunpack.c.l.b16 %v3468
        %v3985 = vunpack.c.l.b16 %v3469
        %v3986 = vunpack.c.l.b16 %v3470
        %v3987 = vunpack.c.l.b16 %v3471
        %v3988 = vunpack.c.l.b16 %v3472
        %v3989 = vunpack.c.l.b16 %v3473
        %v3990 = vunpack.c.l.b16 %v3474
        %v3991 = vunpack.c.l.b16 %v3475
        %v3992 = vunpack.c.l.b16 %v3476
        %v3993 = vunpack.c.l.b16 %v3477
        %v3994 = vunpack.c.l.b16 %v3478
        %v3995 = vunpack.c.l.b16 %v3479
        %v3996 = vunpack.c.l.b16 %v3480
        %v3997 = vunpack.c.l.b16 %v3481
        %v3998 = vunpack.c.l.b16 %v3482
        %v3999 = vunpack.c.l.b16 %v3483
        %v4000 = vunpack.c.l.b16 %v3484
        %v4001 = vunpack.c.l.b16 %v3485
        %v4002 = vunpack.c.l.b16 %v3486
        %v4003 = vunpack.c.l.b16 %v3487
        %v4004 = vunpack.c.l.b16 %v3488
        %v4005 = vunpack.c.l.b16 %v3489
        %v4006 = vunpack.c.l.b16 %v3490
        %v4007 = vunpack.c.l.b16 %v3491
        %v4008 = vunpack.c.l.b16 %v3492
        %v4009 = vunpack.c.l.b16 %v3493
        %v4010 = vunpack.c.l.b16 %v3494
        %v4011 = vunpack.c.l.b16 %v3495
        %v4012 = vunpack.c.l.b16 %v3496
        %v4013 = vunpack.c.l.b16 %v3497
        %v4014 = vunpack.c.l.b16 %v3498
        %v4015 = vunpack.c.l.b16 %v3499
        %v4016 = vunpack.c.l.b16 %v3500
        %v4017 = vunpack.c.l.b16 %v3501
        %v4018 = vunpack.c.l.b16 %v3502
        %v4019 = vunpack.c.l.b16 %v3503
        %v4020 = vunpack.c.l.b16 %v3504
        %v4021 = vunpack.c.l.b16 %v3505
        %v4022 = vunpack.c.l.b16 %v3506
        %v4023 = vunpack.c.l.b16 %v3507
        %v4024 = vunpack.c.l.b16 %v3508
        %v4025 = vunpack.c.l.b16 %v3509
        %v4026 = vunpack.c.l.b16 %v3510
        %v4027 = vunpack.c.l.b16 %v3511
        %v4028 = vunpack.c.l.b16 %v3512
        %v4029 = vunpack.c.l.b16 %v3513
        %v4030 = vunpack.c.l.b16 %v3514
        %v4031 = vunpack.c.l.b16 %v3515
        %v4032 = vunpack.c.l.b16 %v3516
        %v4033 = vunpack.c.l.b16 %v3517
        %v4034 = vunpack.c.l.b16 %v3518
        %v4035 = vunpack.c.l.b16 %v3519
        %v4036 = vunpack.c.l.b16 %v3520
        %v4037 = vunpack.c.l.b16 %v3521
        %v4038 = vunpack.c.l.b16 %v3522
        %v4039 = vunpack.c.l.b16 %v3523
        %v4040 = vunpack.c.l.b16 %v3524
        %v4041 = vunpack.c.l.b16 %v3525
        %v4042 = vunpack.c.l.b16 %v3526
        %v4043 = vunpack.c.l.b16 %v3527
        %v4044 = vunpack.c.l.b16 %v3528
        %v4045 = vunpack.c.l.b16 %v3529
        %v4046 = vunpack.c.l.b16 %v3530
        %v4047 = vunpack.c.l.b16 %v3531
        %v4048 = vunpack.c.l.b16 %v3532
        %v4049 = vunpack.c.l.b16 %v3533
        %v4050 = vunpack.c.l.b16 %v3534
        %v4051 = vunpack.c.l.b16 %v3535
        %v4052 = vunpack.c.l.b16 %v3536
        %v4053 = vunpack.c.l.b16 %v3537
        %v4054 = vunpack.c.l.b16 %v3538
        %v4055 = vpack.c.b16 %v3800, %v3799
        %v4056 = vpack.c.b16 %v3802, %v3801
        %v4057 = vpack.c.b16 %v3804, %v3803
        %v4058 = vpack.c.b16 %v3806, %v3805
        %v4059 = vpack.c.b16 %v3808, %v3807
        %v4060 = vpack.c.b16 %v3810, %v3809
        %v4061 = vpack.c.b16 %v3812, %v3811
        %v4062 = vpack.c.b16 %v3814, %v3813
        %v4063 = vpack.c.b16 %v3816, %v3815
        %v4064 = vpack.c.b16 %v3818, %v3817
        %v4065 = vpack.c.b16 %v3820, %v3819
        %v4066 = vpack.c.b16 %v3822, %v3821
        %v4067 = vpack.c.b16 %v3824, %v3823
        %v4068 = vpack.c.b16 %v3826, %v3825
        %v4069 = vpack.c.b16 %v3828, %v3827
        %v4070 = vpack.c.b16 %v3830, %v3829
        %v4071 = vpack.c.b16 %v3832, %v3831
        %v4072 = vpack.c.b16 %v3834, %v3833
        %v4073 = vpack.c.b16 %v3836, %v3835
        %v4074 = vpack.c.b16 %v3838, %v3837
        %v4075 = vpack.c.b16 %v3840, %v3839
        %v4076 = vpack.c.b16 %v3842, %v3841
        %v4077 = vpack.c.b16 %v3844, %v3843
        %v4078 = vpack.c.b16 %v3846, %v3845
        %v4079 = vpack.c.b16 %v3848, %v3847
        %v4080 = vpack.c.b16 %v3850, %v3849
        %v4081 = vpack.c.b16 %v3852, %v3851
        %v4082 = vpack.c.b16 %v3854, %v3853
        %v4083 = vpack.c.b16 %v3856, %v3855
        %v4084 = vpack.c.b16 %v3858, %v3857
        %v4085 = vpack.c.b16 %v3860, %v3859
        %v4086 = vpack.c.b16 %v3862, %v3861
        %v4087 = vpack.c.b16 %v3864, %v3863
        %v4088 = vpack.c.b16 %v3866, %v3865
        %v4089 = vpack.c.b16 %v3868, %v3867
        %v4090 = vpack.c.b16 %v3870, %v3869
        %v4091 = vpack.c.b16 %v3872, %v3871
        %v4092 = vpack.c.b16 %v3874, %v3873
        %v4093 = vpack.c.b16 %v3876, %v3875
        %v4094 = vpack.c.b16 %v3878, %v3877
        %v4095 = vpack.c.b16 %v3880, %v3879
        %v4096 = vpack.c.b16 %v3882, %v3881
        %v4097 = vpack.c.b16 %v3884, %v3883
        %v4098 = vpack.c.b16 %v3886, %v3885
        %v4099 = vpack.c.b16 %v3888, %v3887
        %v4100 = vpack.c.b16 %v3890, %v3889
        %v4101 = vpack.c.b16 %v3892, %v3891
        %v4102 = vpack.c.b16 %v3894, %v3893
        %v4103 = vpack.c.b16 %v3896, %v3895
        %v4104 = vpack.c.b16 %v3898, %v3897
        %v4105 = vpack.c.b16 %v3900, %v3899
        %v4106 = vpack.c.b16 %v3902, %v3901
        %v4107 = vpack.c.b16 %v3904, %v3903
        %v4108 = vpack.c.b16 %v3906, %v3905
        %v4109 = vpack.c.b16 %v3908, %v3907
        %v4110 = vpack.c.b16 %v3910, %v3909
        %v4111 = vpack.c.b16 %v3912, %v3911
        %v4112 = vpack.c.b16 %v3914, %v3913
        %v4113 = vpack.c.b16 %v3916, %v3915
        %v4114 = vpack.c.b16 %v3918, %v3917
        %v4115 = vpack.c.b16 %v3920, %v3919
        %v4116 = vpack.c.b16 %v3922, %v3921
        %v4117 = vpack.c.b16 %v3924, %v3923
        %v4118 = vpack.c.b16 %v3926, %v3925
        %v4119 = vpack.c.b16 %v3928, %v3927
        %v4120 = vpack.c.b16 %v3930, %v3929
        %v4121 = vpack.c.b16 %v3932, %v3931
        %v4122 = vpack.c.b16 %v3934, %v3933
        %v4123 = vpack.c.b16 %v3936, %v3935
        %v4124 = vpack.c.b16 %v3938, %v3937
        %v4125 = vpack.c.b16 %v3940, %v3939
        %v4126 = vpack.c.b16 %v3942, %v3941
        %v4127 = vpack.c.b16 %v3944, %v3943
        %v4128 = vpack.c.b16 %v3946, %v3945
        %v4129 = vpack.c.b16 %v3948, %v3947
        %v4130 = vpack.c.b16 %v3950, %v3949
        %v4131 = vpack.c.b16 %v3952, %v3951
        %v4132 = vpack.c.b16 %v3954, %v3953
        %v4133 = vpack.c.b16 %v3956, %v3955
        %v4134 = vpack.c.b16 %v3958, %v3957
        %v4135 = vpack.c.b16 %v3960, %v3959
        %v4136 = vpack.c.b16 %v3962, %v3961
        %v4137 = vpack.c.b16 %v3964, %v3963
        %v4138 = vpack.c.b16 %v3966, %v3965
        %v4139 = vpack.c.b16 %v3968, %v3967
        %v4140 = vpack.c.b16 %v3970, %v3969
        %v4141 = vpack.c.b16 %v3972, %v3971
        %v4142 = vpack.c.b16 %v3974, %v3973
        %v4143 = vpack.c.b16 %v3976, %v3975
        %v4144 = vpack.c.b16 %v3978, %v3977
        %v4145 = vpack.c.b16 %v3980, %v3979
        %v4146 = vpack.c.b16 %v3982, %v3981
        %v4147 = vpack.c.b16 %v3984, %v3983
        %v4148 = vpack.c.b16 %v3986, %v3985
        %v4149 = vpack.c.b16 %v3988, %v3987
        %v4150 = vpack.c.b16 %v3990, %v3989
        %v4151 = vpack.c.b16 %v3992, %v3991
        %v4152 = vpack.c.b16 %v3994, %v3993
        %v4153 = vpack.c.b16 %v3996, %v3995
        %v4154 = vpack.c.b16 %v3998, %v3997
        %v4155 = vpack.c.b16 %v4000, %v3999
        %v4156 = vpack.c.b16 %v4002, %v4001
        %v4157 = vpack.c.b16 %v4004, %v4003
        %v4158 = vpack.c.b16 %v4006, %v4005
        %v4159 = vpack.c.b16 %v4008, %v4007
        %v4160 = vpack.c.b16 %v4010, %v4009
        %v4161 = vpack.c.b16 %v4012, %v4011
        %v4162 = vpack.c.b16 %v4014, %v4013
        %v4163 = vpack.c.b16 %v4016, %v4015
        %v4164 = vpack.c.b16 %v4018, %v4017
        %v4165 = vpack.c.b16 %v4020, %v4019
        %v4166 = vpack.c.b16 %v4022, %v4021
        %v4167 = vpack.c.b16 %v4024, %v4023
        %v4168 = vpack.c.b16 %v4026, %v4025
        %v4169 = vpack.c.b16 %v4028, %v4027
        %v4170 = vpack.c.b16 %v4030, %v4029
        %v4171 = vpack.c.b16 %v4032, %v4031
        %v4172 = vpack.c.b16 %v4034, %v4033
        %v4173 = vpack.c.b16 %v4036, %v4035
        %v4174 = vpack.c.b16 %v4038, %v4037
        %v4175 = vpack.c.b16 %v4040, %v4039
        %v4176 = vpack.c.b16 %v4042, %v4041
        %v4177 = vpack.c.b16 %v4044, %v4043
        %v4178 = vpack.c.b16 %v4046, %v4045
        %v4179 = vpack.c.b16 %v4048, %v4047
        %v4180 = vpack.c.b16 %v4050, %v4049
        %v4181 = vpack.c.b16 %v4052, %v4051
        %v4182 = vpack.c.b16 %v4054, %v4053
        %4311 = vmatprep.subr.bf16.mxu0 0
        %4312 = vmatpush1.bf16.msra.mxu0 %v4062
        %4313 = vmatprep.subr.bf16.mxu0 0
        %4314 = vmatpush1.bf16.msra.mxu0 %v4061
        %4315 = vmatprep.subr.bf16.mxu0 0
        %4316 = vmatpush1.bf16.msra.mxu0 %v4060
        %4317 = vmatprep.subr.bf16.mxu0 0
        %4318 = vmatpush1.bf16.msra.mxu0 %v4059
        %4319 = vmatprep.subr.bf16.mxu0 0
        %4320 = vmatpush1.bf16.msra.mxu0 %v4058
        %4321 = vmatprep.subr.bf16.mxu0 0
        %4322 = vmatpush1.bf16.msra.mxu0 %v4057
        %4323 = vmatprep.subr.bf16.mxu0 0
        %4324 = vmatpush1.bf16.msra.mxu0 %v4056
        %4325 = vmatprep.subr.bf16.mxu0 0
        %4326 = vmatpush1.bf16.msra.mxu0 %v4055
        %4327 = vmatprep.subr.bf16.mxu0 0
        %4328 = vmatpush2.bf16.msra.mxu0 %v4070
        %4329 = vmatprep.subr.bf16.mxu0 0
        %4330 = vmatpush2.bf16.msra.mxu0 %v4069
        %4331 = vmatprep.subr.bf16.mxu0 0
        %4332 = vmatpush2.bf16.msra.mxu0 %v4068
        %4333 = vmatprep.subr.bf16.mxu0 0
        %4334 = vmatpush2.bf16.msra.mxu0 %v4067
        %4335 = vmatprep.subr.bf16.mxu0 0
        %4336 = vmatpush2.bf16.msra.mxu0 %v4066
        %4337 = vmatprep.subr.bf16.mxu0 0
        %4338 = vmatpush2.bf16.msra.mxu0 %v4065
        %4339 = vmatprep.subr.bf16.mxu0 0
        %4340 = vmatpush2.bf16.msra.mxu0 %v4064
        %4341 = vmatprep.subr.bf16.mxu0 0
        %4342 = vmatpush2.bf16.msra.mxu0 %v4063
        %4343 = vmatprep.mubr.bf16.mxu0 %v3268
        %4344 = vmatmul.mubr.bf16.gmra.mxu0 %v3267
        %v4345 = vpop.f32.mrf.mxu0
        %v4346 = vadd.f32 %v3542, %v4345
        %v4347 = vpop.f32.mrf.mxu0
        %v4348 = vpop.f32.mrf.mxu0
        %v4349 = vadd.f32 %v3542, %v4348
        %v4350 = vpop.f32.mrf.mxu0
        %4351 = vdwg.mxu0
        %4352 = vmatprep.subr.bf16.mxu0 0
        %4353 = vmatpush1.bf16.msra.mxu0 %v4078
        %4354 = vmatprep.subr.bf16.mxu0 0
        %4355 = vmatpush1.bf16.msra.mxu0 %v4077
        %4356 = vmatprep.subr.bf16.mxu0 0
        %4357 = vmatpush1.bf16.msra.mxu0 %v4076
        %4358 = vmatprep.subr.bf16.mxu0 0
        %4359 = vmatpush1.bf16.msra.mxu0 %v4075
        %4360 = vmatprep.subr.bf16.mxu0 0
        %4361 = vmatpush1.bf16.msra.mxu0 %v4074
        %4362 = vmatprep.subr.bf16.mxu0 0
        %4363 = vmatpush1.bf16.msra.mxu0 %v4073
        %4364 = vmatprep.subr.bf16.mxu0 0
        %4365 = vmatpush1.bf16.msra.mxu0 %v4072
        %4366 = vmatprep.subr.bf16.mxu0 0
        %4367 = vmatpush1.bf16.msra.mxu0 %v4071
        %4368 = vmatprep.subr.bf16.mxu0 0
        %4369 = vmatpush2.bf16.msra.mxu0 %v4086
        %4370 = vmatprep.subr.bf16.mxu0 0
        %4371 = vmatpush2.bf16.msra.mxu0 %v4085
        %4372 = vmatprep.subr.bf16.mxu0 0
        %4373 = vmatpush2.bf16.msra.mxu0 %v4084
        %4374 = vmatprep.subr.bf16.mxu0 0
        %4375 = vmatpush2.bf16.msra.mxu0 %v4083
        %4376 = vmatprep.subr.bf16.mxu0 0
        %4377 = vmatpush2.bf16.msra.mxu0 %v4082
        %4378 = vmatprep.subr.bf16.mxu0 0
        %4379 = vmatpush2.bf16.msra.mxu0 %v4081
        %4380 = vmatprep.subr.bf16.mxu0 0
        %4381 = vmatpush2.bf16.msra.mxu0 %v4080
        %4382 = vmatprep.subr.bf16.mxu0 0
        %4383 = vmatpush2.bf16.msra.mxu0 %v4079
        %4384 = vmatprep.mubr.bf16.mxu0 %v3270
        %4385 = vmatmul.mubr.bf16.gmra.mxu0 %v3269
        %v4386 = vpop.f32.mrf.mxu0
        %v4387 = vadd.f32 %v4346, %v4386
        %v4388 = vpop.f32.mrf.mxu0
        %v4389 = vpop.f32.mrf.mxu0
        %v4390 = vadd.f32 %v4349, %v4389
        %v4391 = vpop.f32.mrf.mxu0
        %4392 = vdwg.mxu0
        %4393 = vmatprep.subr.bf16.mxu0 0
        %4394 = vmatpush1.bf16.msra.mxu0 %v4094
        %4395 = vmatprep.subr.bf16.mxu0 0
        %4396 = vmatpush1.bf16.msra.mxu0 %v4093
        %4397 = vmatprep.subr.bf16.mxu0 0
        %4398 = vmatpush1.bf16.msra.mxu0 %v4092
        %4399 = vmatprep.subr.bf16.mxu0 0
        %4400 = vmatpush1.bf16.msra.mxu0 %v4091
        %4401 = vmatprep.subr.bf16.mxu0 0
        %4402 = vmatpush1.bf16.msra.mxu0 %v4090
        %4403 = vmatprep.subr.bf16.mxu0 0
        %4404 = vmatpush1.bf16.msra.mxu0 %v4089
        %4405 = vmatprep.subr.bf16.mxu0 0
        %4406 = vmatpush1.bf16.msra.mxu0 %v4088
        %4407 = vmatprep.subr.bf16.mxu0 0
        %4408 = vmatpush1.bf16.msra.mxu0 %v4087
        %4409 = vmatprep.subr.bf16.mxu0 0
        %4410 = vmatpush2.bf16.msra.mxu0 %v4102
        %4411 = vmatprep.subr.bf16.mxu0 0
        %4412 = vmatpush2.bf16.msra.mxu0 %v4101
        %4413 = vmatprep.subr.bf16.mxu0 0
        %4414 = vmatpush2.bf16.msra.mxu0 %v4100
        %4415 = vmatprep.subr.bf16.mxu0 0
        %4416 = vmatpush2.bf16.msra.mxu0 %v4099
        %4417 = vmatprep.subr.bf16.mxu0 0
        %4418 = vmatpush2.bf16.msra.mxu0 %v4098
        %4419 = vmatprep.subr.bf16.mxu0 0
        %4420 = vmatpush2.bf16.msra.mxu0 %v4097
        %4421 = vmatprep.subr.bf16.mxu0 0
        %4422 = vmatpush2.bf16.msra.mxu0 %v4096
        %4423 = vmatprep.subr.bf16.mxu0 0
        %4424 = vmatpush2.bf16.msra.mxu0 %v4095
        %4425 = vmatprep.mubr.bf16.mxu0 %v3272
        %4426 = vmatmul.mubr.bf16.gmra.mxu0 %v3271
        %v4427 = vpop.f32.mrf.mxu0
        %v4428 = vadd.f32 %v4387, %v4427
        %v4429 = vpop.f32.mrf.mxu0
        %v4430 = vpop.f32.mrf.mxu0
        %v4431 = vadd.f32 %v4390, %v4430
        %v4432 = vpop.f32.mrf.mxu0
        %4433 = vdwg.mxu0
        %4434 = vmatprep.subr.bf16.mxu0 0
        %4435 = vmatpush1.bf16.msra.mxu0 %v4110
        %4436 = vmatprep.subr.bf16.mxu0 0
        %4437 = vmatpush1.bf16.msra.mxu0 %v4109
        %4438 = vmatprep.subr.bf16.mxu0 0
        %4439 = vmatpush1.bf16.msra.mxu0 %v4108
        %4440 = vmatprep.subr.bf16.mxu0 0
        %4441 = vmatpush1.bf16.msra.mxu0 %v4107
        %4442 = vmatprep.subr.bf16.mxu0 0
        %4443 = vmatpush1.bf16.msra.mxu0 %v4106
        %4444 = vmatprep.subr.bf16.mxu0 0
        %4445 = vmatpush1.bf16.msra.mxu0 %v4105
        %4446 = vmatprep.subr.bf16.mxu0 0
        %4447 = vmatpush1.bf16.msra.mxu0 %v4104
        %4448 = vmatprep.subr.bf16.mxu0 0
        %4449 = vmatpush1.bf16.msra.mxu0 %v4103
        %4450 = vmatprep.subr.bf16.mxu0 0
        %4451 = vmatpush2.bf16.msra.mxu0 %v4118
        %4452 = vmatprep.subr.bf16.mxu0 0
        %4453 = vmatpush2.bf16.msra.mxu0 %v4117
        %4454 = vmatprep.subr.bf16.mxu0 0
        %4455 = vmatpush2.bf16.msra.mxu0 %v4116
        %4456 = vmatprep.subr.bf16.mxu0 0
        %4457 = vmatpush2.bf16.msra.mxu0 %v4115
        %4458 = vmatprep.subr.bf16.mxu0 0
        %4459 = vmatpush2.bf16.msra.mxu0 %v4114
        %4460 = vmatprep.subr.bf16.mxu0 0
        %4461 = vmatpush2.bf16.msra.mxu0 %v4113
        %4462 = vmatprep.subr.bf16.mxu0 0
        %4463 = vmatpush2.bf16.msra.mxu0 %v4112
        %4464 = vmatprep.subr.bf16.mxu0 0
        %4465 = vmatpush2.bf16.msra.mxu0 %v4111
        %4466 = vmatprep.mubr.bf16.mxu0 %v3274
        %4467 = vmatmul.mubr.bf16.gmra.mxu0 %v3273
        %v4468 = vpop.f32.mrf.mxu0
        %v4469 = vadd.f32 %v4428, %v4468
        %v4470 = vpop.f32.mrf.mxu0
        %v4471 = vpop.f32.mrf.mxu0
        %v4472 = vadd.f32 %v4431, %v4471
        %v4473 = vpop.f32.mrf.mxu0
        %4474 = vdwg.mxu0
        %4475 = vmatprep.subr.bf16.mxu0 0
        %4476 = vmatpush1.bf16.msra.mxu0 %v4126
        %4477 = vmatprep.subr.bf16.mxu0 0
        %4478 = vmatpush1.bf16.msra.mxu0 %v4125
        %4479 = vmatprep.subr.bf16.mxu0 0
        %4480 = vmatpush1.bf16.msra.mxu0 %v4124
        %4481 = vmatprep.subr.bf16.mxu0 0
        %4482 = vmatpush1.bf16.msra.mxu0 %v4123
        %4483 = vmatprep.subr.bf16.mxu0 0
        %4484 = vmatpush1.bf16.msra.mxu0 %v4122
        %4485 = vmatprep.subr.bf16.mxu0 0
        %4486 = vmatpush1.bf16.msra.mxu0 %v4121
        %4487 = vmatprep.subr.bf16.mxu0 0
        %4488 = vmatpush1.bf16.msra.mxu0 %v4120
        %4489 = vmatprep.subr.bf16.mxu0 0
        %4490 = vmatpush1.bf16.msra.mxu0 %v4119
        %4491 = vmatprep.subr.bf16.mxu0 0
        %4492 = vmatpush2.bf16.msra.mxu0 %v4134
        %4493 = vmatprep.subr.bf16.mxu0 0
        %4494 = vmatpush2.bf16.msra.mxu0 %v4133
        %4495 = vmatprep.subr.bf16.mxu0 0
        %4496 = vmatpush2.bf16.msra.mxu0 %v4132
        %4497 = vmatprep.subr.bf16.mxu0 0
        %4498 = vmatpush2.bf16.msra.mxu0 %v4131
        %4499 = vmatprep.subr.bf16.mxu0 0
        %4500 = vmatpush2.bf16.msra.mxu0 %v4130
        %4501 = vmatprep.subr.bf16.mxu0 0
        %4502 = vmatpush2.bf16.msra.mxu0 %v4129
        %4503 = vmatprep.subr.bf16.mxu0 0
        %4504 = vmatpush2.bf16.msra.mxu0 %v4128
        %4505 = vmatprep.subr.bf16.mxu0 0
        %4506 = vmatpush2.bf16.msra.mxu0 %v4127
        %4507 = vmatprep.mubr.bf16.mxu0 %v3276
        %4508 = vmatmul.mubr.bf16.gmra.mxu0 %v3275
        %v4509 = vpop.f32.mrf.mxu0
        %v4510 = vadd.f32 %v4469, %v4509
        %v4511 = vpop.f32.mrf.mxu0
        %v4512 = vpop.f32.mrf.mxu0
        %v4513 = vadd.f32 %v4472, %v4512
        %v4514 = vpop.f32.mrf.mxu0
        %4515 = vdwg.mxu0
        %4516 = vmatprep.subr.bf16.mxu0 0
        %4517 = vmatpush1.bf16.msra.mxu0 %v4142
        %4518 = vmatprep.subr.bf16.mxu0 0
        %4519 = vmatpush1.bf16.msra.mxu0 %v4141
        %4520 = vmatprep.subr.bf16.mxu0 0
        %4521 = vmatpush1.bf16.msra.mxu0 %v4140
        %4522 = vmatprep.subr.bf16.mxu0 0
        %4523 = vmatpush1.bf16.msra.mxu0 %v4139
        %4524 = vmatprep.subr.bf16.mxu0 0
        %4525 = vmatpush1.bf16.msra.mxu0 %v4138
        %4526 = vmatprep.subr.bf16.mxu0 0
        %4527 = vmatpush1.bf16.msra.mxu0 %v4137
        %4528 = vmatprep.subr.bf16.mxu0 0
        %4529 = vmatpush1.bf16.msra.mxu0 %v4136
        %4530 = vmatprep.subr.bf16.mxu0 0
        %4531 = vmatpush1.bf16.msra.mxu0 %v4135
        %4532 = vmatprep.subr.bf16.mxu0 0
        %4533 = vmatpush2.bf16.msra.mxu0 %v4150
        %4534 = vmatprep.subr.bf16.mxu0 0
        %4535 = vmatpush2.bf16.msra.mxu0 %v4149
        %4536 = vmatprep.subr.bf16.mxu0 0
        %4537 = vmatpush2.bf16.msra.mxu0 %v4148
        %4538 = vmatprep.subr.bf16.mxu0 0
        %4539 = vmatpush2.bf16.msra.mxu0 %v4147
        %4540 = vmatprep.subr.bf16.mxu0 0
        %4541 = vmatpush2.bf16.msra.mxu0 %v4146
        %4542 = vmatprep.subr.bf16.mxu0 0
        %4543 = vmatpush2.bf16.msra.mxu0 %v4145
        %4544 = vmatprep.subr.bf16.mxu0 0
        %4545 = vmatpush2.bf16.msra.mxu0 %v4144
        %4546 = vmatprep.subr.bf16.mxu0 0
        %4547 = vmatpush2.bf16.msra.mxu0 %v4143
        %4548 = vmatprep.mubr.bf16.mxu0 %v3278
        %4549 = vmatmul.mubr.bf16.gmra.mxu0 %v3277
        %v4550 = vpop.f32.mrf.mxu0
        %v4551 = vadd.f32 %v4510, %v4550
        %v4552 = vpop.f32.mrf.mxu0
        %v4553 = vpop.f32.mrf.mxu0
        %v4554 = vadd.f32 %v4513, %v4553
        %v4555 = vpop.f32.mrf.mxu0
        %4556 = vdwg.mxu0
        %4557 = vmatprep.subr.bf16.mxu0 0
        %4558 = vmatpush1.bf16.msra.mxu0 %v4158
        %4559 = vmatprep.subr.bf16.mxu0 0
        %4560 = vmatpush1.bf16.msra.mxu0 %v4157
        %4561 = vmatprep.subr.bf16.mxu0 0
        %4562 = vmatpush1.bf16.msra.mxu0 %v4156
        %4563 = vmatprep.subr.bf16.mxu0 0
        %4564 = vmatpush1.bf16.msra.mxu0 %v4155
        %4565 = vmatprep.subr.bf16.mxu0 0
        %4566 = vmatpush1.bf16.msra.mxu0 %v4154
        %4567 = vmatprep.subr.bf16.mxu0 0
        %4568 = vmatpush1.bf16.msra.mxu0 %v4153
        %4569 = vmatprep.subr.bf16.mxu0 0
        %4570 = vmatpush1.bf16.msra.mxu0 %v4152
        %4571 = vmatprep.subr.bf16.mxu0 0
        %4572 = vmatpush1.bf16.msra.mxu0 %v4151
        %4573 = vmatprep.subr.bf16.mxu0 0
        %4574 = vmatpush2.bf16.msra.mxu0 %v4166
        %4575 = vmatprep.subr.bf16.mxu0 0
        %4576 = vmatpush2.bf16.msra.mxu0 %v4165
        %4577 = vmatprep.subr.bf16.mxu0 0
        %4578 = vmatpush2.bf16.msra.mxu0 %v4164
        %4579 = vmatprep.subr.bf16.mxu0 0
        %4580 = vmatpush2.bf16.msra.mxu0 %v4163
        %4581 = vmatprep.subr.bf16.mxu0 0
        %4582 = vmatpush2.bf16.msra.mxu0 %v4162
        %4583 = vmatprep.subr.bf16.mxu0 0
        %4584 = vmatpush2.bf16.msra.mxu0 %v4161
        %4585 = vmatprep.subr.bf16.mxu0 0
        %4586 = vmatpush2.bf16.msra.mxu0 %v4160
        %4587 = vmatprep.subr.bf16.mxu0 0
        %4588 = vmatpush2.bf16.msra.mxu0 %v4159
        %4589 = vmatprep.mubr.bf16.mxu0 %v3280
        %4590 = vmatmul.mubr.bf16.gmra.mxu0 %v3279
        %v4591 = vpop.f32.mrf.mxu0
        %v4592 = vadd.f32 %v4551, %v4591
        %v4593 = vpop.f32.mrf.mxu0
        %v4594 = vpop.f32.mrf.mxu0
        %v4595 = vadd.f32 %v4554, %v4594
        %v4596 = vpop.f32.mrf.mxu0
        %4597 = vdwg.mxu0
        %4598 = vmatprep.subr.bf16.mxu0 0
        %4599 = vmatpush1.bf16.msra.mxu0 %v4174
        %4600 = vmatprep.subr.bf16.mxu0 0
        %4601 = vmatpush1.bf16.msra.mxu0 %v4173
        %4602 = vmatprep.subr.bf16.mxu0 0
        %4603 = vmatpush1.bf16.msra.mxu0 %v4172
        %4604 = vmatprep.subr.bf16.mxu0 0
        %4605 = vmatpush1.bf16.msra.mxu0 %v4171
        %4606 = vmatprep.subr.bf16.mxu0 0
        %4607 = vmatpush1.bf16.msra.mxu0 %v4170
        %4608 = vmatprep.subr.bf16.mxu0 0
        %4609 = vmatpush1.bf16.msra.mxu0 %v4169
        %4610 = vmatprep.subr.bf16.mxu0 0
        %4611 = vmatpush1.bf16.msra.mxu0 %v4168
        %4612 = vmatprep.subr.bf16.mxu0 0
        %4613 = vmatpush1.bf16.msra.mxu0 %v4167
        %4614 = vmatprep.subr.bf16.mxu0 0
        %4615 = vmatpush2.bf16.msra.mxu0 %v4182
        %4616 = vmatprep.subr.bf16.mxu0 0
        %4617 = vmatpush2.bf16.msra.mxu0 %v4181
        %4618 = vmatprep.subr.bf16.mxu0 0
        %4619 = vmatpush2.bf16.msra.mxu0 %v4180
        %4620 = vmatprep.subr.bf16.mxu0 0
        %4621 = vmatpush2.bf16.msra.mxu0 %v4179
        %4622 = vmatprep.subr.bf16.mxu0 0
        %4623 = vmatpush2.bf16.msra.mxu0 %v4178
        %4624 = vmatprep.subr.bf16.mxu0 0
        %4625 = vmatpush2.bf16.msra.mxu0 %v4177
        %4626 = vmatprep.subr.bf16.mxu0 0
        %4627 = vmatpush2.bf16.msra.mxu0 %v4176
        %4628 = vmatprep.subr.bf16.mxu0 0
        %4629 = vmatpush2.bf16.msra.mxu0 %v4175
        %4630 = vmatprep.mubr.bf16.mxu0 %v3282
        %4631 = vmatmul.mubr.bf16.gmra.mxu0 %v3281
        %v4632 = vpop.f32.mrf.mxu0
        %v4633 = vadd.f32 %v4592, %v4632
        %v4634 = vpop.f32.mrf.mxu0
        %v4635 = vpop.f32.mrf.mxu0
        %v4636 = vadd.f32 %v4595, %v4635
        %v4637 = vpop.f32.mrf.mxu0
        %4638 = vdwg.mxu0
        %v4639 = vadd.f32 %v2609, %v4633
        %v4640 = vadd.f32 %v2610, %v4636
        %v4641 = vsel %vm482, %v4639, 0.0
        %4642 = vadd.xlane.f32.xlu0 %v4641
        %v4643 = vpop.xlane.xlu0 %4642
        %v4644 = vsel %vm482, %v4640, 0.0
        %4645 = vadd.xlane.f32.xlu0 %v4644
        %v4646 = vpop.xlane.xlu0 %4645
        %v4647 = vmul.f32 %v4643, %v2578
        %v4648 = vmul.f32 %v4646, %v2578
        %v4649 = vsub.f32 %v4639, %v4647
        %v4650 = vsub.f32 %v4640, %v4648
        %v4651 = vmul.f32 %v4649, %v4649
        %v4652 = vmul.f32 %v4650, %v4650
        %v4653 = vsel %vm482, %v4651, 0.0
        %4654 = vadd.xlane.f32.xlu0 %v4653
        %v4655 = vpop.xlane.xlu0 %4654
        %v4656 = vsel %vm482, %v4652, 0.0
        %4657 = vadd.xlane.f32.xlu0 %v4656
        %v4658 = vpop.xlane.xlu0 %4657
        %v4659 = vmul.f32 %v4655, %v2578
        %v4660 = vmul.f32 %v4658, %v2578
        %v4661 = vadd.f32 %v4659, 1e-05
        %v4662 = vadd.f32 %v4660, 1e-05
        %v4663 = vrsqrt.pop %v4661
        %v4664 = vrsqrt.pop %v4662
        %v4665 = vmul.f32 %v4649, %v4663
        %v4666 = vmul.f32 %v4650, %v4664
        %v4667 = vlaneseq
        %v4668 = vshrl.u32 %v4667, 7
        %v4669 = vsub.s32 4, %v4668
        %v4670 = vrot.slane %v458, %v4669
        %v4671 = vmul.f32 %v4665, %v4670
        %v4672 = vmul.f32 %v4666, %v4670
        %v4673 = vlaneseq
        %v4674 = vshrl.u32 %v4673, 7
        %v4675 = vsub.s32 5, %v4674
        %v4676 = vrot.slane %v458, %v4675
        %v4677 = vadd.f32 %v4671, %v4676
        %v4678 = vadd.f32 %v4672, %v4676
        %4679 = vst.msk [vmem:[#allocation2] sm:$0xff] %vm482, %v4677
        %4680 = vst.msk [vmem:[#allocation2 + $0x8] sm:$0xff] %vm482, %v4678
        %p4681 = scmp.eq.s32.totalorder %s21, 1
        // Predicated region
        $region92: #{tpu_custom_call.1} parent=51 // pred_check
          %p4682 = pneg %p4681
        $region93: #{tpu_custom_call.1} parent=51 // pred_check_branch
          %4684 = sbr.rel (%p4682) target = $region95
        $region94: #{tpu_custom_call.1} parent=51 // pred_region
          %v4685 = vld [vmem:[#allocation2] sm:$0xff]
          %v4686 = vld [vmem:[#allocation2 + $0x8] sm:$0xff]
          %v4687 = vld [vmem:[%s8] sm:$0x1]
          %v4688 = vld [vmem:[%s8 + $0x1] sm:$0x1]
          %v4689 = vsel %vm482, %v4685, 0.0
          %4690 = vadd.xlane.f32.xlu0 %v4689
          %v4691 = vpop.xlane.xlu0 %4690
          %v4692 = vsel %vm482, %v4686, 0.0
          %4693 = vadd.xlane.f32.xlu0 %v4692
          %v4694 = vpop.xlane.xlu0 %4693
          %v4695 = vmul.f32 %v4691, %v2578
          %v4696 = vmul.f32 %v4694, %v2578
          %v4697 = vsub.f32 %v4685, %v4695
          %v4698 = vsub.f32 %v4686, %v4696
          %v4699 = vmul.f32 %v4697, %v4697
          %v4700 = vmul.f32 %v4698, %v4698
          %v4701 = vsel %vm482, %v4699, 0.0
          %4702 = vadd.xlane.f32.xlu0 %v4701
          %v4703 = vpop.xlane.xlu0 %4702
          %v4704 = vsel %vm482, %v4700, 0.0
          %4705 = vadd.xlane.f32.xlu0 %v4704
          %v4706 = vpop.xlane.xlu0 %4705
          %v4707 = vmul.f32 %v4703, %v2578
          %v4708 = vmul.f32 %v4706, %v2578
          %v4709 = vadd.f32 %v4707, 1e-05
          %v4710 = vadd.f32 %v4708, 1e-05
          %v4711 = vrsqrt.pop %v4709
          %v4712 = vrsqrt.pop %v4710
          %v4713 = vmul.f32 %v4697, %v4711
          %v4714 = vmul.f32 %v4698, %v4712
          %v4715 = vlaneseq
          %v4716 = vshrl.u32 %v4715, 7
          %v4717 = vsub.s32 0, %v4716
          %v4718 = vrot.slane %v4687, %v4717
          %v4719 = vmul.f32 %v4713, %v4718
          %v4720 = vmul.f32 %v4714, %v4718
          %v4721 = vlaneseq
          %v4722 = vshrl.u32 %v4721, 7
          %v4723 = vsub.s32 0, %v4722
          %v4724 = vrot.slane %v4688, %v4723
          %v4725 = vadd.f32 %v4719, %v4724
          %v4726 = vadd.f32 %v4720, %v4724
          %4727 = vst.msk [vmem:[#allocation2] sm:$0xff] %vm482, %v4725
          %4728 = vst.msk [vmem:[#allocation2 + $0x8] sm:$0xff] %vm482, %v4726
        $region95: #{tpu_custom_call.1} parent=51 // pred_fallthru
          _
        // Predicated region
        $region96: #{tpu_custom_call.1} parent=51 // pred_check
          %p4729 = pneg %p237
        $region97: #{tpu_custom_call.1} parent=51 // pred_check_branch
          %4731 = sbr.rel (%p4729) target = $region99
        $region98: #{tpu_custom_call.1} parent=51 // pred_region
          %s4733 = ssub.s32 256, 256
          %4734 = vsyncadd [#allocation3], %s4733
          %s4735 = sshll.u32 [#allocation2], 4
          %s4736 = int_to_ptr.vmem [resolvable:$true] %s4735
          %4741 = dma.vmem_to_hbm [thread:$0]  %s4736, 256, %s9, [#allocation3], 128, 128, 8
        $region99: #{tpu_custom_call.1} parent=51 // pred_fallthru
          _
        // Predicated region
        $region100: #{tpu_custom_call.1} parent=51 // pred_check
          %p4742 = pneg %p237
        $region101: #{tpu_custom_call.1} parent=51 // pred_check_branch
          %4744 = sbr.rel (%p4742) target = $region103
        $region102: #{tpu_custom_call.1} parent=51 // pred_region
          %4745 = dma.done [#allocation3], 256
        $region103: #{tpu_custom_call.1} parent=51 // pred_fallthru
          _
      $region52: #{tpu_custom_call.1} parent=5 // pred_fallthru
        _
      %p4746 = scmp.le.s32.totalorder 2, %s16
      // Predicated region
      $region104: #{tpu_custom_call.1} parent=5 // pred_check
        %p4747 = pneg %p4746
      $region105: #{tpu_custom_call.1} parent=5 // pred_check_branch
        %4749 = sbr.rel (%p4747) target = $region107
      $region106: #{tpu_custom_call.1} parent=5 // pred_region
        %s4750 = ssub.s32 %s16, 2
      $region107: #{tpu_custom_call.1} parent=5 // pred_fallthru
        _
    $region6: #{tpu_custom_call.1} parent=1 // loop_footer
      %s20 = sadd.s32 1, %s16
    $region7: #{tpu_custom_call.1} parent=1 // loop_footer_branch
      %15 = sbr.rel target = $region3
    $region8: #{tpu_custom_call.1} parent=1 // loop_exit
      _
    %4751 = vsyncpa [#allocation3], 1
    %s4752 = scalar_lea.sflag [#allocation3], 1
    %4753 = vsyncpa %s4752, 1

</llo_original>
